<compile_context>
chip_gen: v5e
topology: v5e:2x2
jax: 0.10.0
libtpu: 0.0.40
codegen_flags: <defaults>
</compile_context>

<pallas_src>
import jax
import jax.numpy as jnp
from jax import lax
from jax.experimental import pallas as pl
from jax.experimental.pallas import tpu as pltpu

F_PAD = 128  # fc output lane padding (10 real classes)


def make_net_kernel(H, W, Cin, C, L, h):
    WCin = W * Cin
    WC = W * C

    def kernel(x_ref, w0_ref, s_ref, t_ref, wl_ref, bl_ref, wf_ref, bf_ref,
               o_ref, pad_ref):
        # Zero the padded scratch every grid step (cheap, ~18 KiB fill).  The
        # 1-pixel border supplies the conv zero padding.  NOT guarded with
        # pl.when(program_id==0): with a "parallel" batch axis each TensorCore
        # owns its own scratch and may never execute grid step 0.
        pad_ref[...] = jnp.zeros(pad_ref.shape, pad_ref.dtype)

        # ---- conv0 (3x3, stride 1, pad 1): 9 taps, one MXU matmul each ----
        acc = jnp.zeros((H, WC), jnp.float32)
        for dy in range(3):
            for dx in range(3):
                patch = x_ref[0, dy:dy + H, dx * Cin:dx * Cin + WCin]
                acc = acc + jnp.dot(patch, w0_ref[dy * 3 + dx],
                                    preferred_element_type=jnp.float32)

        # ---- BatchNorm (eval, running stats) with conv0 bias folded in ----
        acc = acc * s_ref[...] + t_ref[...]
        # dropout1: identity in eval mode.

        # ---- residual ODE-style layers ----
        for i in range(L):
            pad_ref[1:H + 1, C:C + WC] = acc          # write interior
            c_acc = jnp.zeros((H, WC), jnp.float32)
            for dy in range(3):
                for dx in range(3):
                    patch = pad_ref[dy:dy + H, dx * C:dx * C + WC]
                    c_acc = c_acc + jnp.dot(patch, wl_ref[i, dy * 3 + dx],
                                            preferred_element_type=jnp.float32)
            c_acc = c_acc + bl_ref[i]
            # smooth_leaky_relu: 0.1*x + 0.9*log(1+exp(x)), overflow-safe form.
            sp = jnp.maximum(c_acc, 0.0) + jnp.log(1.0 + jnp.exp(-jnp.abs(c_acc)))
            acc = acc + h * (0.1 * c_acc + 0.9 * sp)

        # ---- fused fc1 epilogue (dropout2 is identity in eval mode) ----
        # Flatten order is (y, x, c); wf_ref[y] is the (W*C, 128-padded)
        # weight slice for spatial row y, so logits = bf + sum_y acc[y] @ wf[y].
        logits = bf_ref[...]
        for y in range(H):
            logits = logits + jnp.dot(acc[y:y + 1, :], wf_ref[y],
                                      preferred_element_type=jnp.float32)
        o_ref[0] = logits

    return kernel


def pack_params(raw_params, *, H, W):
    """Repack torch-style parameters into the kernel's lane-dense layout."""
    (w0, b0, gamma, beta, run_mean, run_var, eps, wl, bl, wf_torch, bf) = raw_params
    Cin, C = w0.shape[2], w0.shape[3]
    L = wl.shape[0]
    eye_w = jnp.eye(W, dtype=jnp.float32)

    # Block-diagonal tap weights: conv becomes (H, W*Cin) @ (W*Cin, W*C).
    w0bd = jnp.stack([jnp.kron(eye_w, w0[dy, dx])
                      for dy in range(3) for dx in range(3)])          # (9, W*Cin, W*C)
    wlbd = jnp.stack([jnp.stack([jnp.kron(eye_w, wl[i, dy, dx])
                                 for dy in range(3) for dx in range(3)])
                      for i in range(L)])                              # (L, 9, W*C, W*C)

    # Fold conv0 bias into the BN shift: BN(conv+b0) = conv*s + (b0*s + shift).
    inv = gamma / jnp.sqrt(run_var + eps)
    scale_c = inv
    shift_c = beta - run_mean * inv + b0 * inv
    s_t = jnp.tile(scale_c, W).reshape(1, W * C)
    t_t = jnp.tile(shift_c, W).reshape(1, W * C)
    bl_t = jnp.tile(bl, (1, W)).reshape(L, 1, W * C)

    # fc1 weight: torch (10, C, H, W) -> (H, W*C, 10) in (y, x, c) order,
    # output dim zero-padded to 128 lanes for unmasked stores.
    wf_k = jnp.transpose(wf_torch, (2, 3, 1, 0)).reshape(H, W * C, 10)
    wf3 = jnp.zeros((H, W * C, F_PAD), jnp.float32).at[:, :, :10].set(wf_k)
    bf_p = jnp.zeros((1, F_PAD), jnp.float32).at[0, :10].set(bf)

    return w0bd, s_t, t_t, wlbd, bl_t, wf3, bf_p


def net_forward(x_nchw, raw_params, *, h, L, H=32, W=32):
    w0 = raw_params[0]
    N = x_nchw.shape[0]
    Cin, C = w0.shape[2], w0.shape[3]

    w0bd, s_t, t_t, wlbd, bl_t, wf3, bf_p = pack_params(raw_params, H=H, W=W)

    # NCHW -> NHWC, explicit 1-px zero pad, then merge (x, ci) so the kernel
    # sees the lane-dense (H+2, (W+2)*Cin) layout.
    x = jnp.transpose(x_nchw, (0, 2, 3, 1)).astype(jnp.float32)
    xpad = jnp.pad(x, ((0, 0), (1, 1), (1, 1), (0, 0)))
    xlin = xpad.reshape(N, H + 2, (W + 2) * Cin)

    kernel = make_net_kernel(H, W, Cin, C, L, h)
    out = pl.pallas_call(
        kernel,
        out_shape=jax.ShapeDtypeStruct((N, 1, F_PAD), jnp.float32),
        grid_spec=pltpu.PrefetchScalarGridSpec(
            num_scalar_prefetch=0,
            grid=(N,),
            in_specs=[
                pl.BlockSpec((1, H + 2, (W + 2) * Cin), lambda b: (b, 0, 0)),
                pl.BlockSpec((9, W * Cin, W * C), lambda b: (0, 0, 0)),
                pl.BlockSpec((1, W * C), lambda b: (0, 0)),
                pl.BlockSpec((1, W * C), lambda b: (0, 0)),
                pl.BlockSpec((L, 9, W * C, W * C), lambda b: (0, 0, 0, 0)),
                pl.BlockSpec((L, 1, W * C), lambda b: (0, 0, 0)),
                pl.BlockSpec((H, W * C, F_PAD), lambda b: (0, 0, 0)),
                pl.BlockSpec((1, F_PAD), lambda b: (0, 0)),
            ],
            out_specs=pl.BlockSpec((1, 1, F_PAD), lambda b: (b, 0, 0)),
            scratch_shapes=[pltpu.VMEM((H + 2, (W + 2) * C), jnp.float32)],
        ),
        compiler_params=pltpu.CompilerParams(
            dimension_semantics=("parallel",)),
    )(xlin, w0bd, s_t, t_t, wlbd, bl_t, wf3, bf_p)

    # Slice away the lane padding (only 10 real classes).
    return out[:, 0, :10]


def reference_forward(x_nchw, raw_params, *, h, L, H=32, W=32):
    """Independent pure-JAX reference in torch layout/flatten order."""
    (w0, b0, gamma, beta, run_mean, run_var, eps, wl, bl, wf_torch, bf) = raw_params
    x = jnp.transpose(x_nchw, (0, 2, 3, 1)).astype(jnp.float32)
    dn = ("NHWC", "HWIO", "NHWC")
    y = lax.conv_general_dilated(x, w0, (1, 1), "SAME", dimension_numbers=dn,
                                 precision=lax.Precision.HIGHEST) + b0
    inv = gamma / jnp.sqrt(run_var + eps)
    y = y * inv + (beta - run_mean * inv)
    for i in range(L):
        c = lax.conv_general_dilated(y, wl[i], (1, 1), "SAME",
                                     dimension_numbers=dn,
                                     precision=lax.Precision.HIGHEST) + bl[i]
        y = y + h * (0.1 * c + 0.9 * jax.nn.softplus(c))
    # torch.flatten(x, 1) flattens NCHW as (c, h, w).
    flat = jnp.transpose(y, (0, 3, 1, 2)).reshape(x.shape[0], -1)
    return jnp.dot(flat, wf_torch.reshape(10, -1).T,
                   precision=lax.Precision.HIGHEST) + bf


if __name__ == "__main__":
    # fc1 in_features = C*32*32 forces 32x32 spatial; keep C, L small.
    N, Cin, H, W = 2, 3, 32, 32
    C = 4                # conv_channel_num
    L = 2                # net_layer_num
    h = 0.1
    eps = 1e-5

    key = jax.random.PRNGKey(0)
    k = jax.random.split(key, 10)

    # Deterministic synthetic parameters (not a checkpoint load).
    w0 = 0.2 * jax.random.normal(k[0], (3, 3, Cin, C), jnp.float32)      # HWIO
    b0 = 0.1 * jax.random.normal(k[1], (C,), jnp.float32)
    gamma = 1.0 + 0.1 * jax.random.normal(k[2], (C,), jnp.float32)
    beta = 0.1 * jax.random.normal(k[3], (C,), jnp.float32)
    run_mean = 0.1 * jax.random.normal(k[4], (C,), jnp.float32)
    run_var = 1.0 + 0.1 * jax.random.uniform(k[5], (C,), jnp.float32)
    # TODO(synk): train-mode BatchNorm (batch stats) and Dropout randomness are
    # not reproduced; eval-mode semantics are implemented instead.
    wl = 0.2 * jax.random.normal(k[6], (L, 3, 3, C, C), jnp.float32)     # HWIO per layer
    bl = 0.1 * jax.random.normal(k[7], (L, C), jnp.float32)
    wf_torch = 0.05 * jax.random.normal(k[8], (10, C, H, W), jnp.float32)
    bf = 0.1 * jax.random.normal(k[9], (10,), jnp.float32)

    raw = (w0, b0, gamma, beta, run_mean, run_var, eps, wl, bl, wf_torch, bf)

    x = jax.random.normal(jax.random.PRNGKey(1), (N, Cin, H, W), jnp.float32)

    logits = jax.block_until_ready(net_forward(x, raw, h=h, L=L, H=H, W=W))
    assert logits.shape == (N, 10)

    ref = jax.block_until_ready(reference_forward(x, raw, h=h, L=L, H=H, W=W))
    assert jnp.allclose(logits, ref, rtol=5e-2, atol=5e-2), (logits, ref)

    print("KERNEL_OK")
</pallas_src>

<mosaic_0001>
module attributes {stable_mosaic.version = 11 : i64} {
  func.func @kernel(%arg0: i32, %arg1: memref<1x34x102xf32, #tpu.memory_space<vmem>>, %arg2: memref<9x96x128xf32, #tpu.memory_space<vmem>>, %arg3: memref<1x128xf32, #tpu.memory_space<vmem>>, %arg4: memref<1x128xf32, #tpu.memory_space<vmem>>, %arg5: memref<2x9x128x128xf32, #tpu.memory_space<vmem>>, %arg6: memref<2x1x128xf32, #tpu.memory_space<vmem>>, %arg7: memref<32x128x128xf32, #tpu.memory_space<vmem>>, %arg8: memref<1x128xf32, #tpu.memory_space<vmem>>, %arg9: memref<1x1x128xf32, #tpu.memory_space<vmem>>, %arg10: memref<34x136xf32, #tpu.memory_space<vmem>>) attributes {dimension_semantics = [#tpu.dimension_semantics<parallel>], iteration_bounds = array<i64: 2>, scalar_prefetch = 0 : i64, scratch_operands = 1 : i64, tpu.core_type = #tpu.core_type<tc>, window_params = [{transform_indices = @transform_0, window_bounds = array<i64: 1, 34, 102>}, {pipeline_mode = #tpu.pipeline_mode<synchronous>, transform_indices = @transform_1, window_bounds = array<i64: 9, 96, 128>}, {pipeline_mode = #tpu.pipeline_mode<synchronous>, transform_indices = @transform_2, window_bounds = array<i64: 1, 128>}, {pipeline_mode = #tpu.pipeline_mode<synchronous>, transform_indices = @transform_3, window_bounds = array<i64: 1, 128>}, {pipeline_mode = #tpu.pipeline_mode<synchronous>, transform_indices = @transform_4, window_bounds = array<i64: 2, 9, 128, 128>}, {pipeline_mode = #tpu.pipeline_mode<synchronous>, transform_indices = @transform_5, window_bounds = array<i64: 2, 1, 128>}, {pipeline_mode = #tpu.pipeline_mode<synchronous>, transform_indices = @transform_6, window_bounds = array<i64: 32, 128, 128>}, {pipeline_mode = #tpu.pipeline_mode<synchronous>, transform_indices = @transform_7, window_bounds = array<i64: 1, 128>}, {transform_indices = @transform_8, window_bounds = array<i64: 1, 1, 128>}]} {
    %cst = arith.constant 0.000000e+00 : f32
    %0 = vector.broadcast %cst : f32 to vector<34x136xf32>
    %c0 = arith.constant 0 : index
    %c0_0 = arith.constant 0 : index
    %1 = vector.load %arg10[%c0, %c0_0] : memref<34x136xf32, #tpu.memory_space<vmem>>, vector<34x136xf32>
    tpu.vector_store %arg10[%c0, %c0_0], %0 {strides = array<i32>} : memref<34x136xf32, #tpu.memory_space<vmem>>, vector<34x136xf32>,
    %cst_1 = arith.constant 0.000000e+00 : f32
    %2 = vector.broadcast %cst_1 : f32 to vector<32x128xf32>
    %c0_2 = arith.constant 0 : index
    %c0_3 = arith.constant 0 : index
    %c0_4 = arith.constant 0 : index
    %3 = vector.load %arg1[%c0_2, %c0_3, %c0_4] : memref<1x34x102xf32, #tpu.memory_space<vmem>>, vector<1x32x96xf32>
    %4 = vector.shape_cast %3 : vector<1x32x96xf32> to vector<32x96xf32>
    %c0_5 = arith.constant 0 : index
    %c0_6 = arith.constant 0 : index
    %c0_7 = arith.constant 0 : index
    %5 = vector.load %arg2[%c0_5, %c0_6, %c0_7] : memref<9x96x128xf32, #tpu.memory_space<vmem>>, vector<1x96x128xf32>
    %6 = vector.shape_cast %5 : vector<1x96x128xf32> to vector<96x128xf32>
    %cst_8 = arith.constant dense<0.000000e+00> : vector<32x128xf32>
    %7 = tpu.matmul %4, %6, %cst_8 {dimension_numbers = #tpu.dot_dimension_numbers<[1], [0], [0], [1], [0, 0, 1, 1], [], []>} : vector<32x96xf32>, vector<96x128xf32>, vector<32x128xf32> -> vector<32x128xf32>
    %8 = arith.addf %2, %7 : vector<32x128xf32>
    %c0_9 = arith.constant 0 : index
    %c0_10 = arith.constant 0 : index
    %c3 = arith.constant 3 : index
    %9 = vector.load %arg1[%c0_9, %c0_10, %c3] : memref<1x34x102xf32, #tpu.memory_space<vmem>>, vector<1x32x96xf32>
    %10 = vector.shape_cast %9 : vector<1x32x96xf32> to vector<32x96xf32>
    %c1 = arith.constant 1 : index
    %c0_11 = arith.constant 0 : index
    %c0_12 = arith.constant 0 : index
    %11 = vector.load %arg2[%c1, %c0_11, %c0_12] : memref<9x96x128xf32, #tpu.memory_space<vmem>>, vector<1x96x128xf32>
    %12 = vector.shape_cast %11 : vector<1x96x128xf32> to vector<96x128xf32>
    %cst_13 = arith.constant dense<0.000000e+00> : vector<32x128xf32>
    %13 = tpu.matmul %10, %12, %cst_13 {dimension_numbers = #tpu.dot_dimension_numbers<[1], [0], [0], [1], [0, 0, 1, 1], [], []>} : vector<32x96xf32>, vector<96x128xf32>, vector<32x128xf32> -> vector<32x128xf32>
    %14 = arith.addf %8, %13 : vector<32x128xf32>
    %c0_14 = arith.constant 0 : index
    %c0_15 = arith.constant 0 : index
    %c6 = arith.constant 6 : index
    %15 = vector.load %arg1[%c0_14, %c0_15, %c6] : memref<1x34x102xf32, #tpu.memory_space<vmem>>, vector<1x32x96xf32>
    %16 = vector.shape_cast %15 : vector<1x32x96xf32> to vector<32x96xf32>
    %c2 = arith.constant 2 : index
    %c0_16 = arith.constant 0 : index
    %c0_17 = arith.constant 0 : index
    %17 = vector.load %arg2[%c2, %c0_16, %c0_17] : memref<9x96x128xf32, #tpu.memory_space<vmem>>, vector<1x96x128xf32>
    %18 = vector.shape_cast %17 : vector<1x96x128xf32> to vector<96x128xf32>
    %cst_18 = arith.constant dense<0.000000e+00> : vector<32x128xf32>
    %19 = tpu.matmul %16, %18, %cst_18 {dimension_numbers = #tpu.dot_dimension_numbers<[1], [0], [0], [1], [0, 0, 1, 1], [], []>} : vector<32x96xf32>, vector<96x128xf32>, vector<32x128xf32> -> vector<32x128xf32>
    %20 = arith.addf %14, %19 : vector<32x128xf32>
    %c0_19 = arith.constant 0 : index
    %c1_20 = arith.constant 1 : index
    %c0_21 = arith.constant 0 : index
    %21 = vector.load %arg1[%c0_19, %c1_20, %c0_21] : memref<1x34x102xf32, #tpu.memory_space<vmem>>, vector<1x32x96xf32>
    %22 = vector.shape_cast %21 : vector<1x32x96xf32> to vector<32x96xf32>
    %c3_22 = arith.constant 3 : index
    %c0_23 = arith.constant 0 : index
    %c0_24 = arith.constant 0 : index
    %23 = vector.load %arg2[%c3_22, %c0_23, %c0_24] : memref<9x96x128xf32, #tpu.memory_space<vmem>>, vector<1x96x128xf32>
    %24 = vector.shape_cast %23 : vector<1x96x128xf32> to vector<96x128xf32>
    %cst_25 = arith.constant dense<0.000000e+00> : vector<32x128xf32>
    %25 = tpu.matmul %22, %24, %cst_25 {dimension_numbers = #tpu.dot_dimension_numbers<[1], [0], [0], [1], [0, 0, 1, 1], [], []>} : vector<32x96xf32>, vector<96x128xf32>, vector<32x128xf32> -> vector<32x128xf32>
    %26 = arith.addf %20, %25 : vector<32x128xf32>
    %c0_26 = arith.constant 0 : index
    %c1_27 = arith.constant 1 : index
    %c3_28 = arith.constant 3 : index
    %27 = vector.load %arg1[%c0_26, %c1_27, %c3_28] : memref<1x34x102xf32, #tpu.memory_space<vmem>>, vector<1x32x96xf32>
    %28 = vector.shape_cast %27 : vector<1x32x96xf32> to vector<32x96xf32>
    %c4 = arith.constant 4 : index
    %c0_29 = arith.constant 0 : index
    %c0_30 = arith.constant 0 : index
    %29 = vector.load %arg2[%c4, %c0_29, %c0_30] : memref<9x96x128xf32, #tpu.memory_space<vmem>>, vector<1x96x128xf32>
    %30 = vector.shape_cast %29 : vector<1x96x128xf32> to vector<96x128xf32>
    %cst_31 = arith.constant dense<0.000000e+00> : vector<32x128xf32>
    %31 = tpu.matmul %28, %30, %cst_31 {dimension_numbers = #tpu.dot_dimension_numbers<[1], [0], [0], [1], [0, 0, 1, 1], [], []>} : vector<32x96xf32>, vector<96x128xf32>, vector<32x128xf32> -> vector<32x128xf32>
    %32 = arith.addf %26, %31 : vector<32x128xf32>
    %c0_32 = arith.constant 0 : index
    %c1_33 = arith.constant 1 : index
    %c6_34 = arith.constant 6 : index
    %33 = vector.load %arg1[%c0_32, %c1_33, %c6_34] : memref<1x34x102xf32, #tpu.memory_space<vmem>>, vector<1x32x96xf32>
    %34 = vector.shape_cast %33 : vector<1x32x96xf32> to vector<32x96xf32>
    %c5 = arith.constant 5 : index
    %c0_35 = arith.constant 0 : index
    %c0_36 = arith.constant 0 : index
    %35 = vector.load %arg2[%c5, %c0_35, %c0_36] : memref<9x96x128xf32, #tpu.memory_space<vmem>>, vector<1x96x128xf32>
    %36 = vector.shape_cast %35 : vector<1x96x128xf32> to vector<96x128xf32>
    %cst_37 = arith.constant dense<0.000000e+00> : vector<32x128xf32>
    %37 = tpu.matmul %34, %36, %cst_37 {dimension_numbers = #tpu.dot_dimension_numbers<[1], [0], [0], [1], [0, 0, 1, 1], [], []>} : vector<32x96xf32>, vector<96x128xf32>, vector<32x128xf32> -> vector<32x128xf32>
    %38 = arith.addf %32, %37 : vector<32x128xf32>
    %c0_38 = arith.constant 0 : index
    %c2_39 = arith.constant 2 : index
    %c0_40 = arith.constant 0 : index
    %39 = vector.load %arg1[%c0_38, %c2_39, %c0_40] : memref<1x34x102xf32, #tpu.memory_space<vmem>>, vector<1x32x96xf32>
    %40 = vector.shape_cast %39 : vector<1x32x96xf32> to vector<32x96xf32>
    %c6_41 = arith.constant 6 : index
    %c0_42 = arith.constant 0 : index
    %c0_43 = arith.constant 0 : index
    %41 = vector.load %arg2[%c6_41, %c0_42, %c0_43] : memref<9x96x128xf32, #tpu.memory_space<vmem>>, vector<1x96x128xf32>
    %42 = vector.shape_cast %41 : vector<1x96x128xf32> to vector<96x128xf32>
    %cst_44 = arith.constant dense<0.000000e+00> : vector<32x128xf32>
    %43 = tpu.matmul %40, %42, %cst_44 {dimension_numbers = #tpu.dot_dimension_numbers<[1], [0], [0], [1], [0, 0, 1, 1], [], []>} : vector<32x96xf32>, vector<96x128xf32>, vector<32x128xf32> -> vector<32x128xf32>
    %44 = arith.addf %38, %43 : vector<32x128xf32>
    %c0_45 = arith.constant 0 : index
    %c2_46 = arith.constant 2 : index
    %c3_47 = arith.constant 3 : index
    %45 = vector.load %arg1[%c0_45, %c2_46, %c3_47] : memref<1x34x102xf32, #tpu.memory_space<vmem>>, vector<1x32x96xf32>
    %46 = vector.shape_cast %45 : vector<1x32x96xf32> to vector<32x96xf32>
    %c7 = arith.constant 7 : index
    %c0_48 = arith.constant 0 : index
    %c0_49 = arith.constant 0 : index
    %47 = vector.load %arg2[%c7, %c0_48, %c0_49] : memref<9x96x128xf32, #tpu.memory_space<vmem>>, vector<1x96x128xf32>
    %48 = vector.shape_cast %47 : vector<1x96x128xf32> to vector<96x128xf32>
    %cst_50 = arith.constant dense<0.000000e+00> : vector<32x128xf32>
    %49 = tpu.matmul %46, %48, %cst_50 {dimension_numbers = #tpu.dot_dimension_numbers<[1], [0], [0], [1], [0, 0, 1, 1], [], []>} : vector<32x96xf32>, vector<96x128xf32>, vector<32x128xf32> -> vector<32x128xf32>
    %50 = arith.addf %44, %49 : vector<32x128xf32>
    %c0_51 = arith.constant 0 : index
    %c2_52 = arith.constant 2 : index
    %c6_53 = arith.constant 6 : index
    %51 = vector.load %arg1[%c0_51, %c2_52, %c6_53] : memref<1x34x102xf32, #tpu.memory_space<vmem>>, vector<1x32x96xf32>
    %52 = vector.shape_cast %51 : vector<1x32x96xf32> to vector<32x96xf32>
    %c8 = arith.constant 8 : index
    %c0_54 = arith.constant 0 : index
    %c0_55 = arith.constant 0 : index
    %53 = vector.load %arg2[%c8, %c0_54, %c0_55] : memref<9x96x128xf32, #tpu.memory_space<vmem>>, vector<1x96x128xf32>
    %54 = vector.shape_cast %53 : vector<1x96x128xf32> to vector<96x128xf32>
    %cst_56 = arith.constant dense<0.000000e+00> : vector<32x128xf32>
    %55 = tpu.matmul %52, %54, %cst_56 {dimension_numbers = #tpu.dot_dimension_numbers<[1], [0], [0], [1], [0, 0, 1, 1], [], []>} : vector<32x96xf32>, vector<96x128xf32>, vector<32x128xf32> -> vector<32x128xf32>
    %56 = arith.addf %50, %55 : vector<32x128xf32>
    %c0_57 = arith.constant 0 : index
    %c0_58 = arith.constant 0 : index
    %57 = vector.load %arg3[%c0_57, %c0_58] : memref<1x128xf32, #tpu.memory_space<vmem>>, vector<1x128xf32>
    %58 = vector.broadcast %57 : vector<1x128xf32> to vector<32x128xf32>
    %59 = arith.mulf %56, %58 : vector<32x128xf32>
    %c0_59 = arith.constant 0 : index
    %c0_60 = arith.constant 0 : index
    %60 = vector.load %arg4[%c0_59, %c0_60] : memref<1x128xf32, #tpu.memory_space<vmem>>, vector<1x128xf32>
    %61 = vector.broadcast %60 : vector<1x128xf32> to vector<32x128xf32>
    %62 = arith.addf %59, %61 : vector<32x128xf32>
    %c1_61 = arith.constant 1 : index
    %c4_62 = arith.constant 4 : index
    %63 = vector.load %arg10[%c1_61, %c4_62] : memref<34x136xf32, #tpu.memory_space<vmem>>, vector<32x128xf32>
    tpu.vector_store %arg10[%c1_61, %c4_62], %62 {strides = array<i32>} : memref<34x136xf32, #tpu.memory_space<vmem>>, vector<32x128xf32>,
    %cst_63 = arith.constant 0.000000e+00 : f32
    %64 = vector.broadcast %cst_63 : f32 to vector<32x128xf32>
    %c0_64 = arith.constant 0 : index
    %c0_65 = arith.constant 0 : index
    %65 = vector.load %arg10[%c0_64, %c0_65] : memref<34x136xf32, #tpu.memory_space<vmem>>, vector<32x128xf32>
    %c0_66 = arith.constant 0 : index
    %c0_67 = arith.constant 0 : index
    %c0_68 = arith.constant 0 : index
    %c0_69 = arith.constant 0 : index
    %66 = vector.load %arg5[%c0_66, %c0_67, %c0_68, %c0_69] : memref<2x9x128x128xf32, #tpu.memory_space<vmem>>, vector<1x1x128x128xf32>
    %67 = vector.shape_cast %66 : vector<1x1x128x128xf32> to vector<128x128xf32>
    %cst_70 = arith.constant dense<0.000000e+00> : vector<32x128xf32>
    %68 = tpu.matmul %65, %67, %cst_70 {dimension_numbers = #tpu.dot_dimension_numbers<[1], [0], [0], [1], [0, 0, 1, 1], [], []>} : vector<32x128xf32>, vector<128x128xf32>, vector<32x128xf32> -> vector<32x128xf32>
    %69 = arith.addf %64, %68 : vector<32x128xf32>
    %c0_71 = arith.constant 0 : index
    %c4_72 = arith.constant 4 : index
    %70 = vector.load %arg10[%c0_71, %c4_72] : memref<34x136xf32, #tpu.memory_space<vmem>>, vector<32x128xf32>
    %c0_73 = arith.constant 0 : index
    %c1_74 = arith.constant 1 : index
    %c0_75 = arith.constant 0 : index
    %c0_76 = arith.constant 0 : index
    %71 = vector.load %arg5[%c0_73, %c1_74, %c0_75, %c0_76] : memref<2x9x128x128xf32, #tpu.memory_space<vmem>>, vector<1x1x128x128xf32>
    %72 = vector.shape_cast %71 : vector<1x1x128x128xf32> to vector<128x128xf32>
    %cst_77 = arith.constant dense<0.000000e+00> : vector<32x128xf32>
    %73 = tpu.matmul %70, %72, %cst_77 {dimension_numbers = #tpu.dot_dimension_numbers<[1], [0], [0], [1], [0, 0, 1, 1], [], []>} : vector<32x128xf32>, vector<128x128xf32>, vector<32x128xf32> -> vector<32x128xf32>
    %74 = arith.addf %69, %73 : vector<32x128xf32>
    %c0_78 = arith.constant 0 : index
    %c8_79 = arith.constant 8 : index
    %75 = vector.load %arg10[%c0_78, %c8_79] : memref<34x136xf32, #tpu.memory_space<vmem>>, vector<32x128xf32>
    %c0_80 = arith.constant 0 : index
    %c2_81 = arith.constant 2 : index
    %c0_82 = arith.constant 0 : index
    %c0_83 = arith.constant 0 : index
    %76 = vector.load %arg5[%c0_80, %c2_81, %c0_82, %c0_83] : memref<2x9x128x128xf32, #tpu.memory_space<vmem>>, vector<1x1x128x128xf32>
    %77 = vector.shape_cast %76 : vector<1x1x128x128xf32> to vector<128x128xf32>
    %cst_84 = arith.constant dense<0.000000e+00> : vector<32x128xf32>
    %78 = tpu.matmul %75, %77, %cst_84 {dimension_numbers = #tpu.dot_dimension_numbers<[1], [0], [0], [1], [0, 0, 1, 1], [], []>} : vector<32x128xf32>, vector<128x128xf32>, vector<32x128xf32> -> vector<32x128xf32>
    %79 = arith.addf %74, %78 : vector<32x128xf32>
    %c1_85 = arith.constant 1 : index
    %c0_86 = arith.constant 0 : index
    %80 = vector.load %arg10[%c1_85, %c0_86] : memref<34x136xf32, #tpu.memory_space<vmem>>, vector<32x128xf32>
    %c0_87 = arith.constant 0 : index
    %c3_88 = arith.constant 3 : index
    %c0_89 = arith.constant 0 : index
    %c0_90 = arith.constant 0 : index
    %81 = vector.load %arg5[%c0_87, %c3_88, %c0_89, %c0_90] : memref<2x9x128x128xf32, #tpu.memory_space<vmem>>, vector<1x1x128x128xf32>
    %82 = vector.shape_cast %81 : vector<1x1x128x128xf32> to vector<128x128xf32>
    %cst_91 = arith.constant dense<0.000000e+00> : vector<32x128xf32>
    %83 = tpu.matmul %80, %82, %cst_91 {dimension_numbers = #tpu.dot_dimension_numbers<[1], [0], [0], [1], [0, 0, 1, 1], [], []>} : vector<32x128xf32>, vector<128x128xf32>, vector<32x128xf32> -> vector<32x128xf32>
    %84 = arith.addf %79, %83 : vector<32x128xf32>
    %c1_92 = arith.constant 1 : index
    %c4_93 = arith.constant 4 : index
    %85 = vector.load %arg10[%c1_92, %c4_93] : memref<34x136xf32, #tpu.memory_space<vmem>>, vector<32x128xf32>
    %c0_94 = arith.constant 0 : index
    %c4_95 = arith.constant 4 : index
    %c0_96 = arith.constant 0 : index
    %c0_97 = arith.constant 0 : index
    %86 = vector.load %arg5[%c0_94, %c4_95, %c0_96, %c0_97] : memref<2x9x128x128xf32, #tpu.memory_space<vmem>>, vector<1x1x128x128xf32>
    %87 = vector.shape_cast %86 : vector<1x1x128x128xf32> to vector<128x128xf32>
    %cst_98 = arith.constant dense<0.000000e+00> : vector<32x128xf32>
    %88 = tpu.matmul %85, %87, %cst_98 {dimension_numbers = #tpu.dot_dimension_numbers<[1], [0], [0], [1], [0, 0, 1, 1], [], []>} : vector<32x128xf32>, vector<128x128xf32>, vector<32x128xf32> -> vector<32x128xf32>
    %89 = arith.addf %84, %88 : vector<32x128xf32>
    %c1_99 = arith.constant 1 : index
    %c8_100 = arith.constant 8 : index
    %90 = vector.load %arg10[%c1_99, %c8_100] : memref<34x136xf32, #tpu.memory_space<vmem>>, vector<32x128xf32>
    %c0_101 = arith.constant 0 : index
    %c5_102 = arith.constant 5 : index
    %c0_103 = arith.constant 0 : index
    %c0_104 = arith.constant 0 : index
    %91 = vector.load %arg5[%c0_101, %c5_102, %c0_103, %c0_104] : memref<2x9x128x128xf32, #tpu.memory_space<vmem>>, vector<1x1x128x128xf32>
    %92 = vector.shape_cast %91 : vector<1x1x128x128xf32> to vector<128x128xf32>
    %cst_105 = arith.constant dense<0.000000e+00> : vector<32x128xf32>
    %93 = tpu.matmul %90, %92, %cst_105 {dimension_numbers = #tpu.dot_dimension_numbers<[1], [0], [0], [1], [0, 0, 1, 1], [], []>} : vector<32x128xf32>, vector<128x128xf32>, vector<32x128xf32> -> vector<32x128xf32>
    %94 = arith.addf %89, %93 : vector<32x128xf32>
    %c2_106 = arith.constant 2 : index
    %c0_107 = arith.constant 0 : index
    %95 = vector.load %arg10[%c2_106, %c0_107] : memref<34x136xf32, #tpu.memory_space<vmem>>, vector<32x128xf32>
    %c0_108 = arith.constant 0 : index
    %c6_109 = arith.constant 6 : index
    %c0_110 = arith.constant 0 : index
    %c0_111 = arith.constant 0 : index
    %96 = vector.load %arg5[%c0_108, %c6_109, %c0_110, %c0_111] : memref<2x9x128x128xf32, #tpu.memory_space<vmem>>, vector<1x1x128x128xf32>
    %97 = vector.shape_cast %96 : vector<1x1x128x128xf32> to vector<128x128xf32>
    %cst_112 = arith.constant dense<0.000000e+00> : vector<32x128xf32>
    %98 = tpu.matmul %95, %97, %cst_112 {dimension_numbers = #tpu.dot_dimension_numbers<[1], [0], [0], [1], [0, 0, 1, 1], [], []>} : vector<32x128xf32>, vector<128x128xf32>, vector<32x128xf32> -> vector<32x128xf32>
    %99 = arith.addf %94, %98 : vector<32x128xf32>
    %c2_113 = arith.constant 2 : index
    %c4_114 = arith.constant 4 : index
    %100 = vector.load %arg10[%c2_113, %c4_114] : memref<34x136xf32, #tpu.memory_space<vmem>>, vector<32x128xf32>
    %c0_115 = arith.constant 0 : index
    %c7_116 = arith.constant 7 : index
    %c0_117 = arith.constant 0 : index
    %c0_118 = arith.constant 0 : index
    %101 = vector.load %arg5[%c0_115, %c7_116, %c0_117, %c0_118] : memref<2x9x128x128xf32, #tpu.memory_space<vmem>>, vector<1x1x128x128xf32>
    %102 = vector.shape_cast %101 : vector<1x1x128x128xf32> to vector<128x128xf32>
    %cst_119 = arith.constant dense<0.000000e+00> : vector<32x128xf32>
    %103 = tpu.matmul %100, %102, %cst_119 {dimension_numbers = #tpu.dot_dimension_numbers<[1], [0], [0], [1], [0, 0, 1, 1], [], []>} : vector<32x128xf32>, vector<128x128xf32>, vector<32x128xf32> -> vector<32x128xf32>
    %104 = arith.addf %99, %103 : vector<32x128xf32>
    %c2_120 = arith.constant 2 : index
    %c8_121 = arith.constant 8 : index
    %105 = vector.load %arg10[%c2_120, %c8_121] : memref<34x136xf32, #tpu.memory_space<vmem>>, vector<32x128xf32>
    %c0_122 = arith.constant 0 : index
    %c8_123 = arith.constant 8 : index
    %c0_124 = arith.constant 0 : index
    %c0_125 = arith.constant 0 : index
    %106 = vector.load %arg5[%c0_122, %c8_123, %c0_124, %c0_125] : memref<2x9x128x128xf32, #tpu.memory_space<vmem>>, vector<1x1x128x128xf32>
    %107 = vector.shape_cast %106 : vector<1x1x128x128xf32> to vector<128x128xf32>
    %cst_126 = arith.constant dense<0.000000e+00> : vector<32x128xf32>
    %108 = tpu.matmul %105, %107, %cst_126 {dimension_numbers = #tpu.dot_dimension_numbers<[1], [0], [0], [1], [0, 0, 1, 1], [], []>} : vector<32x128xf32>, vector<128x128xf32>, vector<32x128xf32> -> vector<32x128xf32>
    %109 = arith.addf %104, %108 : vector<32x128xf32>
    %c0_127 = arith.constant 0 : index
    %c0_128 = arith.constant 0 : index
    %c0_129 = arith.constant 0 : index
    %110 = vector.load %arg6[%c0_127, %c0_128, %c0_129] : memref<2x1x128xf32, #tpu.memory_space<vmem>>, vector<1x1x128xf32>
    %111 = vector.shape_cast %110 : vector<1x1x128xf32> to vector<1x128xf32>
    %112 = vector.broadcast %111 : vector<1x128xf32> to vector<32x128xf32>
    %113 = arith.addf %109, %112 : vector<32x128xf32>
    %cst_130 = arith.constant 0.000000e+00 : f32
    %114 = vector.broadcast %cst_130 : f32 to vector<32x128xf32>
    %115 = arith.maximumf %113, %114 : vector<32x128xf32>
    %116 = math.absf %113 : vector<32x128xf32>
    %cst_131 = arith.constant 0.000000e+00 : f32
    %117 = vector.broadcast %cst_131 : f32 to vector<32x128xf32>
    %118 = arith.subf %117, %116 : vector<32x128xf32>
    %119 = math.exp %118 : vector<32x128xf32>
    %cst_132 = arith.constant 1.000000e+00 : f32
    %120 = vector.broadcast %cst_132 : f32 to vector<32x128xf32>
    %121 = arith.addf %120, %119 : vector<32x128xf32>
    %122 = math.log %121 : vector<32x128xf32>
    %123 = arith.addf %115, %122 : vector<32x128xf32>
    %cst_133 = arith.constant 1.000000e-01 : f32
    %124 = vector.broadcast %cst_133 : f32 to vector<32x128xf32>
    %125 = arith.mulf %124, %113 : vector<32x128xf32>
    %cst_134 = arith.constant 0.899999976 : f32
    %126 = vector.broadcast %cst_134 : f32 to vector<32x128xf32>
    %127 = arith.mulf %126, %123 : vector<32x128xf32>
    %128 = arith.addf %125, %127 : vector<32x128xf32>
    %cst_135 = arith.constant 1.000000e-01 : f32
    %129 = vector.broadcast %cst_135 : f32 to vector<32x128xf32>
    %130 = arith.mulf %129, %128 : vector<32x128xf32>
    %131 = arith.addf %62, %130 : vector<32x128xf32>
    %c1_136 = arith.constant 1 : index
    %c4_137 = arith.constant 4 : index
    %132 = vector.load %arg10[%c1_136, %c4_137] : memref<34x136xf32, #tpu.memory_space<vmem>>, vector<32x128xf32>
    tpu.vector_store %arg10[%c1_136, %c4_137], %131 {strides = array<i32>} : memref<34x136xf32, #tpu.memory_space<vmem>>, vector<32x128xf32>,
    %cst_138 = arith.constant 0.000000e+00 : f32
    %133 = vector.broadcast %cst_138 : f32 to vector<32x128xf32>
    %c0_139 = arith.constant 0 : index
    %c0_140 = arith.constant 0 : index
    %134 = vector.load %arg10[%c0_139, %c0_140] : memref<34x136xf32, #tpu.memory_space<vmem>>, vector<32x128xf32>
    %c1_141 = arith.constant 1 : index
    %c0_142 = arith.constant 0 : index
    %c0_143 = arith.constant 0 : index
    %c0_144 = arith.constant 0 : index
    %135 = vector.load %arg5[%c1_141, %c0_142, %c0_143, %c0_144] : memref<2x9x128x128xf32, #tpu.memory_space<vmem>>, vector<1x1x128x128xf32>
    %136 = vector.shape_cast %135 : vector<1x1x128x128xf32> to vector<128x128xf32>
    %cst_145 = arith.constant dense<0.000000e+00> : vector<32x128xf32>
    %137 = tpu.matmul %134, %136, %cst_145 {dimension_numbers = #tpu.dot_dimension_numbers<[1], [0], [0], [1], [0, 0, 1, 1], [], []>} : vector<32x128xf32>, vector<128x128xf32>, vector<32x128xf32> -> vector<32x128xf32>
    %138 = arith.addf %133, %137 : vector<32x128xf32>
    %c0_146 = arith.constant 0 : index
    %c4_147 = arith.constant 4 : index
    %139 = vector.load %arg10[%c0_146, %c4_147] : memref<34x136xf32, #tpu.memory_space<vmem>>, vector<32x128xf32>
    %c1_148 = arith.constant 1 : index
    %c1_149 = arith.constant 1 : index
    %c0_150 = arith.constant 0 : index
    %c0_151 = arith.constant 0 : index
    %140 = vector.load %arg5[%c1_148, %c1_149, %c0_150, %c0_151] : memref<2x9x128x128xf32, #tpu.memory_space<vmem>>, vector<1x1x128x128xf32>
    %141 = vector.shape_cast %140 : vector<1x1x128x128xf32> to vector<128x128xf32>
    %cst_152 = arith.constant dense<0.000000e+00> : vector<32x128xf32>
    %142 = tpu.matmul %139, %141, %cst_152 {dimension_numbers = #tpu.dot_dimension_numbers<[1], [0], [0], [1], [0, 0, 1, 1], [], []>} : vector<32x128xf32>, vector<128x128xf32>, vector<32x128xf32> -> vector<32x128xf32>
    %143 = arith.addf %138, %142 : vector<32x128xf32>
    %c0_153 = arith.constant 0 : index
    %c8_154 = arith.constant 8 : index
    %144 = vector.load %arg10[%c0_153, %c8_154] : memref<34x136xf32, #tpu.memory_space<vmem>>, vector<32x128xf32>
    %c1_155 = arith.constant 1 : index
    %c2_156 = arith.constant 2 : index
    %c0_157 = arith.constant 0 : index
    %c0_158 = arith.constant 0 : index
    %145 = vector.load %arg5[%c1_155, %c2_156, %c0_157, %c0_158] : memref<2x9x128x128xf32, #tpu.memory_space<vmem>>, vector<1x1x128x128xf32>
    %146 = vector.shape_cast %145 : vector<1x1x128x128xf32> to vector<128x128xf32>
    %cst_159 = arith.constant dense<0.000000e+00> : vector<32x128xf32>
    %147 = tpu.matmul %144, %146, %cst_159 {dimension_numbers = #tpu.dot_dimension_numbers<[1], [0], [0], [1], [0, 0, 1, 1], [], []>} : vector<32x128xf32>, vector<128x128xf32>, vector<32x128xf32> -> vector<32x128xf32>
    %148 = arith.addf %143, %147 : vector<32x128xf32>
    %c1_160 = arith.constant 1 : index
    %c0_161 = arith.constant 0 : index
    %149 = vector.load %arg10[%c1_160, %c0_161] : memref<34x136xf32, #tpu.memory_space<vmem>>, vector<32x128xf32>
    %c1_162 = arith.constant 1 : index
    %c3_163 = arith.constant 3 : index
    %c0_164 = arith.constant 0 : index
    %c0_165 = arith.constant 0 : index
    %150 = vector.load %arg5[%c1_162, %c3_163, %c0_164, %c0_165] : memref<2x9x128x128xf32, #tpu.memory_space<vmem>>, vector<1x1x128x128xf32>
    %151 = vector.shape_cast %150 : vector<1x1x128x128xf32> to vector<128x128xf32>
    %cst_166 = arith.constant dense<0.000000e+00> : vector<32x128xf32>
    %152 = tpu.matmul %149, %151, %cst_166 {dimension_numbers = #tpu.dot_dimension_numbers<[1], [0], [0], [1], [0, 0, 1, 1], [], []>} : vector<32x128xf32>, vector<128x128xf32>, vector<32x128xf32> -> vector<32x128xf32>
    %153 = arith.addf %148, %152 : vector<32x128xf32>
    %c1_167 = arith.constant 1 : index
    %c4_168 = arith.constant 4 : index
    %154 = vector.load %arg10[%c1_167, %c4_168] : memref<34x136xf32, #tpu.memory_space<vmem>>, vector<32x128xf32>
    %c1_169 = arith.constant 1 : index
    %c4_170 = arith.constant 4 : index
    %c0_171 = arith.constant 0 : index
    %c0_172 = arith.constant 0 : index
    %155 = vector.load %arg5[%c1_169, %c4_170, %c0_171, %c0_172] : memref<2x9x128x128xf32, #tpu.memory_space<vmem>>, vector<1x1x128x128xf32>
    %156 = vector.shape_cast %155 : vector<1x1x128x128xf32> to vector<128x128xf32>
    %cst_173 = arith.constant dense<0.000000e+00> : vector<32x128xf32>
    %157 = tpu.matmul %154, %156, %cst_173 {dimension_numbers = #tpu.dot_dimension_numbers<[1], [0], [0], [1], [0, 0, 1, 1], [], []>} : vector<32x128xf32>, vector<128x128xf32>, vector<32x128xf32> -> vector<32x128xf32>
    %158 = arith.addf %153, %157 : vector<32x128xf32>
    %c1_174 = arith.constant 1 : index
    %c8_175 = arith.constant 8 : index
    %159 = vector.load %arg10[%c1_174, %c8_175] : memref<34x136xf32, #tpu.memory_space<vmem>>, vector<32x128xf32>
    %c1_176 = arith.constant 1 : index
    %c5_177 = arith.constant 5 : index
    %c0_178 = arith.constant 0 : index
    %c0_179 = arith.constant 0 : index
    %160 = vector.load %arg5[%c1_176, %c5_177, %c0_178, %c0_179] : memref<2x9x128x128xf32, #tpu.memory_space<vmem>>, vector<1x1x128x128xf32>
    %161 = vector.shape_cast %160 : vector<1x1x128x128xf32> to vector<128x128xf32>
    %cst_180 = arith.constant dense<0.000000e+00> : vector<32x128xf32>
    %162 = tpu.matmul %159, %161, %cst_180 {dimension_numbers = #tpu.dot_dimension_numbers<[1], [0], [0], [1], [0, 0, 1, 1], [], []>} : vector<32x128xf32>, vector<128x128xf32>, vector<32x128xf32> -> vector<32x128xf32>
    %163 = arith.addf %158, %162 : vector<32x128xf32>
    %c2_181 = arith.constant 2 : index
    %c0_182 = arith.constant 0 : index
    %164 = vector.load %arg10[%c2_181, %c0_182] : memref<34x136xf32, #tpu.memory_space<vmem>>, vector<32x128xf32>
    %c1_183 = arith.constant 1 : index
    %c6_184 = arith.constant 6 : index
    %c0_185 = arith.constant 0 : index
    %c0_186 = arith.constant 0 : index
    %165 = vector.load %arg5[%c1_183, %c6_184, %c0_185, %c0_186] : memref<2x9x128x128xf32, #tpu.memory_space<vmem>>, vector<1x1x128x128xf32>
    %166 = vector.shape_cast %165 : vector<1x1x128x128xf32> to vector<128x128xf32>
    %cst_187 = arith.constant dense<0.000000e+00> : vector<32x128xf32>
    %167 = tpu.matmul %164, %166, %cst_187 {dimension_numbers = #tpu.dot_dimension_numbers<[1], [0], [0], [1], [0, 0, 1, 1], [], []>} : vector<32x128xf32>, vector<128x128xf32>, vector<32x128xf32> -> vector<32x128xf32>
    %168 = arith.addf %163, %167 : vector<32x128xf32>
    %c2_188 = arith.constant 2 : index
    %c4_189 = arith.constant 4 : index
    %169 = vector.load %arg10[%c2_188, %c4_189] : memref<34x136xf32, #tpu.memory_space<vmem>>, vector<32x128xf32>
    %c1_190 = arith.constant 1 : index
    %c7_191 = arith.constant 7 : index
    %c0_192 = arith.constant 0 : index
    %c0_193 = arith.constant 0 : index
    %170 = vector.load %arg5[%c1_190, %c7_191, %c0_192, %c0_193] : memref<2x9x128x128xf32, #tpu.memory_space<vmem>>, vector<1x1x128x128xf32>
    %171 = vector.shape_cast %170 : vector<1x1x128x128xf32> to vector<128x128xf32>
    %cst_194 = arith.constant dense<0.000000e+00> : vector<32x128xf32>
    %172 = tpu.matmul %169, %171, %cst_194 {dimension_numbers = #tpu.dot_dimension_numbers<[1], [0], [0], [1], [0, 0, 1, 1], [], []>} : vector<32x128xf32>, vector<128x128xf32>, vector<32x128xf32> -> vector<32x128xf32>
    %173 = arith.addf %168, %172 : vector<32x128xf32>
    %c2_195 = arith.constant 2 : index
    %c8_196 = arith.constant 8 : index
    %174 = vector.load %arg10[%c2_195, %c8_196] : memref<34x136xf32, #tpu.memory_space<vmem>>, vector<32x128xf32>
    %c1_197 = arith.constant 1 : index
    %c8_198 = arith.constant 8 : index
    %c0_199 = arith.constant 0 : index
    %c0_200 = arith.constant 0 : index
    %175 = vector.load %arg5[%c1_197, %c8_198, %c0_199, %c0_200] : memref<2x9x128x128xf32, #tpu.memory_space<vmem>>, vector<1x1x128x128xf32>
    %176 = vector.shape_cast %175 : vector<1x1x128x128xf32> to vector<128x128xf32>
    %cst_201 = arith.constant dense<0.000000e+00> : vector<32x128xf32>
    %177 = tpu.matmul %174, %176, %cst_201 {dimension_numbers = #tpu.dot_dimension_numbers<[1], [0], [0], [1], [0, 0, 1, 1], [], []>} : vector<32x128xf32>, vector<128x128xf32>, vector<32x128xf32> -> vector<32x128xf32>
    %178 = arith.addf %173, %177 : vector<32x128xf32>
    %c1_202 = arith.constant 1 : index
    %c0_203 = arith.constant 0 : index
    %c0_204 = arith.constant 0 : index
    %179 = vector.load %arg6[%c1_202, %c0_203, %c0_204] : memref<2x1x128xf32, #tpu.memory_space<vmem>>, vector<1x1x128xf32>
    %180 = vector.shape_cast %179 : vector<1x1x128xf32> to vector<1x128xf32>
    %181 = vector.broadcast %180 : vector<1x128xf32> to vector<32x128xf32>
    %182 = arith.addf %178, %181 : vector<32x128xf32>
    %cst_205 = arith.constant 0.000000e+00 : f32
    %183 = vector.broadcast %cst_205 : f32 to vector<32x128xf32>
    %184 = arith.maximumf %182, %183 : vector<32x128xf32>
    %185 = math.absf %182 : vector<32x128xf32>
    %cst_206 = arith.constant 0.000000e+00 : f32
    %186 = vector.broadcast %cst_206 : f32 to vector<32x128xf32>
    %187 = arith.subf %186, %185 : vector<32x128xf32>
    %188 = math.exp %187 : vector<32x128xf32>
    %cst_207 = arith.constant 1.000000e+00 : f32
    %189 = vector.broadcast %cst_207 : f32 to vector<32x128xf32>
    %190 = arith.addf %189, %188 : vector<32x128xf32>
    %191 = math.log %190 : vector<32x128xf32>
    %192 = arith.addf %184, %191 : vector<32x128xf32>
    %cst_208 = arith.constant 1.000000e-01 : f32
    %193 = vector.broadcast %cst_208 : f32 to vector<32x128xf32>
    %194 = arith.mulf %193, %182 : vector<32x128xf32>
    %cst_209 = arith.constant 0.899999976 : f32
    %195 = vector.broadcast %cst_209 : f32 to vector<32x128xf32>
    %196 = arith.mulf %195, %192 : vector<32x128xf32>
    %197 = arith.addf %194, %196 : vector<32x128xf32>
    %cst_210 = arith.constant 1.000000e-01 : f32
    %198 = vector.broadcast %cst_210 : f32 to vector<32x128xf32>
    %199 = arith.mulf %198, %197 : vector<32x128xf32>
    %200 = arith.addf %131, %199 : vector<32x128xf32>
    %c0_211 = arith.constant 0 : index
    %c0_212 = arith.constant 0 : index
    %201 = vector.load %arg8[%c0_211, %c0_212] : memref<1x128xf32, #tpu.memory_space<vmem>>, vector<1x128xf32>
    %202 = vector.extract_strided_slice %200 {offsets = [0, 0], sizes = [1, 128], strides = [1, 1]} : vector<32x128xf32> to vector<1x128xf32>
    %c0_213 = arith.constant 0 : index
    %c0_214 = arith.constant 0 : index
    %c0_215 = arith.constant 0 : index
    %203 = vector.load %arg7[%c0_213, %c0_214, %c0_215] : memref<32x128x128xf32, #tpu.memory_space<vmem>>, vector<1x128x128xf32>
    %204 = vector.shape_cast %203 : vector<1x128x128xf32> to vector<128x128xf32>
    %cst_216 = arith.constant dense<0.000000e+00> : vector<1x128xf32>
    %205 = tpu.matmul %202, %204, %cst_216 {dimension_numbers = #tpu.dot_dimension_numbers<[1], [0], [0], [1], [0, 0, 1, 1], [], []>} : vector<1x128xf32>, vector<128x128xf32>, vector<1x128xf32> -> vector<1x128xf32>
    %206 = arith.addf %201, %205 : vector<1x128xf32>
    %207 = vector.extract_strided_slice %200 {offsets = [1, 0], sizes = [1, 128], strides = [1, 1]} : vector<32x128xf32> to vector<1x128xf32>
    %c1_217 = arith.constant 1 : index
    %c0_218 = arith.constant 0 : index
    %c0_219 = arith.constant 0 : index
    %208 = vector.load %arg7[%c1_217, %c0_218, %c0_219] : memref<32x128x128xf32, #tpu.memory_space<vmem>>, vector<1x128x128xf32>
    %209 = vector.shape_cast %208 : vector<1x128x128xf32> to vector<128x128xf32>
    %cst_220 = arith.constant dense<0.000000e+00> : vector<1x128xf32>
    %210 = tpu.matmul %207, %209, %cst_220 {dimension_numbers = #tpu.dot_dimension_numbers<[1], [0], [0], [1], [0, 0, 1, 1], [], []>} : vector<1x128xf32>, vector<128x128xf32>, vector<1x128xf32> -> vector<1x128xf32>
    %211 = arith.addf %206, %210 : vector<1x128xf32>
    %212 = vector.extract_strided_slice %200 {offsets = [2, 0], sizes = [1, 128], strides = [1, 1]} : vector<32x128xf32> to vector<1x128xf32>
    %c2_221 = arith.constant 2 : index
    %c0_222 = arith.constant 0 : index
    %c0_223 = arith.constant 0 : index
    %213 = vector.load %arg7[%c2_221, %c0_222, %c0_223] : memref<32x128x128xf32, #tpu.memory_space<vmem>>, vector<1x128x128xf32>
    %214 = vector.shape_cast %213 : vector<1x128x128xf32> to vector<128x128xf32>
    %cst_224 = arith.constant dense<0.000000e+00> : vector<1x128xf32>
    %215 = tpu.matmul %212, %214, %cst_224 {dimension_numbers = #tpu.dot_dimension_numbers<[1], [0], [0], [1], [0, 0, 1, 1], [], []>} : vector<1x128xf32>, vector<128x128xf32>, vector<1x128xf32> -> vector<1x128xf32>
    %216 = arith.addf %211, %215 : vector<1x128xf32>
    %217 = vector.extract_strided_slice %200 {offsets = [3, 0], sizes = [1, 128], strides = [1, 1]} : vector<32x128xf32> to vector<1x128xf32>
    %c3_225 = arith.constant 3 : index
    %c0_226 = arith.constant 0 : index
    %c0_227 = arith.constant 0 : index
    %218 = vector.load %arg7[%c3_225, %c0_226, %c0_227] : memref<32x128x128xf32, #tpu.memory_space<vmem>>, vector<1x128x128xf32>
    %219 = vector.shape_cast %218 : vector<1x128x128xf32> to vector<128x128xf32>
    %cst_228 = arith.constant dense<0.000000e+00> : vector<1x128xf32>
    %220 = tpu.matmul %217, %219, %cst_228 {dimension_numbers = #tpu.dot_dimension_numbers<[1], [0], [0], [1], [0, 0, 1, 1], [], []>} : vector<1x128xf32>, vector<128x128xf32>, vector<1x128xf32> -> vector<1x128xf32>
    %221 = arith.addf %216, %220 : vector<1x128xf32>
    %222 = vector.extract_strided_slice %200 {offsets = [4, 0], sizes = [1, 128], strides = [1, 1]} : vector<32x128xf32> to vector<1x128xf32>
    %c4_229 = arith.constant 4 : index
    %c0_230 = arith.constant 0 : index
    %c0_231 = arith.constant 0 : index
    %223 = vector.load %arg7[%c4_229, %c0_230, %c0_231] : memref<32x128x128xf32, #tpu.memory_space<vmem>>, vector<1x128x128xf32>
    %224 = vector.shape_cast %223 : vector<1x128x128xf32> to vector<128x128xf32>
    %cst_232 = arith.constant dense<0.000000e+00> : vector<1x128xf32>
    %225 = tpu.matmul %222, %224, %cst_232 {dimension_numbers = #tpu.dot_dimension_numbers<[1], [0], [0], [1], [0, 0, 1, 1], [], []>} : vector<1x128xf32>, vector<128x128xf32>, vector<1x128xf32> -> vector<1x128xf32>
    %226 = arith.addf %221, %225 : vector<1x128xf32>
    %227 = vector.extract_strided_slice %200 {offsets = [5, 0], sizes = [1, 128], strides = [1, 1]} : vector<32x128xf32> to vector<1x128xf32>
    %c5_233 = arith.constant 5 : index
    %c0_234 = arith.constant 0 : index
    %c0_235 = arith.constant 0 : index
    %228 = vector.load %arg7[%c5_233, %c0_234, %c0_235] : memref<32x128x128xf32, #tpu.memory_space<vmem>>, vector<1x128x128xf32>
    %229 = vector.shape_cast %228 : vector<1x128x128xf32> to vector<128x128xf32>
    %cst_236 = arith.constant dense<0.000000e+00> : vector<1x128xf32>
    %230 = tpu.matmul %227, %229, %cst_236 {dimension_numbers = #tpu.dot_dimension_numbers<[1], [0], [0], [1], [0, 0, 1, 1], [], []>} : vector<1x128xf32>, vector<128x128xf32>, vector<1x128xf32> -> vector<1x128xf32>
    %231 = arith.addf %226, %230 : vector<1x128xf32>
    %232 = vector.extract_strided_slice %200 {offsets = [6, 0], sizes = [1, 128], strides = [1, 1]} : vector<32x128xf32> to vector<1x128xf32>
    %c6_237 = arith.constant 6 : index
    %c0_238 = arith.constant 0 : index
    %c0_239 = arith.constant 0 : index
    %233 = vector.load %arg7[%c6_237, %c0_238, %c0_239] : memref<32x128x128xf32, #tpu.memory_space<vmem>>, vector<1x128x128xf32>
    %234 = vector.shape_cast %233 : vector<1x128x128xf32> to vector<128x128xf32>
    %cst_240 = arith.constant dense<0.000000e+00> : vector<1x128xf32>
    %235 = tpu.matmul %232, %234, %cst_240 {dimension_numbers = #tpu.dot_dimension_numbers<[1], [0], [0], [1], [0, 0, 1, 1], [], []>} : vector<1x128xf32>, vector<128x128xf32>, vector<1x128xf32> -> vector<1x128xf32>
    %236 = arith.addf %231, %235 : vector<1x128xf32>
    %237 = vector.extract_strided_slice %200 {offsets = [7, 0], sizes = [1, 128], strides = [1, 1]} : vector<32x128xf32> to vector<1x128xf32>
    %c7_241 = arith.constant 7 : index
    %c0_242 = arith.constant 0 : index
    %c0_243 = arith.constant 0 : index
    %238 = vector.load %arg7[%c7_241, %c0_242, %c0_243] : memref<32x128x128xf32, #tpu.memory_space<vmem>>, vector<1x128x128xf32>
    %239 = vector.shape_cast %238 : vector<1x128x128xf32> to vector<128x128xf32>
    %cst_244 = arith.constant dense<0.000000e+00> : vector<1x128xf32>
    %240 = tpu.matmul %237, %239, %cst_244 {dimension_numbers = #tpu.dot_dimension_numbers<[1], [0], [0], [1], [0, 0, 1, 1], [], []>} : vector<1x128xf32>, vector<128x128xf32>, vector<1x128xf32> -> vector<1x128xf32>
    %241 = arith.addf %236, %240 : vector<1x128xf32>
    %242 = vector.extract_strided_slice %200 {offsets = [8, 0], sizes = [1, 128], strides = [1, 1]} : vector<32x128xf32> to vector<1x128xf32>
    %c8_245 = arith.constant 8 : index
    %c0_246 = arith.constant 0 : index
    %c0_247 = arith.constant 0 : index
    %243 = vector.load %arg7[%c8_245, %c0_246, %c0_247] : memref<32x128x128xf32, #tpu.memory_space<vmem>>, vector<1x128x128xf32>
    %244 = vector.shape_cast %243 : vector<1x128x128xf32> to vector<128x128xf32>
    %cst_248 = arith.constant dense<0.000000e+00> : vector<1x128xf32>
    %245 = tpu.matmul %242, %244, %cst_248 {dimension_numbers = #tpu.dot_dimension_numbers<[1], [0], [0], [1], [0, 0, 1, 1], [], []>} : vector<1x128xf32>, vector<128x128xf32>, vector<1x128xf32> -> vector<1x128xf32>
    %246 = arith.addf %241, %245 : vector<1x128xf32>
    %247 = vector.extract_strided_slice %200 {offsets = [9, 0], sizes = [1, 128], strides = [1, 1]} : vector<32x128xf32> to vector<1x128xf32>
    %c9 = arith.constant 9 : index
    %c0_249 = arith.constant 0 : index
    %c0_250 = arith.constant 0 : index
    %248 = vector.load %arg7[%c9, %c0_249, %c0_250] : memref<32x128x128xf32, #tpu.memory_space<vmem>>, vector<1x128x128xf32>
    %249 = vector.shape_cast %248 : vector<1x128x128xf32> to vector<128x128xf32>
    %cst_251 = arith.constant dense<0.000000e+00> : vector<1x128xf32>
    %250 = tpu.matmul %247, %249, %cst_251 {dimension_numbers = #tpu.dot_dimension_numbers<[1], [0], [0], [1], [0, 0, 1, 1], [], []>} : vector<1x128xf32>, vector<128x128xf32>, vector<1x128xf32> -> vector<1x128xf32>
    %251 = arith.addf %246, %250 : vector<1x128xf32>
    %252 = vector.extract_strided_slice %200 {offsets = [10, 0], sizes = [1, 128], strides = [1, 1]} : vector<32x128xf32> to vector<1x128xf32>
    %c10 = arith.constant 10 : index
    %c0_252 = arith.constant 0 : index
    %c0_253 = arith.constant 0 : index
    %253 = vector.load %arg7[%c10, %c0_252, %c0_253] : memref<32x128x128xf32, #tpu.memory_space<vmem>>, vector<1x128x128xf32>
    %254 = vector.shape_cast %253 : vector<1x128x128xf32> to vector<128x128xf32>
    %cst_254 = arith.constant dense<0.000000e+00> : vector<1x128xf32>
    %255 = tpu.matmul %252, %254, %cst_254 {dimension_numbers = #tpu.dot_dimension_numbers<[1], [0], [0], [1], [0, 0, 1, 1], [], []>} : vector<1x128xf32>, vector<128x128xf32>, vector<1x128xf32> -> vector<1x128xf32>
    %256 = arith.addf %251, %255 : vector<1x128xf32>
    %257 = vector.extract_strided_slice %200 {offsets = [11, 0], sizes = [1, 128], strides = [1, 1]} : vector<32x128xf32> to vector<1x128xf32>
    %c11 = arith.constant 11 : index
    %c0_255 = arith.constant 0 : index
    %c0_256 = arith.constant 0 : index
    %258 = vector.load %arg7[%c11, %c0_255, %c0_256] : memref<32x128x128xf32, #tpu.memory_space<vmem>>, vector<1x128x128xf32>
    %259 = vector.shape_cast %258 : vector<1x128x128xf32> to vector<128x128xf32>
    %cst_257 = arith.constant dense<0.000000e+00> : vector<1x128xf32>
    %260 = tpu.matmul %257, %259, %cst_257 {dimension_numbers = #tpu.dot_dimension_numbers<[1], [0], [0], [1], [0, 0, 1, 1], [], []>} : vector<1x128xf32>, vector<128x128xf32>, vector<1x128xf32> -> vector<1x128xf32>
    %261 = arith.addf %256, %260 : vector<1x128xf32>
    %262 = vector.extract_strided_slice %200 {offsets = [12, 0], sizes = [1, 128], strides = [1, 1]} : vector<32x128xf32> to vector<1x128xf32>
    %c12 = arith.constant 12 : index
    %c0_258 = arith.constant 0 : index
    %c0_259 = arith.constant 0 : index
    %263 = vector.load %arg7[%c12, %c0_258, %c0_259] : memref<32x128x128xf32, #tpu.memory_space<vmem>>, vector<1x128x128xf32>
    %264 = vector.shape_cast %263 : vector<1x128x128xf32> to vector<128x128xf32>
    %cst_260 = arith.constant dense<0.000000e+00> : vector<1x128xf32>
    %265 = tpu.matmul %262, %264, %cst_260 {dimension_numbers = #tpu.dot_dimension_numbers<[1], [0], [0], [1], [0, 0, 1, 1], [], []>} : vector<1x128xf32>, vector<128x128xf32>, vector<1x128xf32> -> vector<1x128xf32>
    %266 = arith.addf %261, %265 : vector<1x128xf32>
    %267 = vector.extract_strided_slice %200 {offsets = [13, 0], sizes = [1, 128], strides = [1, 1]} : vector<32x128xf32> to vector<1x128xf32>
    %c13 = arith.constant 13 : index
    %c0_261 = arith.constant 0 : index
    %c0_262 = arith.constant 0 : index
    %268 = vector.load %arg7[%c13, %c0_261, %c0_262] : memref<32x128x128xf32, #tpu.memory_space<vmem>>, vector<1x128x128xf32>
    %269 = vector.shape_cast %268 : vector<1x128x128xf32> to vector<128x128xf32>
    %cst_263 = arith.constant dense<0.000000e+00> : vector<1x128xf32>
    %270 = tpu.matmul %267, %269, %cst_263 {dimension_numbers = #tpu.dot_dimension_numbers<[1], [0], [0], [1], [0, 0, 1, 1], [], []>} : vector<1x128xf32>, vector<128x128xf32>, vector<1x128xf32> -> vector<1x128xf32>
    %271 = arith.addf %266, %270 : vector<1x128xf32>
    %272 = vector.extract_strided_slice %200 {offsets = [14, 0], sizes = [1, 128], strides = [1, 1]} : vector<32x128xf32> to vector<1x128xf32>
    %c14 = arith.constant 14 : index
    %c0_264 = arith.constant 0 : index
    %c0_265 = arith.constant 0 : index
    %273 = vector.load %arg7[%c14, %c0_264, %c0_265] : memref<32x128x128xf32, #tpu.memory_space<vmem>>, vector<1x128x128xf32>
    %274 = vector.shape_cast %273 : vector<1x128x128xf32> to vector<128x128xf32>
    %cst_266 = arith.constant dense<0.000000e+00> : vector<1x128xf32>
    %275 = tpu.matmul %272, %274, %cst_266 {dimension_numbers = #tpu.dot_dimension_numbers<[1], [0], [0], [1], [0, 0, 1, 1], [], []>} : vector<1x128xf32>, vector<128x128xf32>, vector<1x128xf32> -> vector<1x128xf32>
    %276 = arith.addf %271, %275 : vector<1x128xf32>
    %277 = vector.extract_strided_slice %200 {offsets = [15, 0], sizes = [1, 128], strides = [1, 1]} : vector<32x128xf32> to vector<1x128xf32>
    %c15 = arith.constant 15 : index
    %c0_267 = arith.constant 0 : index
    %c0_268 = arith.constant 0 : index
    %278 = vector.load %arg7[%c15, %c0_267, %c0_268] : memref<32x128x128xf32, #tpu.memory_space<vmem>>, vector<1x128x128xf32>
    %279 = vector.shape_cast %278 : vector<1x128x128xf32> to vector<128x128xf32>
    %cst_269 = arith.constant dense<0.000000e+00> : vector<1x128xf32>
    %280 = tpu.matmul %277, %279, %cst_269 {dimension_numbers = #tpu.dot_dimension_numbers<[1], [0], [0], [1], [0, 0, 1, 1], [], []>} : vector<1x128xf32>, vector<128x128xf32>, vector<1x128xf32> -> vector<1x128xf32>
    %281 = arith.addf %276, %280 : vector<1x128xf32>
    %282 = vector.extract_strided_slice %200 {offsets = [16, 0], sizes = [1, 128], strides = [1, 1]} : vector<32x128xf32> to vector<1x128xf32>
    %c16 = arith.constant 16 : index
    %c0_270 = arith.constant 0 : index
    %c0_271 = arith.constant 0 : index
    %283 = vector.load %arg7[%c16, %c0_270, %c0_271] : memref<32x128x128xf32, #tpu.memory_space<vmem>>, vector<1x128x128xf32>
    %284 = vector.shape_cast %283 : vector<1x128x128xf32> to vector<128x128xf32>
    %cst_272 = arith.constant dense<0.000000e+00> : vector<1x128xf32>
    %285 = tpu.matmul %282, %284, %cst_272 {dimension_numbers = #tpu.dot_dimension_numbers<[1], [0], [0], [1], [0, 0, 1, 1], [], []>} : vector<1x128xf32>, vector<128x128xf32>, vector<1x128xf32> -> vector<1x128xf32>
    %286 = arith.addf %281, %285 : vector<1x128xf32>
    %287 = vector.extract_strided_slice %200 {offsets = [17, 0], sizes = [1, 128], strides = [1, 1]} : vector<32x128xf32> to vector<1x128xf32>
    %c17 = arith.constant 17 : index
    %c0_273 = arith.constant 0 : index
    %c0_274 = arith.constant 0 : index
    %288 = vector.load %arg7[%c17, %c0_273, %c0_274] : memref<32x128x128xf32, #tpu.memory_space<vmem>>, vector<1x128x128xf32>
    %289 = vector.shape_cast %288 : vector<1x128x128xf32> to vector<128x128xf32>
    %cst_275 = arith.constant dense<0.000000e+00> : vector<1x128xf32>
    %290 = tpu.matmul %287, %289, %cst_275 {dimension_numbers = #tpu.dot_dimension_numbers<[1], [0], [0], [1], [0, 0, 1, 1], [], []>} : vector<1x128xf32>, vector<128x128xf32>, vector<1x128xf32> -> vector<1x128xf32>
    %291 = arith.addf %286, %290 : vector<1x128xf32>
    %292 = vector.extract_strided_slice %200 {offsets = [18, 0], sizes = [1, 128], strides = [1, 1]} : vector<32x128xf32> to vector<1x128xf32>
    %c18 = arith.constant 18 : index
    %c0_276 = arith.constant 0 : index
    %c0_277 = arith.constant 0 : index
    %293 = vector.load %arg7[%c18, %c0_276, %c0_277] : memref<32x128x128xf32, #tpu.memory_space<vmem>>, vector<1x128x128xf32>
    %294 = vector.shape_cast %293 : vector<1x128x128xf32> to vector<128x128xf32>
    %cst_278 = arith.constant dense<0.000000e+00> : vector<1x128xf32>
    %295 = tpu.matmul %292, %294, %cst_278 {dimension_numbers = #tpu.dot_dimension_numbers<[1], [0], [0], [1], [0, 0, 1, 1], [], []>} : vector<1x128xf32>, vector<128x128xf32>, vector<1x128xf32> -> vector<1x128xf32>
    %296 = arith.addf %291, %295 : vector<1x128xf32>
    %297 = vector.extract_strided_slice %200 {offsets = [19, 0], sizes = [1, 128], strides = [1, 1]} : vector<32x128xf32> to vector<1x128xf32>
    %c19 = arith.constant 19 : index
    %c0_279 = arith.constant 0 : index
    %c0_280 = arith.constant 0 : index
    %298 = vector.load %arg7[%c19, %c0_279, %c0_280] : memref<32x128x128xf32, #tpu.memory_space<vmem>>, vector<1x128x128xf32>
    %299 = vector.shape_cast %298 : vector<1x128x128xf32> to vector<128x128xf32>
    %cst_281 = arith.constant dense<0.000000e+00> : vector<1x128xf32>
    %300 = tpu.matmul %297, %299, %cst_281 {dimension_numbers = #tpu.dot_dimension_numbers<[1], [0], [0], [1], [0, 0, 1, 1], [], []>} : vector<1x128xf32>, vector<128x128xf32>, vector<1x128xf32> -> vector<1x128xf32>
    %301 = arith.addf %296, %300 : vector<1x128xf32>
    %302 = vector.extract_strided_slice %200 {offsets = [20, 0], sizes = [1, 128], strides = [1, 1]} : vector<32x128xf32> to vector<1x128xf32>
    %c20 = arith.constant 20 : index
    %c0_282 = arith.constant 0 : index
    %c0_283 = arith.constant 0 : index
    %303 = vector.load %arg7[%c20, %c0_282, %c0_283] : memref<32x128x128xf32, #tpu.memory_space<vmem>>, vector<1x128x128xf32>
    %304 = vector.shape_cast %303 : vector<1x128x128xf32> to vector<128x128xf32>
    %cst_284 = arith.constant dense<0.000000e+00> : vector<1x128xf32>
    %305 = tpu.matmul %302, %304, %cst_284 {dimension_numbers = #tpu.dot_dimension_numbers<[1], [0], [0], [1], [0, 0, 1, 1], [], []>} : vector<1x128xf32>, vector<128x128xf32>, vector<1x128xf32> -> vector<1x128xf32>
    %306 = arith.addf %301, %305 : vector<1x128xf32>
    %307 = vector.extract_strided_slice %200 {offsets = [21, 0], sizes = [1, 128], strides = [1, 1]} : vector<32x128xf32> to vector<1x128xf32>
    %c21 = arith.constant 21 : index
    %c0_285 = arith.constant 0 : index
    %c0_286 = arith.constant 0 : index
    %308 = vector.load %arg7[%c21, %c0_285, %c0_286] : memref<32x128x128xf32, #tpu.memory_space<vmem>>, vector<1x128x128xf32>
    %309 = vector.shape_cast %308 : vector<1x128x128xf32> to vector<128x128xf32>
    %cst_287 = arith.constant dense<0.000000e+00> : vector<1x128xf32>
    %310 = tpu.matmul %307, %309, %cst_287 {dimension_numbers = #tpu.dot_dimension_numbers<[1], [0], [0], [1], [0, 0, 1, 1], [], []>} : vector<1x128xf32>, vector<128x128xf32>, vector<1x128xf32> -> vector<1x128xf32>
    %311 = arith.addf %306, %310 : vector<1x128xf32>
    %312 = vector.extract_strided_slice %200 {offsets = [22, 0], sizes = [1, 128], strides = [1, 1]} : vector<32x128xf32> to vector<1x128xf32>
    %c22 = arith.constant 22 : index
    %c0_288 = arith.constant 0 : index
    %c0_289 = arith.constant 0 : index
    %313 = vector.load %arg7[%c22, %c0_288, %c0_289] : memref<32x128x128xf32, #tpu.memory_space<vmem>>, vector<1x128x128xf32>
    %314 = vector.shape_cast %313 : vector<1x128x128xf32> to vector<128x128xf32>
    %cst_290 = arith.constant dense<0.000000e+00> : vector<1x128xf32>
    %315 = tpu.matmul %312, %314, %cst_290 {dimension_numbers = #tpu.dot_dimension_numbers<[1], [0], [0], [1], [0, 0, 1, 1], [], []>} : vector<1x128xf32>, vector<128x128xf32>, vector<1x128xf32> -> vector<1x128xf32>
    %316 = arith.addf %311, %315 : vector<1x128xf32>
    %317 = vector.extract_strided_slice %200 {offsets = [23, 0], sizes = [1, 128], strides = [1, 1]} : vector<32x128xf32> to vector<1x128xf32>
    %c23 = arith.constant 23 : index
    %c0_291 = arith.constant 0 : index
    %c0_292 = arith.constant 0 : index
    %318 = vector.load %arg7[%c23, %c0_291, %c0_292] : memref<32x128x128xf32, #tpu.memory_space<vmem>>, vector<1x128x128xf32>
    %319 = vector.shape_cast %318 : vector<1x128x128xf32> to vector<128x128xf32>
    %cst_293 = arith.constant dense<0.000000e+00> : vector<1x128xf32>
    %320 = tpu.matmul %317, %319, %cst_293 {dimension_numbers = #tpu.dot_dimension_numbers<[1], [0], [0], [1], [0, 0, 1, 1], [], []>} : vector<1x128xf32>, vector<128x128xf32>, vector<1x128xf32> -> vector<1x128xf32>
    %321 = arith.addf %316, %320 : vector<1x128xf32>
    %322 = vector.extract_strided_slice %200 {offsets = [24, 0], sizes = [1, 128], strides = [1, 1]} : vector<32x128xf32> to vector<1x128xf32>
    %c24 = arith.constant 24 : index
    %c0_294 = arith.constant 0 : index
    %c0_295 = arith.constant 0 : index
    %323 = vector.load %arg7[%c24, %c0_294, %c0_295] : memref<32x128x128xf32, #tpu.memory_space<vmem>>, vector<1x128x128xf32>
    %324 = vector.shape_cast %323 : vector<1x128x128xf32> to vector<128x128xf32>
    %cst_296 = arith.constant dense<0.000000e+00> : vector<1x128xf32>
    %325 = tpu.matmul %322, %324, %cst_296 {dimension_numbers = #tpu.dot_dimension_numbers<[1], [0], [0], [1], [0, 0, 1, 1], [], []>} : vector<1x128xf32>, vector<128x128xf32>, vector<1x128xf32> -> vector<1x128xf32>
    %326 = arith.addf %321, %325 : vector<1x128xf32>
    %327 = vector.extract_strided_slice %200 {offsets = [25, 0], sizes = [1, 128], strides = [1, 1]} : vector<32x128xf32> to vector<1x128xf32>
    %c25 = arith.constant 25 : index
    %c0_297 = arith.constant 0 : index
    %c0_298 = arith.constant 0 : index
    %328 = vector.load %arg7[%c25, %c0_297, %c0_298] : memref<32x128x128xf32, #tpu.memory_space<vmem>>, vector<1x128x128xf32>
    %329 = vector.shape_cast %328 : vector<1x128x128xf32> to vector<128x128xf32>
    %cst_299 = arith.constant dense<0.000000e+00> : vector<1x128xf32>
    %330 = tpu.matmul %327, %329, %cst_299 {dimension_numbers = #tpu.dot_dimension_numbers<[1], [0], [0], [1], [0, 0, 1, 1], [], []>} : vector<1x128xf32>, vector<128x128xf32>, vector<1x128xf32> -> vector<1x128xf32>
    %331 = arith.addf %326, %330 : vector<1x128xf32>
    %332 = vector.extract_strided_slice %200 {offsets = [26, 0], sizes = [1, 128], strides = [1, 1]} : vector<32x128xf32> to vector<1x128xf32>
    %c26 = arith.constant 26 : index
    %c0_300 = arith.constant 0 : index
    %c0_301 = arith.constant 0 : index
    %333 = vector.load %arg7[%c26, %c0_300, %c0_301] : memref<32x128x128xf32, #tpu.memory_space<vmem>>, vector<1x128x128xf32>
    %334 = vector.shape_cast %333 : vector<1x128x128xf32> to vector<128x128xf32>
    %cst_302 = arith.constant dense<0.000000e+00> : vector<1x128xf32>
    %335 = tpu.matmul %332, %334, %cst_302 {dimension_numbers = #tpu.dot_dimension_numbers<[1], [0], [0], [1], [0, 0, 1, 1], [], []>} : vector<1x128xf32>, vector<128x128xf32>, vector<1x128xf32> -> vector<1x128xf32>
    %336 = arith.addf %331, %335 : vector<1x128xf32>
    %337 = vector.extract_strided_slice %200 {offsets = [27, 0], sizes = [1, 128], strides = [1, 1]} : vector<32x128xf32> to vector<1x128xf32>
    %c27 = arith.constant 27 : index
    %c0_303 = arith.constant 0 : index
    %c0_304 = arith.constant 0 : index
    %338 = vector.load %arg7[%c27, %c0_303, %c0_304] : memref<32x128x128xf32, #tpu.memory_space<vmem>>, vector<1x128x128xf32>
    %339 = vector.shape_cast %338 : vector<1x128x128xf32> to vector<128x128xf32>
    %cst_305 = arith.constant dense<0.000000e+00> : vector<1x128xf32>
    %340 = tpu.matmul %337, %339, %cst_305 {dimension_numbers = #tpu.dot_dimension_numbers<[1], [0], [0], [1], [0, 0, 1, 1], [], []>} : vector<1x128xf32>, vector<128x128xf32>, vector<1x128xf32> -> vector<1x128xf32>
    %341 = arith.addf %336, %340 : vector<1x128xf32>
    %342 = vector.extract_strided_slice %200 {offsets = [28, 0], sizes = [1, 128], strides = [1, 1]} : vector<32x128xf32> to vector<1x128xf32>
    %c28 = arith.constant 28 : index
    %c0_306 = arith.constant 0 : index
    %c0_307 = arith.constant 0 : index
    %343 = vector.load %arg7[%c28, %c0_306, %c0_307] : memref<32x128x128xf32, #tpu.memory_space<vmem>>, vector<1x128x128xf32>
    %344 = vector.shape_cast %343 : vector<1x128x128xf32> to vector<128x128xf32>
    %cst_308 = arith.constant dense<0.000000e+00> : vector<1x128xf32>
    %345 = tpu.matmul %342, %344, %cst_308 {dimension_numbers = #tpu.dot_dimension_numbers<[1], [0], [0], [1], [0, 0, 1, 1], [], []>} : vector<1x128xf32>, vector<128x128xf32>, vector<1x128xf32> -> vector<1x128xf32>
    %346 = arith.addf %341, %345 : vector<1x128xf32>
    %347 = vector.extract_strided_slice %200 {offsets = [29, 0], sizes = [1, 128], strides = [1, 1]} : vector<32x128xf32> to vector<1x128xf32>
    %c29 = arith.constant 29 : index
    %c0_309 = arith.constant 0 : index
    %c0_310 = arith.constant 0 : index
    %348 = vector.load %arg7[%c29, %c0_309, %c0_310] : memref<32x128x128xf32, #tpu.memory_space<vmem>>, vector<1x128x128xf32>
    %349 = vector.shape_cast %348 : vector<1x128x128xf32> to vector<128x128xf32>
    %cst_311 = arith.constant dense<0.000000e+00> : vector<1x128xf32>
    %350 = tpu.matmul %347, %349, %cst_311 {dimension_numbers = #tpu.dot_dimension_numbers<[1], [0], [0], [1], [0, 0, 1, 1], [], []>} : vector<1x128xf32>, vector<128x128xf32>, vector<1x128xf32> -> vector<1x128xf32>
    %351 = arith.addf %346, %350 : vector<1x128xf32>
    %352 = vector.extract_strided_slice %200 {offsets = [30, 0], sizes = [1, 128], strides = [1, 1]} : vector<32x128xf32> to vector<1x128xf32>
    %c30 = arith.constant 30 : index
    %c0_312 = arith.constant 0 : index
    %c0_313 = arith.constant 0 : index
    %353 = vector.load %arg7[%c30, %c0_312, %c0_313] : memref<32x128x128xf32, #tpu.memory_space<vmem>>, vector<1x128x128xf32>
    %354 = vector.shape_cast %353 : vector<1x128x128xf32> to vector<128x128xf32>
    %cst_314 = arith.constant dense<0.000000e+00> : vector<1x128xf32>
    %355 = tpu.matmul %352, %354, %cst_314 {dimension_numbers = #tpu.dot_dimension_numbers<[1], [0], [0], [1], [0, 0, 1, 1], [], []>} : vector<1x128xf32>, vector<128x128xf32>, vector<1x128xf32> -> vector<1x128xf32>
    %356 = arith.addf %351, %355 : vector<1x128xf32>
    %357 = vector.extract_strided_slice %200 {offsets = [31, 0], sizes = [1, 128], strides = [1, 1]} : vector<32x128xf32> to vector<1x128xf32>
    %c31 = arith.constant 31 : index
    %c0_315 = arith.constant 0 : index
    %c0_316 = arith.constant 0 : index
    %358 = vector.load %arg7[%c31, %c0_315, %c0_316] : memref<32x128x128xf32, #tpu.memory_space<vmem>>, vector<1x128x128xf32>
    %359 = vector.shape_cast %358 : vector<1x128x128xf32> to vector<128x128xf32>
    %cst_317 = arith.constant dense<0.000000e+00> : vector<1x128xf32>
    %360 = tpu.matmul %357, %359, %cst_317 {dimension_numbers = #tpu.dot_dimension_numbers<[1], [0], [0], [1], [0, 0, 1, 1], [], []>} : vector<1x128xf32>, vector<128x128xf32>, vector<1x128xf32> -> vector<1x128xf32>
    %361 = arith.addf %356, %360 : vector<1x128xf32>
    %c0_318 = arith.constant 0 : index
    %c0_319 = arith.constant 0 : index
    %c0_320 = arith.constant 0 : index
    %362 = vector.load %arg9[%c0_318, %c0_319, %c0_320] : memref<1x1x128xf32, #tpu.memory_space<vmem>>, vector<1x1x128xf32>
    %363 = vector.shape_cast %362 : vector<1x1x128xf32> to vector<1x128xf32>
    %364 = vector.shape_cast %361 : vector<1x128xf32> to vector<1x1x128xf32>
    tpu.vector_store %arg9[%c0_318, %c0_319, %c0_320], %364 {strides = array<i32>} : memref<1x1x128xf32, #tpu.memory_space<vmem>>, vector<1x1x128xf32>,
    return
  }
  func.func @transform_0(%arg0: i32) -> (i32, i32, i32) {
    %c0_i32 = arith.constant 0 : i32
    %c0_i32_0 = arith.constant 0 : i32
    %c0_i32_1 = arith.constant 0 : i32
    return %arg0, %c0_i32, %c0_i32_0 : i32, i32, i32
  }
  func.func @transform_1(%arg0: i32) -> (i32, i32, i32) {
    %c0_i32 = arith.constant 0 : i32
    %c0_i32_0 = arith.constant 0 : i32
    %c0_i32_1 = arith.constant 0 : i32
    %c0_i32_2 = arith.constant 0 : i32
    return %c0_i32, %c0_i32_0, %c0_i32_1 : i32, i32, i32
  }
  func.func @transform_2(%arg0: i32) -> (i32, i32) {
    %c0_i32 = arith.constant 0 : i32
    %c0_i32_0 = arith.constant 0 : i32
    %c0_i32_1 = arith.constant 0 : i32
    return %c0_i32, %c0_i32_0 : i32, i32
  }
  func.func @transform_3(%arg0: i32) -> (i32, i32) {
    %c0_i32 = arith.constant 0 : i32
    %c0_i32_0 = arith.constant 0 : i32
    %c0_i32_1 = arith.constant 0 : i32
    return %c0_i32, %c0_i32_0 : i32, i32
  }
  func.func @transform_4(%arg0: i32) -> (i32, i32, i32, i32) {
    %c0_i32 = arith.constant 0 : i32
    %c0_i32_0 = arith.constant 0 : i32
    %c0_i32_1 = arith.constant 0 : i32
    %c0_i32_2 = arith.constant 0 : i32
    %c0_i32_3 = arith.constant 0 : i32
    return %c0_i32, %c0_i32_0, %c0_i32_1, %c0_i32_2 : i32, i32, i32, i32
  }
  func.func @transform_5(%arg0: i32) -> (i32, i32, i32) {
    %c0_i32 = arith.constant 0 : i32
    %c0_i32_0 = arith.constant 0 : i32
    %c0_i32_1 = arith.constant 0 : i32
    %c0_i32_2 = arith.constant 0 : i32
    return %c0_i32, %c0_i32_0, %c0_i32_1 : i32, i32, i32
  }
  func.func @transform_6(%arg0: i32) -> (i32, i32, i32) {
    %c0_i32 = arith.constant 0 : i32
    %c0_i32_0 = arith.constant 0 : i32
    %c0_i32_1 = arith.constant 0 : i32
    %c0_i32_2 = arith.constant 0 : i32
    return %c0_i32, %c0_i32_0, %c0_i32_1 : i32, i32, i32
  }
  func.func @transform_7(%arg0: i32) -> (i32, i32) {
    %c0_i32 = arith.constant 0 : i32
    %c0_i32_0 = arith.constant 0 : i32
    %c0_i32_1 = arith.constant 0 : i32
    return %c0_i32, %c0_i32_0 : i32, i32
  }
  func.func @transform_8(%arg0: i32) -> (i32, i32, i32) {
    %c0_i32 = arith.constant 0 : i32
    %c0_i32_0 = arith.constant 0 : i32
    %c0_i32_1 = arith.constant 0 : i32
    return %arg0, %c0_i32, %c0_i32_0 : i32, i32, i32
  }
}

</mosaic_0001>

<llo_original>
// kernel: tpu_custom_call.1
$region0: #{tpu_custom_call.1}
  #allocation0 [shape = 'u32[]', space=smem, size = 0x4, offset = 0x4, fixed_abs, tag = 'smem constant byte address 0x4 - core index']
  #allocation1 [shape = 'u32[72,128]{1,0:T(1,128)}', space=vmem, size = 0x9000, scoped, tag = 'internal scratch']
  #allocation2 [shape = 'f32[34,136]{1,0:T(8,128)}', space=vmem, size = 0xa000, scoped, tag = 'scratch operand']
  %s0 = inlined_call_operand.vmem [shape: f32[2,34,102], index: 0, kind: input, shape index: {}]
  %s1 = inlined_call_operand.hbm [shape: f32[9,96,128], index: 1, kind: input, shape index: {}]
  %s2 = inlined_call_operand.hbm [shape: f32[1,128], index: 2, kind: input, shape index: {}]
  %s3 = inlined_call_operand.hbm [shape: f32[1,128], index: 3, kind: input, shape index: {}]
  %s4 = inlined_call_operand.hbm [shape: f32[2,9,128,128], index: 4, kind: input, shape index: {}]
  %s5 = inlined_call_operand.hbm [shape: f32[2,1,128], index: 5, kind: input, shape index: {}]
  %s6 = inlined_call_operand.hbm [shape: f32[32,128,128], index: 6, kind: input, shape index: {}]
  %s7 = inlined_call_operand.hbm [shape: f32[1,128], index: 7, kind: input, shape index: {}]
  %s8 = inlined_call_operand.hbm [shape: f32[2,1,128], index: 8, kind: output, shape index: {}]
  %s9 = sld [smem:[#allocation0]]
  $region93: #{tpu_custom_call.1} parent=0
    _
  %s11 = ssub.s32 1, %s9
  %s12 = scalar_select 0, %s11, %s9
  $region1: #{tpu_custom_call.1} parent=0
    #allocation3 [shape = 'u8[442368]{0}', space=vmem, size = 0x6c000, scoped, tag = 'input window, operand 1, single buffered']
    #allocation4 [shape = 's32[2]{0}', space=sflag, size = 0x8, scoped, tag = 'scoped memory for tpu_custom_call.1']
    #allocation5 [shape = 's32[2]{0}', space=sflag, size = 0x8, scoped, tag = 'scoped memory for tpu_custom_call.1']
    #allocation6 [shape = 'u8[512]{0}', space=vmem, size = 0x400, scoped, tag = 'input window, operand 2, single buffered']
    #allocation7 [shape = 's32[1]{0}', space=sflag, size = 0x4, scoped, tag = 'scoped memory for tpu_custom_call.1']
    #allocation8 [shape = 'u8[512]{0}', space=vmem, size = 0x400, scoped, tag = 'input window, operand 3, single buffered']
    #allocation9 [shape = 'u8[1179648]{0}', space=vmem, size = 0x120000, scoped, tag = 'input window, operand 4, single buffered']
    #allocation10 [shape = 's32[1]{0}', space=sflag, size = 0x4, scoped, tag = 'scoped memory for tpu_custom_call.1']
    #allocation11 [shape = 'u8[1024]{0}', space=vmem, size = 0x400, scoped, tag = 'input window, operand 5, single buffered']
    #allocation12 [shape = 'u8[2097152]{0}', space=vmem, size = 0x200000, scoped, tag = 'input window, operand 6, single buffered']
    #allocation13 [shape = 's32[1]{0}', space=sflag, size = 0x4, scoped, tag = 'scoped memory for tpu_custom_call.1']
    #allocation14 [shape = 'u8[512]{0}', space=vmem, size = 0x400, scoped, tag = 'input window, operand 7, single buffered']
    #allocation15 [shape = 'u8[1024]{0}', space=vmem, size = 0x400, scoped, tag = 'output window, operand 0']
    %13 = vsyncpa [#allocation4], 0
    %14 = vsyncpa [#allocation7], 0
    %15 = vsyncpa [#allocation10], 0
    %16 = vsyncpa [#allocation13], 0
    %17 = vsyncpa [#allocation5], 0
    %s18 = scalar_lea.sflag [#allocation5], 1
    %19 = vsyncpa %s18, 0
    loop: start=0, step=1, limit=4
    $region2: #{tpu_custom_call.1} parent=1 // loop_pre_header
      _
    $region3: #{tpu_custom_call.1} parent=1 // loop_header
      %s21 = sphi 0, %s25
      %p22 = scmp.ge.s32.totalorder %s21, 4
      %s31 = sphi 0, %s33
      %s34 = sphi 0, %s31
      %s35 = sphi 0, %s34
      %s51 = sphi 0, %s35
      %s55 = sphi 0, %s55
      %s57 = sphi 0, %s55
      %s58 = sphi 0, %s57
      %s72 = sphi 0, %s58
      %s76 = sphi 0, %s76
      %s78 = sphi 0, %s76
      %s79 = sphi 0, %s78
      %s93 = sphi 0, %s79
      %s97 = sphi 0, %s97
      %s99 = sphi 0, %s97
      %s100 = sphi 0, %s99
      %s114 = sphi 0, %s100
      %s118 = sphi 0, %s118
      %s120 = sphi 0, %s118
      %s121 = sphi 0, %s120
      %s135 = sphi 0, %s121
      %s139 = sphi 0, %s139
      %s141 = sphi 0, %s139
      %s142 = sphi 0, %s141
      %s156 = sphi 0, %s142
      %s160 = sphi 0, %s160
      %s162 = sphi 0, %s160
      %s163 = sphi 0, %s162
      %s177 = sphi 0, %s163
      %s181 = sphi 0, %s181
      %s183 = sphi 0, %s181
      %s184 = sphi 0, %s183
      %s198 = sphi 0, %s184
      %s204 = sphi 0, %s206
      %s207 = sphi 0, %s204
      %s208 = sphi 0, %s207
      %s224 = sphi 0, %s208
    $region4: #{tpu_custom_call.1} parent=1 // loop_header_branch
      %24 = sbr.rel (%p22) target = $region8
    $region5: #{tpu_custom_call.1} parent=1 // loop_body
      %s26 = ssub.s32 %s21, 1
      %s27 = ssub.s32 %s21, 2
      %s28 = sadd.s32 %s21, 1
      %s29 = ssub.s32 %s21, %s28
      %p30 = scmp.eq.s32.totalorder %s29, 0
      %s32 = sadd.s32 %s31, 1
      %s33 = scalar_select %p30, %s31, %s32
      %p36 = pneg %p30
      %p37 = scmp.eq.s32.totalorder %s21, 1
      %p38 = por %p36, %p37
      %p39 = scmp.ne.s32.totalorder %s31, %s34
      %p40 = scmp.eq.s32.totalorder %s21, 0
      %p41 = por %p39, %p40
      %p42 = scmp.ne.s32.totalorder %s31, %s34
      %p43 = scmp.eq.s32.totalorder %s26, 1
      %p44 = por %p42, %p43
      %p45 = scmp.ne.s32.totalorder %s34, %s35
      %p46 = scmp.eq.s32.totalorder %s26, 0
      %p47 = por %p45, %p46
      %p48 = scmp.ne.s32.totalorder %s34, %s35
      %p49 = scmp.eq.s32.totalorder %s27, 1
      %p50 = por %p48, %p49
      %p52 = scmp.ne.s32.totalorder %s35, %s51
      %p53 = scmp.eq.s32.totalorder %s27, 0
      %p54 = por %p52, %p53
      %s56 = sadd.s32 %s55, 1
      %p59 = scmp.eq.s32.totalorder %s21, 1
      %p60 = scmp.ne.s32.totalorder %s55, %s57
      %p61 = scmp.eq.s32.totalorder %s21, 0
      %p62 = por %p60, %p61
      %p63 = scmp.ne.s32.totalorder %s55, %s57
      %p64 = scmp.eq.s32.totalorder %s26, 1
      %p65 = por %p63, %p64
      %p66 = scmp.ne.s32.totalorder %s57, %s58
      %p67 = scmp.eq.s32.totalorder %s26, 0
      %p68 = por %p66, %p67
      %p69 = scmp.ne.s32.totalorder %s57, %s58
      %p70 = scmp.eq.s32.totalorder %s27, 1
      %p71 = por %p69, %p70
      %p73 = scmp.ne.s32.totalorder %s58, %s72
      %p74 = scmp.eq.s32.totalorder %s27, 0
      %p75 = por %p73, %p74
      %s77 = sadd.s32 %s76, 1
      %p80 = scmp.eq.s32.totalorder %s21, 1
      %p81 = scmp.ne.s32.totalorder %s76, %s78
      %p82 = scmp.eq.s32.totalorder %s21, 0
      %p83 = por %p81, %p82
      %p84 = scmp.ne.s32.totalorder %s76, %s78
      %p85 = scmp.eq.s32.totalorder %s26, 1
      %p86 = por %p84, %p85
      %p87 = scmp.ne.s32.totalorder %s78, %s79
      %p88 = scmp.eq.s32.totalorder %s26, 0
      %p89 = por %p87, %p88
      %p90 = scmp.ne.s32.totalorder %s78, %s79
      %p91 = scmp.eq.s32.totalorder %s27, 1
      %p92 = por %p90, %p91
      %p94 = scmp.ne.s32.totalorder %s79, %s93
      %p95 = scmp.eq.s32.totalorder %s27, 0
      %p96 = por %p94, %p95
      %s98 = sadd.s32 %s97, 1
      %p101 = scmp.eq.s32.totalorder %s21, 1
      %p102 = scmp.ne.s32.totalorder %s97, %s99
      %p103 = scmp.eq.s32.totalorder %s21, 0
      %p104 = por %p102, %p103
      %p105 = scmp.ne.s32.totalorder %s97, %s99
      %p106 = scmp.eq.s32.totalorder %s26, 1
      %p107 = por %p105, %p106
      %p108 = scmp.ne.s32.totalorder %s99, %s100
      %p109 = scmp.eq.s32.totalorder %s26, 0
      %p110 = por %p108, %p109
      %p111 = scmp.ne.s32.totalorder %s99, %s100
      %p112 = scmp.eq.s32.totalorder %s27, 1
      %p113 = por %p111, %p112
      %p115 = scmp.ne.s32.totalorder %s100, %s114
      %p116 = scmp.eq.s32.totalorder %s27, 0
      %p117 = por %p115, %p116
      %s119 = sadd.s32 %s118, 1
      %p122 = scmp.eq.s32.totalorder %s21, 1
      %p123 = scmp.ne.s32.totalorder %s118, %s120
      %p124 = scmp.eq.s32.totalorder %s21, 0
      %p125 = por %p123, %p124
      %p126 = scmp.ne.s32.totalorder %s118, %s120
      %p127 = scmp.eq.s32.totalorder %s26, 1
      %p128 = por %p126, %p127
      %p129 = scmp.ne.s32.totalorder %s120, %s121
      %p130 = scmp.eq.s32.totalorder %s26, 0
      %p131 = por %p129, %p130
      %p132 = scmp.ne.s32.totalorder %s120, %s121
      %p133 = scmp.eq.s32.totalorder %s27, 1
      %p134 = por %p132, %p133
      %p136 = scmp.ne.s32.totalorder %s121, %s135
      %p137 = scmp.eq.s32.totalorder %s27, 0
      %p138 = por %p136, %p137
      %s140 = sadd.s32 %s139, 1
      %p143 = scmp.eq.s32.totalorder %s21, 1
      %p144 = scmp.ne.s32.totalorder %s139, %s141
      %p145 = scmp.eq.s32.totalorder %s21, 0
      %p146 = por %p144, %p145
      %p147 = scmp.ne.s32.totalorder %s139, %s141
      %p148 = scmp.eq.s32.totalorder %s26, 1
      %p149 = por %p147, %p148
      %p150 = scmp.ne.s32.totalorder %s141, %s142
      %p151 = scmp.eq.s32.totalorder %s26, 0
      %p152 = por %p150, %p151
      %p153 = scmp.ne.s32.totalorder %s141, %s142
      %p154 = scmp.eq.s32.totalorder %s27, 1
      %p155 = por %p153, %p154
      %p157 = scmp.ne.s32.totalorder %s142, %s156
      %p158 = scmp.eq.s32.totalorder %s27, 0
      %p159 = por %p157, %p158
      %s161 = sadd.s32 %s160, 1
      %p164 = scmp.eq.s32.totalorder %s21, 1
      %p165 = scmp.ne.s32.totalorder %s160, %s162
      %p166 = scmp.eq.s32.totalorder %s21, 0
      %p167 = por %p165, %p166
      %p168 = scmp.ne.s32.totalorder %s160, %s162
      %p169 = scmp.eq.s32.totalorder %s26, 1
      %p170 = por %p168, %p169
      %p171 = scmp.ne.s32.totalorder %s162, %s163
      %p172 = scmp.eq.s32.totalorder %s26, 0
      %p173 = por %p171, %p172
      %p174 = scmp.ne.s32.totalorder %s162, %s163
      %p175 = scmp.eq.s32.totalorder %s27, 1
      %p176 = por %p174, %p175
      %p178 = scmp.ne.s32.totalorder %s163, %s177
      %p179 = scmp.eq.s32.totalorder %s27, 0
      %p180 = por %p178, %p179
      %s182 = sadd.s32 %s181, 1
      %p185 = scmp.eq.s32.totalorder %s21, 1
      %p186 = scmp.ne.s32.totalorder %s181, %s183
      %p187 = scmp.eq.s32.totalorder %s21, 0
      %p188 = por %p186, %p187
      %p189 = scmp.ne.s32.totalorder %s181, %s183
      %p190 = scmp.eq.s32.totalorder %s26, 1
      %p191 = por %p189, %p190
      %p192 = scmp.ne.s32.totalorder %s183, %s184
      %p193 = scmp.eq.s32.totalorder %s26, 0
      %p194 = por %p192, %p193
      %p195 = scmp.ne.s32.totalorder %s183, %s184
      %p196 = scmp.eq.s32.totalorder %s27, 1
      %p197 = por %p195, %p196
      %p199 = scmp.ne.s32.totalorder %s184, %s198
      %p200 = scmp.eq.s32.totalorder %s27, 0
      %p201 = por %p199, %p200
      %s202 = ssub.s32 %s21, %s28
      %p203 = scmp.eq.s32.totalorder %s202, 0
      %s205 = sadd.s32 %s204, 1
      %s206 = scalar_select %p203, %s204, %s205
      %p209 = pneg %p203
      %p210 = scmp.eq.s32.totalorder %s21, 1
      %p211 = por %p209, %p210
      %p212 = scmp.ne.s32.totalorder %s204, %s207
      %p213 = scmp.eq.s32.totalorder %s21, 0
      %p214 = por %p212, %p213
      %p215 = scmp.ne.s32.totalorder %s204, %s207
      %p216 = scmp.eq.s32.totalorder %s26, 1
      %p217 = por %p215, %p216
      %p218 = scmp.ne.s32.totalorder %s207, %s208
      %p219 = scmp.eq.s32.totalorder %s26, 0
      %p220 = por %p218, %p219
      %p221 = scmp.ne.s32.totalorder %s207, %s208
      %p222 = scmp.eq.s32.totalorder %s27, 1
      %p223 = por %p221, %p222
      %p225 = scmp.ne.s32.totalorder %s208, %s224
      %p226 = scmp.eq.s32.totalorder %s27, 0
      %p227 = por %p225, %p226
      %p228 = scmp.le.s32.totalorder 1, %s21
      %p229 = scmp.lt.s32.totalorder %s21, 3
      %p230 = pnand %p228, %p229
      %p231 = pneg %p230
      // Predicated region
      $region9: #{tpu_custom_call.1} parent=5 // pred_check
        _
      $region10: #{tpu_custom_call.1} parent=5 // pred_check_branch
        %233 = sbr.rel (%p230) target = $region12
      $region11: #{tpu_custom_call.1} parent=5 // pred_region
        %s234 = ssub.s32 %s21, 1
        // Predicated region
        $region13: #{tpu_custom_call.1} parent=11 // pred_check
          %p235 = pneg %p68
        $region14: #{tpu_custom_call.1} parent=11 // pred_check_branch
          %237 = sbr.rel (%p235) target = $region16
        $region15: #{tpu_custom_call.1} parent=11 // pred_region
          %239 = vsyncadd [#allocation4], 0
          %s240 = sshll.u32 %s1, 4
          %s241 = int_to_ptr.hbm [resolvable:$true] %s240
          %s242 = sshll.u32 [#allocation3], 4
          %s243 = int_to_ptr.vmem [resolvable:$true] %s242
          %248 = dma.hbm_to_vmem [thread:$0]  %s241, 13824, %s243, [#allocation4], 128, 128, 8
        $region16: #{tpu_custom_call.1} parent=11 // pred_fallthru
          _
        // Predicated region
        $region17: #{tpu_custom_call.1} parent=11 // pred_check
          %p249 = pneg %p89
        $region18: #{tpu_custom_call.1} parent=11 // pred_check_branch
          %251 = sbr.rel (%p249) target = $region20
        $region19: #{tpu_custom_call.1} parent=11 // pred_region
          %253 = vsyncadd [#allocation7], 0
          %s255 = sshll.u32 %s2, 4
          %s256 = int_to_ptr.hbm [resolvable:$true] %s255
          %s257 = sshll.u32 [#allocation6], 4
          %s258 = int_to_ptr.vmem [resolvable:$true] %s257
          %260 = dma.hbm_to_vmem [thread:$0]  %s256, 16, %s258, [#allocation7]
        $region20: #{tpu_custom_call.1} parent=11 // pred_fallthru
          _
        // Predicated region
        $region21: #{tpu_custom_call.1} parent=11 // pred_check
          %p261 = pneg %p110
        $region22: #{tpu_custom_call.1} parent=11 // pred_check_branch
          %263 = sbr.rel (%p261) target = $region24
        $region23: #{tpu_custom_call.1} parent=11 // pred_region
          %265 = vsyncadd [#allocation7], 0
          %s267 = sshll.u32 %s3, 4
          %s268 = int_to_ptr.hbm [resolvable:$true] %s267
          %s269 = sshll.u32 [#allocation8], 4
          %s270 = int_to_ptr.vmem [resolvable:$true] %s269
          %272 = dma.hbm_to_vmem [thread:$0]  %s268, 16, %s270, [#allocation7]
        $region24: #{tpu_custom_call.1} parent=11 // pred_fallthru
          _
        // Predicated region
        $region25: #{tpu_custom_call.1} parent=11 // pred_check
          %p273 = pneg %p131
        $region26: #{tpu_custom_call.1} parent=11 // pred_check_branch
          %275 = sbr.rel (%p273) target = $region28
        $region27: #{tpu_custom_call.1} parent=11 // pred_region
          %277 = vsyncadd [#allocation10], 0
          %s278 = sshll.u32 %s4, 4
          %s279 = int_to_ptr.hbm [resolvable:$true] %s278
          %s280 = sshll.u32 [#allocation9], 4
          %s281 = int_to_ptr.vmem [resolvable:$true] %s280
          %286 = dma.hbm_to_vmem [thread:$0]  %s279, 36864, %s281, [#allocation10], 128, 128, 8
        $region28: #{tpu_custom_call.1} parent=11 // pred_fallthru
          _
        // Predicated region
        $region29: #{tpu_custom_call.1} parent=11 // pred_check
          %p287 = pneg %p152
        $region30: #{tpu_custom_call.1} parent=11 // pred_check_branch
          %289 = sbr.rel (%p287) target = $region32
        $region31: #{tpu_custom_call.1} parent=11 // pred_region
          %291 = vsyncadd [#allocation10], 0
          %s292 = sshll.u32 %s5, 4
          %s293 = int_to_ptr.hbm [resolvable:$true] %s292
          %s294 = sshll.u32 [#allocation11], 4
          %s295 = int_to_ptr.vmem [resolvable:$true] %s294
          %300 = dma.hbm_to_vmem [thread:$0]  %s293, 32, %s295, [#allocation10], 16, 16, 1
        $region32: #{tpu_custom_call.1} parent=11 // pred_fallthru
          _
        // Predicated region
        $region33: #{tpu_custom_call.1} parent=11 // pred_check
          %p301 = pneg %p173
        $region34: #{tpu_custom_call.1} parent=11 // pred_check_branch
          %303 = sbr.rel (%p301) target = $region36
        $region35: #{tpu_custom_call.1} parent=11 // pred_region
          %305 = vsyncadd [#allocation13], 0
          %s306 = sshll.u32 %s6, 4
          %s307 = int_to_ptr.hbm [resolvable:$true] %s306
          %s308 = sshll.u32 [#allocation12], 4
          %s309 = int_to_ptr.vmem [resolvable:$true] %s308
          %314 = dma.hbm_to_vmem [thread:$0]  %s307, 65536, %s309, [#allocation13], 128, 128, 8
        $region36: #{tpu_custom_call.1} parent=11 // pred_fallthru
          _
        // Predicated region
        $region37: #{tpu_custom_call.1} parent=11 // pred_check
          %p315 = pneg %p194
        $region38: #{tpu_custom_call.1} parent=11 // pred_check_branch
          %317 = sbr.rel (%p315) target = $region40
        $region39: #{tpu_custom_call.1} parent=11 // pred_region
          %319 = vsyncadd [#allocation13], 0
          %s321 = sshll.u32 %s7, 4
          %s322 = int_to_ptr.hbm [resolvable:$true] %s321
          %s323 = sshll.u32 [#allocation14], 4
          %s324 = int_to_ptr.vmem [resolvable:$true] %s323
          %326 = dma.hbm_to_vmem [thread:$0]  %s322, 16, %s324, [#allocation13]
        $region40: #{tpu_custom_call.1} parent=11 // pred_fallthru
          _
      $region12: #{tpu_custom_call.1} parent=5 // pred_fallthru
        _
      %p327 = scmp.lt.s32.totalorder %s21, 2
      // Predicated region
      $region41: #{tpu_custom_call.1} parent=5 // pred_check
        %p328 = pneg %p327
      $region42: #{tpu_custom_call.1} parent=5 // pred_check_branch
        %330 = sbr.rel (%p328) target = $region44
      $region43: #{tpu_custom_call.1} parent=5 // pred_region
        // Predicated region
        $region45: #{tpu_custom_call.1} parent=43 // pred_check
          %p331 = pneg %p41
        $region46: #{tpu_custom_call.1} parent=43 // pred_check_branch
          %333 = sbr.rel (%p331) target = $region48
        $region47: #{tpu_custom_call.1} parent=43 // pred_region
          %p334 = scmp.lt.s32.totalorder %s21, 1
          %s335 = scalar_select %p334, %s21, 1
          %s336 = smul.addr %s335, 5
          %s337 = smul.addr %s336, 8
          %s338 = scalar_lea.vmem %s0, %s337
        $region48: #{tpu_custom_call.1} parent=43 // pred_fallthru
          _
      $region44: #{tpu_custom_call.1} parent=5 // pred_fallthru
        _
      %p339 = scmp.le.s32.totalorder 1, %s21
      %p340 = scmp.lt.s32.totalorder %s21, 3
      %p341 = pnand %p339, %p340
      %p342 = pneg %p341
      // Predicated region
      $region49: #{tpu_custom_call.1} parent=5 // pred_check
        _
      $region50: #{tpu_custom_call.1} parent=5 // pred_check_branch
        %344 = sbr.rel (%p341) target = $region52
      $region51: #{tpu_custom_call.1} parent=5 // pred_region
        %s345 = ssub.s32 %s21, 1
        // Predicated region
        $region53: #{tpu_custom_call.1} parent=51 // pred_check
          %p346 = pneg %p68
        $region54: #{tpu_custom_call.1} parent=51 // pred_check_branch
          %348 = sbr.rel (%p346) target = $region56
        $region55: #{tpu_custom_call.1} parent=51 // pred_region
          %350 = dma.done [#allocation4], 13824
        $region56: #{tpu_custom_call.1} parent=51 // pred_fallthru
          _
        // Predicated region
        $region57: #{tpu_custom_call.1} parent=51 // pred_check
          %p351 = pneg %p89
        $region58: #{tpu_custom_call.1} parent=51 // pred_check_branch
          %353 = sbr.rel (%p351) target = $region60
        $region59: #{tpu_custom_call.1} parent=51 // pred_region
          %355 = dma.done [#allocation7], 16
        $region60: #{tpu_custom_call.1} parent=51 // pred_fallthru
          _
        // Predicated region
        $region61: #{tpu_custom_call.1} parent=51 // pred_check
          %p356 = pneg %p110
        $region62: #{tpu_custom_call.1} parent=51 // pred_check_branch
          %358 = sbr.rel (%p356) target = $region64
        $region63: #{tpu_custom_call.1} parent=51 // pred_region
          %360 = dma.done [#allocation7], 16
        $region64: #{tpu_custom_call.1} parent=51 // pred_fallthru
          _
        // Predicated region
        $region65: #{tpu_custom_call.1} parent=51 // pred_check
          %p361 = pneg %p131
        $region66: #{tpu_custom_call.1} parent=51 // pred_check_branch
          %363 = sbr.rel (%p361) target = $region68
        $region67: #{tpu_custom_call.1} parent=51 // pred_region
          %365 = dma.done [#allocation10], 36864
        $region68: #{tpu_custom_call.1} parent=51 // pred_fallthru
          _
        // Predicated region
        $region69: #{tpu_custom_call.1} parent=51 // pred_check
          %p366 = pneg %p152
        $region70: #{tpu_custom_call.1} parent=51 // pred_check_branch
          %368 = sbr.rel (%p366) target = $region72
        $region71: #{tpu_custom_call.1} parent=51 // pred_region
          %370 = dma.done [#allocation10], 32
        $region72: #{tpu_custom_call.1} parent=51 // pred_fallthru
          _
        // Predicated region
        $region73: #{tpu_custom_call.1} parent=51 // pred_check
          %p371 = pneg %p173
        $region74: #{tpu_custom_call.1} parent=51 // pred_check_branch
          %373 = sbr.rel (%p371) target = $region76
        $region75: #{tpu_custom_call.1} parent=51 // pred_region
          %375 = dma.done [#allocation13], 65536
        $region76: #{tpu_custom_call.1} parent=51 // pred_fallthru
          _
        // Predicated region
        $region77: #{tpu_custom_call.1} parent=51 // pred_check
          %p376 = pneg %p194
        $region78: #{tpu_custom_call.1} parent=51 // pred_check_branch
          %378 = sbr.rel (%p376) target = $region80
        $region79: #{tpu_custom_call.1} parent=51 // pred_region
          %380 = dma.done [#allocation13], 16
        $region80: #{tpu_custom_call.1} parent=51 // pred_fallthru
          _
        %p381 = scmp.lt.s32.totalorder %s26, 1
        %s382 = scalar_select %p381, %s26, 1
        %s383 = smul.addr %s382, 5
        %s384 = smul.addr %s383, 8
        %s385 = scalar_lea.vmem %s0, %s384
        %p386 = pneg %p47
        %p387 = pneg %p44
        %p388 = pneg %p68
        %p389 = pneg %p65
        %p390 = pneg %p89
        %p391 = pneg %p86
        %p392 = pneg %p110
        %p393 = pneg %p107
        %p394 = pneg %p131
        %p395 = pneg %p128
        %p396 = pneg %p152
        %p397 = pneg %p149
        %p398 = pneg %p173
        %p399 = pneg %p170
        %p400 = pneg %p194
        %p401 = pneg %p191
        %p402 = pneg %p220
        %p403 = pneg %p217
        %s404 = sand.u32 %s207, 1
        %s405 = scalar_lea.sflag [#allocation5], %s404
        %s406 = sand.u32 %s207, 1
        %s407 = scalar_lea.vmem [#allocation15], %s406
        %p408 = scmp.lt.s32.totalorder %s26, 1
        %s409 = scalar_select %p408, %s26, 1
        %s410 = smul.addr %s409, 5
        %s411 = smul.addr %s410, 8
        %s412 = scalar_lea.vmem %s0, %s411
        %413 = vst [vmem:[#allocation2] sm:$0xff] 0.0
        %vm414 = vcmask 64512
        %415 = vst.msk [vmem:[#allocation2 + $0x8] sm:$0xff] %vm414, 0.0
        %416 = vst [vmem:[#allocation2 + $0x10] sm:$0xff] 0.0
        %417 = vst.msk [vmem:[#allocation2 + $0x18] sm:$0xff] %vm414, 0.0
        %418 = vst [vmem:[#allocation2 + $0x20] sm:$0xff] 0.0
        %419 = vst.msk [vmem:[#allocation2 + $0x28] sm:$0xff] %vm414, 0.0
        %420 = vst [vmem:[#allocation2 + $0x30] sm:$0xff] 0.0
        %421 = vst.msk [vmem:[#allocation2 + $0x38] sm:$0xff] %vm414, 0.0
        %422 = vst [vmem:[#allocation2 + $0x40] sm:$0x3] 0.0
        %vm423 = vcmask 58368
        %424 = vst.msk [vmem:[#allocation2 + $0x48] sm:$0x3] %vm423, 0.0
        %v425 = vld [vmem:[%s412] sm:$0xff]
        %v426 = vld [vmem:[%s412 + $0x8] sm:$0xff]
        %v427 = vld [vmem:[%s412 + $0x10] sm:$0xff]
        %v428 = vld [vmem:[%s412 + $0x18] sm:$0xff]
        %v429 = vld [vmem:[#allocation3] sm:$0xff]
        %v430 = vld [vmem:[#allocation3 + $0x8] sm:$0xff]
        %v431 = vld [vmem:[#allocation3 + $0x10] sm:$0xff]
        %v432 = vld [vmem:[#allocation3 + $0x18] sm:$0xff]
        %v433 = vld [vmem:[#allocation3 + $0x20] sm:$0xff]
        %v434 = vld [vmem:[#allocation3 + $0x28] sm:$0xff]
        %v435 = vld [vmem:[#allocation3 + $0x30] sm:$0xff]
        %v436 = vld [vmem:[#allocation3 + $0x38] sm:$0xff]
        %v437 = vld [vmem:[#allocation3 + $0x40] sm:$0xff]
        %v438 = vld [vmem:[#allocation3 + $0x48] sm:$0xff]
        %v439 = vld [vmem:[#allocation3 + $0x50] sm:$0xff]
        %v440 = vld [vmem:[#allocation3 + $0x58] sm:$0xff]
        %s441 = scalar_lea.vmem [#allocation3], 96
        %v442 = vld [vmem:[%s441] sm:$0xff]
        %v443 = vld [vmem:[%s441 + $0x8] sm:$0xff]
        %v444 = vld [vmem:[%s441 + $0x10] sm:$0xff]
        %v445 = vld [vmem:[%s441 + $0x18] sm:$0xff]
        %v446 = vld [vmem:[%s441 + $0x20] sm:$0xff]
        %v447 = vld [vmem:[%s441 + $0x28] sm:$0xff]
        %v448 = vld [vmem:[%s441 + $0x30] sm:$0xff]
        %v449 = vld [vmem:[%s441 + $0x38] sm:$0xff]
        %v450 = vld [vmem:[%s441 + $0x40] sm:$0xff]
        %v451 = vld [vmem:[%s441 + $0x48] sm:$0xff]
        %v452 = vld [vmem:[%s441 + $0x50] sm:$0xff]
        %v453 = vld [vmem:[%s441 + $0x58] sm:$0xff]
        %458 = vrot.lane.b32.xlu0 %v425, 125
        %v459 = vpop.permute.xlu0 %458
        %460 = vrot.lane.b32.xlu0 %v426, 125
        %v461 = vpop.permute.xlu0 %460
        %462 = vrot.lane.b32.xlu0 %v427, 125
        %v463 = vpop.permute.xlu0 %462
        %464 = vrot.lane.b32.xlu0 %v428, 125
        %v465 = vpop.permute.xlu0 %464
        %vm466 = vcmask 785408
        %v467 = vsel %vm466, %v459, 0
        %v469 = vsel %vm466, %v461, 0
        %v471 = vsel %vm466, %v463, 0
        %v473 = vsel %vm466, %v465, 0
        %475 = vmatpush.msra.mxu0 0.0
        %476 = vmatpush.msra.mxu0 0.0
        %477 = vmatpush.msra.mxu0 0.0
        %478 = vmatpush.msra.mxu0 0.0
        %479 = vmatpush.msra.mxu0 %v453
        %480 = vmatpush.msra.mxu0 %v452
        %481 = vmatpush.msra.mxu0 %v451
        %482 = vmatpush.msra.mxu0 %v450
        %483 = vmatpush.msra.mxu0 %v449
        %484 = vmatpush.msra.mxu0 %v448
        %485 = vmatpush.msra.mxu0 %v447
        %486 = vmatpush.msra.mxu0 %v446
        %487 = vmatpush.msra.mxu0 %v445
        %488 = vmatpush.msra.mxu0 %v444
        %489 = vmatpush.msra.mxu0 %v443
        %490 = vmatpush.msra.mxu0 %v442
        %491 = vmatmul.f32.gmra.mxu0 %v467
        %v492 = vpop.f32.mrf.mxu0
        %v493 = vadd.f32 0.0, %v492
        %494 = vmatmul.f32.gmra.mxu0 %v469
        %v495 = vpop.f32.mrf.mxu0
        %v496 = vadd.f32 0.0, %v495
        %497 = vmatmul.f32.gmra.mxu0 %v471
        %v498 = vpop.f32.mrf.mxu0
        %v499 = vadd.f32 0.0, %v498
        %500 = vmatmul.f32.gmra.mxu0 %v473
        %v501 = vpop.f32.mrf.mxu0
        %v502 = vadd.f32 0.0, %v501
        %503 = vdwg.mxu0
        %v504 = vsel %vm466, %v425, 0
        %v506 = vsel %vm466, %v426, 0
        %v508 = vsel %vm466, %v427, 0
        %v510 = vsel %vm466, %v428, 0
        %512 = vmatpush.msra.mxu0 0.0
        %513 = vmatpush.msra.mxu0 0.0
        %514 = vmatpush.msra.mxu0 0.0
        %515 = vmatpush.msra.mxu0 0.0
        %516 = vmatpush.msra.mxu0 %v440
        %517 = vmatpush.msra.mxu0 %v439
        %518 = vmatpush.msra.mxu0 %v438
        %519 = vmatpush.msra.mxu0 %v437
        %520 = vmatpush.msra.mxu0 %v436
        %521 = vmatpush.msra.mxu0 %v435
        %522 = vmatpush.msra.mxu0 %v434
        %523 = vmatpush.msra.mxu0 %v433
        %524 = vmatpush.msra.mxu0 %v432
        %525 = vmatpush.msra.mxu0 %v431
        %526 = vmatpush.msra.mxu0 %v430
        %527 = vmatpush.msra.mxu0 %v429
        %528 = vmatmul.f32.gmra.mxu0 %v504
        %v529 = vpop.f32.mrf.mxu0
        %v530 = vadd.f32 %v493, %v529
        %531 = vmatmul.f32.gmra.mxu0 %v506
        %v532 = vpop.f32.mrf.mxu0
        %v533 = vadd.f32 %v496, %v532
        %534 = vmatmul.f32.gmra.mxu0 %v508
        %v535 = vpop.f32.mrf.mxu0
        %v536 = vadd.f32 %v499, %v535
        %537 = vmatmul.f32.gmra.mxu0 %v510
        %v538 = vpop.f32.mrf.mxu0
        %v539 = vadd.f32 %v502, %v538
        %540 = vdwg.mxu0
        %s541 = scalar_lea.vmem [#allocation3], 192
        %v542 = vld [vmem:[%s541] sm:$0xff]
        %v543 = vld [vmem:[%s541 + $0x8] sm:$0xff]
        %v544 = vld [vmem:[%s541 + $0x10] sm:$0xff]
        %v545 = vld [vmem:[%s541 + $0x18] sm:$0xff]
        %v546 = vld [vmem:[%s541 + $0x20] sm:$0xff]
        %v547 = vld [vmem:[%s541 + $0x28] sm:$0xff]
        %v548 = vld [vmem:[%s541 + $0x30] sm:$0xff]
        %v549 = vld [vmem:[%s541 + $0x38] sm:$0xff]
        %v550 = vld [vmem:[%s541 + $0x40] sm:$0xff]
        %v551 = vld [vmem:[%s541 + $0x48] sm:$0xff]
        %v552 = vld [vmem:[%s541 + $0x50] sm:$0xff]
        %v553 = vld [vmem:[%s541 + $0x58] sm:$0xff]
        %554 = vrot.lane.b32.xlu0 %v425, 122
        %v555 = vpop.permute.xlu0 %554
        %556 = vrot.lane.b32.xlu0 %v426, 122
        %v557 = vpop.permute.xlu0 %556
        %558 = vrot.lane.b32.xlu0 %v427, 122
        %v559 = vpop.permute.xlu0 %558
        %560 = vrot.lane.b32.xlu0 %v428, 122
        %v561 = vpop.permute.xlu0 %560
        %v562 = vsel %vm466, %v555, 0
        %v564 = vsel %vm466, %v557, 0
        %v566 = vsel %vm466, %v559, 0
        %v568 = vsel %vm466, %v561, 0
        %570 = vmatpush.msra.mxu0 0.0
        %571 = vmatpush.msra.mxu0 0.0
        %572 = vmatpush.msra.mxu0 0.0
        %573 = vmatpush.msra.mxu0 0.0
        %574 = vmatpush.msra.mxu0 %v553
        %575 = vmatpush.msra.mxu0 %v552
        %576 = vmatpush.msra.mxu0 %v551
        %577 = vmatpush.msra.mxu0 %v550
        %578 = vmatpush.msra.mxu0 %v549
        %579 = vmatpush.msra.mxu0 %v548
        %580 = vmatpush.msra.mxu0 %v547
        %581 = vmatpush.msra.mxu0 %v546
        %582 = vmatpush.msra.mxu0 %v545
        %583 = vmatpush.msra.mxu0 %v544
        %584 = vmatpush.msra.mxu0 %v543
        %585 = vmatpush.msra.mxu0 %v542
        %586 = vmatmul.f32.gmra.mxu0 %v562
        %v587 = vpop.f32.mrf.mxu0
        %v588 = vadd.f32 0.0, %v587
        %589 = vmatmul.f32.gmra.mxu0 %v564
        %v590 = vpop.f32.mrf.mxu0
        %v591 = vadd.f32 0.0, %v590
        %592 = vmatmul.f32.gmra.mxu0 %v566
        %v593 = vpop.f32.mrf.mxu0
        %v594 = vadd.f32 0.0, %v593
        %595 = vmatmul.f32.gmra.mxu0 %v568
        %v596 = vpop.f32.mrf.mxu0
        %v597 = vadd.f32 0.0, %v596
        %598 = vdwg.mxu0
        %v599 = vadd.f32 %v530, %v588
        %v600 = vadd.f32 %v533, %v591
        %v601 = vadd.f32 %v536, %v594
        %v602 = vadd.f32 %v539, %v597
        %v603 = vld [vmem:[%s412 + $0x1] sm:$0xff]
        %v604 = vld [vmem:[%s412 + $0x9] sm:$0xff]
        %v605 = vld [vmem:[%s412 + $0x11] sm:$0xff]
        %v606 = vld [vmem:[%s412 + $0x19] sm:$0xff]
        %s607 = scalar_lea.vmem [#allocation3], 288
        %v608 = vld [vmem:[%s607] sm:$0xff]
        %v609 = vld [vmem:[%s607 + $0x8] sm:$0xff]
        %v610 = vld [vmem:[%s607 + $0x10] sm:$0xff]
        %v611 = vld [vmem:[%s607 + $0x18] sm:$0xff]
        %v612 = vld [vmem:[%s607 + $0x20] sm:$0xff]
        %v613 = vld [vmem:[%s607 + $0x28] sm:$0xff]
        %v614 = vld [vmem:[%s607 + $0x30] sm:$0xff]
        %v615 = vld [vmem:[%s607 + $0x38] sm:$0xff]
        %v616 = vld [vmem:[%s607 + $0x40] sm:$0xff]
        %v617 = vld [vmem:[%s607 + $0x48] sm:$0xff]
        %v618 = vld [vmem:[%s607 + $0x50] sm:$0xff]
        %v619 = vld [vmem:[%s607 + $0x58] sm:$0xff]
        %v621 = vsel %vm466, %v603, 0
        %v624 = vsel %vm466, %v604, 0
        %v627 = vsel %vm466, %v605, 0
        %v630 = vsel %vm466, %v606, 0
        %632 = vmatpush.msra.mxu0 0.0
        %633 = vmatpush.msra.mxu0 0.0
        %634 = vmatpush.msra.mxu0 0.0
        %635 = vmatpush.msra.mxu0 0.0
        %636 = vmatpush.msra.mxu0 %v619
        %637 = vmatpush.msra.mxu0 %v618
        %638 = vmatpush.msra.mxu0 %v617
        %639 = vmatpush.msra.mxu0 %v616
        %640 = vmatpush.msra.mxu0 %v615
        %641 = vmatpush.msra.mxu0 %v614
        %642 = vmatpush.msra.mxu0 %v613
        %643 = vmatpush.msra.mxu0 %v612
        %644 = vmatpush.msra.mxu0 %v611
        %645 = vmatpush.msra.mxu0 %v610
        %646 = vmatpush.msra.mxu0 %v609
        %647 = vmatpush.msra.mxu0 %v608
        %648 = vmatmul.f32.gmra.mxu0 %v621
        %v649 = vpop.f32.mrf.mxu0
        %v650 = vadd.f32 0.0, %v649
        %651 = vmatmul.f32.gmra.mxu0 %v624
        %v652 = vpop.f32.mrf.mxu0
        %v653 = vadd.f32 0.0, %v652
        %654 = vmatmul.f32.gmra.mxu0 %v627
        %v655 = vpop.f32.mrf.mxu0
        %v656 = vadd.f32 0.0, %v655
        %657 = vmatmul.f32.gmra.mxu0 %v630
        %v658 = vpop.f32.mrf.mxu0
        %v659 = vadd.f32 0.0, %v658
        %660 = vdwg.mxu0
        %v661 = vadd.f32 %v599, %v650
        %v662 = vadd.f32 %v600, %v653
        %v663 = vadd.f32 %v601, %v656
        %v664 = vadd.f32 %v602, %v659
        %s665 = scalar_lea.vmem [#allocation3], 384
        %v666 = vld [vmem:[%s665] sm:$0xff]
        %v667 = vld [vmem:[%s665 + $0x8] sm:$0xff]
        %v668 = vld [vmem:[%s665 + $0x10] sm:$0xff]
        %v669 = vld [vmem:[%s665 + $0x18] sm:$0xff]
        %v670 = vld [vmem:[%s665 + $0x20] sm:$0xff]
        %v671 = vld [vmem:[%s665 + $0x28] sm:$0xff]
        %v672 = vld [vmem:[%s665 + $0x30] sm:$0xff]
        %v673 = vld [vmem:[%s665 + $0x38] sm:$0xff]
        %v674 = vld [vmem:[%s665 + $0x40] sm:$0xff]
        %v675 = vld [vmem:[%s665 + $0x48] sm:$0xff]
        %v676 = vld [vmem:[%s665 + $0x50] sm:$0xff]
        %v677 = vld [vmem:[%s665 + $0x58] sm:$0xff]
        %678 = vrot.lane.b32.xlu0 %v603, 125
        %v679 = vpop.permute.xlu0 %678
        %680 = vrot.lane.b32.xlu0 %v604, 125
        %v681 = vpop.permute.xlu0 %680
        %682 = vrot.lane.b32.xlu0 %v605, 125
        %v683 = vpop.permute.xlu0 %682
        %684 = vrot.lane.b32.xlu0 %v606, 125
        %v685 = vpop.permute.xlu0 %684
        %v686 = vsel %vm466, %v679, 0
        %v688 = vsel %vm466, %v681, 0
        %v690 = vsel %vm466, %v683, 0
        %v692 = vsel %vm466, %v685, 0
        %694 = vmatpush.msra.mxu0 0.0
        %695 = vmatpush.msra.mxu0 0.0
        %696 = vmatpush.msra.mxu0 0.0
        %697 = vmatpush.msra.mxu0 0.0
        %698 = vmatpush.msra.mxu0 %v677
        %699 = vmatpush.msra.mxu0 %v676
        %700 = vmatpush.msra.mxu0 %v675
        %701 = vmatpush.msra.mxu0 %v674
        %702 = vmatpush.msra.mxu0 %v673
        %703 = vmatpush.msra.mxu0 %v672
        %704 = vmatpush.msra.mxu0 %v671
        %705 = vmatpush.msra.mxu0 %v670
        %706 = vmatpush.msra.mxu0 %v669
        %707 = vmatpush.msra.mxu0 %v668
        %708 = vmatpush.msra.mxu0 %v667
        %709 = vmatpush.msra.mxu0 %v666
        %710 = vmatmul.f32.gmra.mxu0 %v686
        %v711 = vpop.f32.mrf.mxu0
        %v712 = vadd.f32 0.0, %v711
        %713 = vmatmul.f32.gmra.mxu0 %v688
        %v714 = vpop.f32.mrf.mxu0
        %v715 = vadd.f32 0.0, %v714
        %716 = vmatmul.f32.gmra.mxu0 %v690
        %v717 = vpop.f32.mrf.mxu0
        %v718 = vadd.f32 0.0, %v717
        %719 = vmatmul.f32.gmra.mxu0 %v692
        %v720 = vpop.f32.mrf.mxu0
        %v721 = vadd.f32 0.0, %v720
        %722 = vdwg.mxu0
        %v723 = vadd.f32 %v661, %v712
        %v724 = vadd.f32 %v662, %v715
        %v725 = vadd.f32 %v663, %v718
        %v726 = vadd.f32 %v664, %v721
        %s727 = scalar_lea.vmem [#allocation3], 480
        %v728 = vld [vmem:[%s727] sm:$0xff]
        %v729 = vld [vmem:[%s727 + $0x8] sm:$0xff]
        %v730 = vld [vmem:[%s727 + $0x10] sm:$0xff]
        %v731 = vld [vmem:[%s727 + $0x18] sm:$0xff]
        %v732 = vld [vmem:[%s727 + $0x20] sm:$0xff]
        %v733 = vld [vmem:[%s727 + $0x28] sm:$0xff]
        %v734 = vld [vmem:[%s727 + $0x30] sm:$0xff]
        %v735 = vld [vmem:[%s727 + $0x38] sm:$0xff]
        %v736 = vld [vmem:[%s727 + $0x40] sm:$0xff]
        %v737 = vld [vmem:[%s727 + $0x48] sm:$0xff]
        %v738 = vld [vmem:[%s727 + $0x50] sm:$0xff]
        %v739 = vld [vmem:[%s727 + $0x58] sm:$0xff]
        %740 = vrot.lane.b32.xlu0 %v603, 122
        %v741 = vpop.permute.xlu0 %740
        %742 = vrot.lane.b32.xlu0 %v604, 122
        %v743 = vpop.permute.xlu0 %742
        %744 = vrot.lane.b32.xlu0 %v605, 122
        %v745 = vpop.permute.xlu0 %744
        %746 = vrot.lane.b32.xlu0 %v606, 122
        %v747 = vpop.permute.xlu0 %746
        %v748 = vsel %vm466, %v741, 0
        %v750 = vsel %vm466, %v743, 0
        %v752 = vsel %vm466, %v745, 0
        %v754 = vsel %vm466, %v747, 0
        %756 = vmatpush.msra.mxu0 0.0
        %757 = vmatpush.msra.mxu0 0.0
        %758 = vmatpush.msra.mxu0 0.0
        %759 = vmatpush.msra.mxu0 0.0
        %760 = vmatpush.msra.mxu0 %v739
        %761 = vmatpush.msra.mxu0 %v738
        %762 = vmatpush.msra.mxu0 %v737
        %763 = vmatpush.msra.mxu0 %v736
        %764 = vmatpush.msra.mxu0 %v735
        %765 = vmatpush.msra.mxu0 %v734
        %766 = vmatpush.msra.mxu0 %v733
        %767 = vmatpush.msra.mxu0 %v732
        %768 = vmatpush.msra.mxu0 %v731
        %769 = vmatpush.msra.mxu0 %v730
        %770 = vmatpush.msra.mxu0 %v729
        %771 = vmatpush.msra.mxu0 %v728
        %772 = vmatmul.f32.gmra.mxu0 %v748
        %v773 = vpop.f32.mrf.mxu0
        %v774 = vadd.f32 0.0, %v773
        %775 = vmatmul.f32.gmra.mxu0 %v750
        %v776 = vpop.f32.mrf.mxu0
        %v777 = vadd.f32 0.0, %v776
        %778 = vmatmul.f32.gmra.mxu0 %v752
        %v779 = vpop.f32.mrf.mxu0
        %v780 = vadd.f32 0.0, %v779
        %781 = vmatmul.f32.gmra.mxu0 %v754
        %v782 = vpop.f32.mrf.mxu0
        %v783 = vadd.f32 0.0, %v782
        %784 = vdwg.mxu0
        %v785 = vadd.f32 %v723, %v774
        %v786 = vadd.f32 %v724, %v777
        %v787 = vadd.f32 %v725, %v780
        %v788 = vadd.f32 %v726, %v783
        %v789 = vld [vmem:[%s412 + $0x2] sm:$0xff]
        %v790 = vld [vmem:[%s412 + $0xa] sm:$0xff]
        %v791 = vld [vmem:[%s412 + $0x12] sm:$0xff]
        %v792 = vld [vmem:[%s412 + $0x1a] sm:$0xff]
        %s793 = scalar_lea.vmem [#allocation3], 576
        %v794 = vld [vmem:[%s793] sm:$0xff]
        %v795 = vld [vmem:[%s793 + $0x8] sm:$0xff]
        %v796 = vld [vmem:[%s793 + $0x10] sm:$0xff]
        %v797 = vld [vmem:[%s793 + $0x18] sm:$0xff]
        %v798 = vld [vmem:[%s793 + $0x20] sm:$0xff]
        %v799 = vld [vmem:[%s793 + $0x28] sm:$0xff]
        %v800 = vld [vmem:[%s793 + $0x30] sm:$0xff]
        %v801 = vld [vmem:[%s793 + $0x38] sm:$0xff]
        %v802 = vld [vmem:[%s793 + $0x40] sm:$0xff]
        %v803 = vld [vmem:[%s793 + $0x48] sm:$0xff]
        %v804 = vld [vmem:[%s793 + $0x50] sm:$0xff]
        %v805 = vld [vmem:[%s793 + $0x58] sm:$0xff]
        %v807 = vsel %vm466, %v789, 0
        %v810 = vsel %vm466, %v790, 0
        %v813 = vsel %vm466, %v791, 0
        %v816 = vsel %vm466, %v792, 0
        %818 = vmatpush.msra.mxu0 0.0
        %819 = vmatpush.msra.mxu0 0.0
        %820 = vmatpush.msra.mxu0 0.0
        %821 = vmatpush.msra.mxu0 0.0
        %822 = vmatpush.msra.mxu0 %v805
        %823 = vmatpush.msra.mxu0 %v804
        %824 = vmatpush.msra.mxu0 %v803
        %825 = vmatpush.msra.mxu0 %v802
        %826 = vmatpush.msra.mxu0 %v801
        %827 = vmatpush.msra.mxu0 %v800
        %828 = vmatpush.msra.mxu0 %v799
        %829 = vmatpush.msra.mxu0 %v798
        %830 = vmatpush.msra.mxu0 %v797
        %831 = vmatpush.msra.mxu0 %v796
        %832 = vmatpush.msra.mxu0 %v795
        %833 = vmatpush.msra.mxu0 %v794
        %834 = vmatmul.f32.gmra.mxu0 %v807
        %v835 = vpop.f32.mrf.mxu0
        %v836 = vadd.f32 0.0, %v835
        %837 = vmatmul.f32.gmra.mxu0 %v810
        %v838 = vpop.f32.mrf.mxu0
        %v839 = vadd.f32 0.0, %v838
        %840 = vmatmul.f32.gmra.mxu0 %v813
        %v841 = vpop.f32.mrf.mxu0
        %v842 = vadd.f32 0.0, %v841
        %843 = vmatmul.f32.gmra.mxu0 %v816
        %v844 = vpop.f32.mrf.mxu0
        %v845 = vadd.f32 0.0, %v844
        %846 = vdwg.mxu0
        %v847 = vadd.f32 %v785, %v836
        %v848 = vadd.f32 %v786, %v839
        %v849 = vadd.f32 %v787, %v842
        %v850 = vadd.f32 %v788, %v845
        %s851 = scalar_lea.vmem [#allocation3], 672
        %v852 = vld [vmem:[%s851] sm:$0xff]
        %v853 = vld [vmem:[%s851 + $0x8] sm:$0xff]
        %v854 = vld [vmem:[%s851 + $0x10] sm:$0xff]
        %v855 = vld [vmem:[%s851 + $0x18] sm:$0xff]
        %v856 = vld [vmem:[%s851 + $0x20] sm:$0xff]
        %v857 = vld [vmem:[%s851 + $0x28] sm:$0xff]
        %v858 = vld [vmem:[%s851 + $0x30] sm:$0xff]
        %v859 = vld [vmem:[%s851 + $0x38] sm:$0xff]
        %v860 = vld [vmem:[%s851 + $0x40] sm:$0xff]
        %v861 = vld [vmem:[%s851 + $0x48] sm:$0xff]
        %v862 = vld [vmem:[%s851 + $0x50] sm:$0xff]
        %v863 = vld [vmem:[%s851 + $0x58] sm:$0xff]
        %864 = vrot.lane.b32.xlu0 %v789, 125
        %v865 = vpop.permute.xlu0 %864
        %866 = vrot.lane.b32.xlu0 %v790, 125
        %v867 = vpop.permute.xlu0 %866
        %868 = vrot.lane.b32.xlu0 %v791, 125
        %v869 = vpop.permute.xlu0 %868
        %870 = vrot.lane.b32.xlu0 %v792, 125
        %v871 = vpop.permute.xlu0 %870
        %v872 = vsel %vm466, %v865, 0
        %v874 = vsel %vm466, %v867, 0
        %v876 = vsel %vm466, %v869, 0
        %v878 = vsel %vm466, %v871, 0
        %880 = vmatpush.msra.mxu0 0.0
        %881 = vmatpush.msra.mxu0 0.0
        %882 = vmatpush.msra.mxu0 0.0
        %883 = vmatpush.msra.mxu0 0.0
        %884 = vmatpush.msra.mxu0 %v863
        %885 = vmatpush.msra.mxu0 %v862
        %886 = vmatpush.msra.mxu0 %v861
        %887 = vmatpush.msra.mxu0 %v860
        %888 = vmatpush.msra.mxu0 %v859
        %889 = vmatpush.msra.mxu0 %v858
        %890 = vmatpush.msra.mxu0 %v857
        %891 = vmatpush.msra.mxu0 %v856
        %892 = vmatpush.msra.mxu0 %v855
        %893 = vmatpush.msra.mxu0 %v854
        %894 = vmatpush.msra.mxu0 %v853
        %895 = vmatpush.msra.mxu0 %v852
        %896 = vmatmul.f32.gmra.mxu0 %v872
        %v897 = vpop.f32.mrf.mxu0
        %v898 = vadd.f32 0.0, %v897
        %899 = vmatmul.f32.gmra.mxu0 %v874
        %v900 = vpop.f32.mrf.mxu0
        %v901 = vadd.f32 0.0, %v900
        %902 = vmatmul.f32.gmra.mxu0 %v876
        %v903 = vpop.f32.mrf.mxu0
        %v904 = vadd.f32 0.0, %v903
        %905 = vmatmul.f32.gmra.mxu0 %v878
        %v906 = vpop.f32.mrf.mxu0
        %v907 = vadd.f32 0.0, %v906
        %908 = vdwg.mxu0
        %v909 = vadd.f32 %v847, %v898
        %v910 = vadd.f32 %v848, %v901
        %v911 = vadd.f32 %v849, %v904
        %v912 = vadd.f32 %v850, %v907
        %s913 = scalar_lea.vmem [#allocation3], 768
        %v914 = vld [vmem:[%s913] sm:$0xff]
        %v915 = vld [vmem:[%s913 + $0x8] sm:$0xff]
        %v916 = vld [vmem:[%s913 + $0x10] sm:$0xff]
        %v917 = vld [vmem:[%s913 + $0x18] sm:$0xff]
        %v918 = vld [vmem:[%s913 + $0x20] sm:$0xff]
        %v919 = vld [vmem:[%s913 + $0x28] sm:$0xff]
        %v920 = vld [vmem:[%s913 + $0x30] sm:$0xff]
        %v921 = vld [vmem:[%s913 + $0x38] sm:$0xff]
        %v922 = vld [vmem:[%s913 + $0x40] sm:$0xff]
        %v923 = vld [vmem:[%s913 + $0x48] sm:$0xff]
        %v924 = vld [vmem:[%s913 + $0x50] sm:$0xff]
        %v925 = vld [vmem:[%s913 + $0x58] sm:$0xff]
        %926 = vrot.lane.b32.xlu0 %v789, 122
        %v927 = vpop.permute.xlu0 %926
        %928 = vrot.lane.b32.xlu0 %v790, 122
        %v929 = vpop.permute.xlu0 %928
        %930 = vrot.lane.b32.xlu0 %v791, 122
        %v931 = vpop.permute.xlu0 %930
        %932 = vrot.lane.b32.xlu0 %v792, 122
        %v933 = vpop.permute.xlu0 %932
        %v934 = vsel %vm466, %v927, 0
        %v936 = vsel %vm466, %v929, 0
        %v938 = vsel %vm466, %v931, 0
        %v940 = vsel %vm466, %v933, 0
        %942 = vmatpush.msra.mxu0 0.0
        %943 = vmatpush.msra.mxu0 0.0
        %944 = vmatpush.msra.mxu0 0.0
        %945 = vmatpush.msra.mxu0 0.0
        %946 = vmatpush.msra.mxu0 %v925
        %947 = vmatpush.msra.mxu0 %v924
        %948 = vmatpush.msra.mxu0 %v923
        %949 = vmatpush.msra.mxu0 %v922
        %950 = vmatpush.msra.mxu0 %v921
        %951 = vmatpush.msra.mxu0 %v920
        %952 = vmatpush.msra.mxu0 %v919
        %953 = vmatpush.msra.mxu0 %v918
        %954 = vmatpush.msra.mxu0 %v917
        %955 = vmatpush.msra.mxu0 %v916
        %956 = vmatpush.msra.mxu0 %v915
        %957 = vmatpush.msra.mxu0 %v914
        %958 = vmatmul.f32.gmra.mxu0 %v934
        %v959 = vpop.f32.mrf.mxu0
        %v960 = vadd.f32 0.0, %v959
        %961 = vmatmul.f32.gmra.mxu0 %v936
        %v962 = vpop.f32.mrf.mxu0
        %v963 = vadd.f32 0.0, %v962
        %964 = vmatmul.f32.gmra.mxu0 %v938
        %v965 = vpop.f32.mrf.mxu0
        %v966 = vadd.f32 0.0, %v965
        %967 = vmatmul.f32.gmra.mxu0 %v940
        %v968 = vpop.f32.mrf.mxu0
        %v969 = vadd.f32 0.0, %v968
        %970 = vdwg.mxu0
        %v971 = vadd.f32 %v909, %v960
        %v972 = vadd.f32 %v910, %v963
        %v973 = vadd.f32 %v911, %v966
        %v974 = vadd.f32 %v912, %v969
        %v975 = vld [vmem:[#allocation6] sm:$0x1]
        %v977 = vperm.slane %v975, 0
        %v979 = vmul.f32 %v971, %v977
        %v980 = vmul.f32 %v972, %v977
        %v981 = vmul.f32 %v973, %v977
        %v982 = vmul.f32 %v974, %v977
        %v983 = vld [vmem:[#allocation8] sm:$0x1]
        %v985 = vperm.slane %v983, 0
        %v987 = vadd.f32 %v979, %v985
        %v988 = vadd.f32 %v980, %v985
        %v989 = vadd.f32 %v981, %v985
        %v990 = vadd.f32 %v982, %v985
        %vm995 = vcmask 1040384
        %v996 = vrot.slane %v987, 7
        %v997 = vrot.slane %v988, 7
        %v998 = vsel %vm995, %v996, %v997
        %v999 = vrot.slane %v989, 7
        %v1000 = vsel %vm995, %v997, %v999
        %v1001 = vrot.slane %v990, 7
        %v1002 = vsel %vm995, %v999, %v1001
        %1003 = vrot.lane.b32.xlu0 %v996, 4
        %v1004 = vpop.permute.xlu0 %1003
        %1005 = vrot.lane.b32.xlu0 %v998, 4
        %v1006 = vpop.permute.xlu0 %1005
        %1007 = vrot.lane.b32.xlu0 %v1000, 4
        %v1008 = vpop.permute.xlu0 %1007
        %1009 = vrot.lane.b32.xlu0 %v1002, 4
        %v1010 = vpop.permute.xlu0 %1009
        %1011 = vrot.lane.b32.xlu0 %v1001, 4
        %v1012 = vpop.permute.xlu0 %1011
        %vm1018 = vcmask 1047585
        %1019 = vst.msk [vmem:[#allocation2] sm:$0xfe] %vm1018, %v1004
        %vm1020 = vcmask 31745
        %1021 = vst.msk [vmem:[#allocation2 + $0x8] sm:$0xfe] %vm1020, %v1004
        %vm1022 = vcmask 1047584
        %1023 = vst.msk [vmem:[#allocation2 + $0x10] sm:$0xff] %vm1022, %v1006
        %vm1024 = vcmask 31744
        %1025 = vst.msk [vmem:[#allocation2 + $0x18] sm:$0xff] %vm1024, %v1006
        %1026 = vst.msk [vmem:[#allocation2 + $0x20] sm:$0xff] %vm1022, %v1008
        %1027 = vst.msk [vmem:[#allocation2 + $0x28] sm:$0xff] %vm1024, %v1008
        %1028 = vst.msk [vmem:[#allocation2 + $0x30] sm:$0xff] %vm1022, %v1010
        %1029 = vst.msk [vmem:[#allocation2 + $0x38] sm:$0xff] %vm1024, %v1010
        %vm1030 = vcmask 1040416
        %1031 = vst.msk [vmem:[#allocation2 + $0x40] sm:$0x1] %vm1030, %v1012
        %vm1032 = vcmask 24576
        %1033 = vst.msk [vmem:[#allocation2 + $0x48] sm:$0x1] %vm1032, %v1012
        %v1034 = vld [vmem:[#allocation2] sm:$0xff]
        %v1035 = vld [vmem:[#allocation2 + $0x10] sm:$0xff]
        %v1036 = vld [vmem:[#allocation2 + $0x20] sm:$0xff]
        %v1037 = vld [vmem:[#allocation2 + $0x30] sm:$0xff]
        %v1038 = vld [vmem:[#allocation9] sm:$0xff]
        %v1039 = vld [vmem:[#allocation9 + $0x8] sm:$0xff]
        %v1040 = vld [vmem:[#allocation9 + $0x10] sm:$0xff]
        %v1041 = vld [vmem:[#allocation9 + $0x18] sm:$0xff]
        %v1042 = vld [vmem:[#allocation9 + $0x20] sm:$0xff]
        %v1043 = vld [vmem:[#allocation9 + $0x28] sm:$0xff]
        %v1044 = vld [vmem:[#allocation9 + $0x30] sm:$0xff]
        %v1045 = vld [vmem:[#allocation9 + $0x38] sm:$0xff]
        %v1046 = vld [vmem:[#allocation9 + $0x40] sm:$0xff]
        %v1047 = vld [vmem:[#allocation9 + $0x48] sm:$0xff]
        %v1048 = vld [vmem:[#allocation9 + $0x50] sm:$0xff]
        %v1049 = vld [vmem:[#allocation9 + $0x58] sm:$0xff]
        %v1050 = vld [vmem:[#allocation9 + $0x60] sm:$0xff]
        %v1051 = vld [vmem:[#allocation9 + $0x68] sm:$0xff]
        %v1052 = vld [vmem:[#allocation9 + $0x70] sm:$0xff]
        %v1053 = vld [vmem:[#allocation9 + $0x78] sm:$0xff]
        %v1054 = vld [vmem:[#allocation2 + $0x8] sm:$0xff]
        %v1055 = vld [vmem:[#allocation2 + $0x18] sm:$0xff]
        %v1056 = vld [vmem:[#allocation2 + $0x28] sm:$0xff]
        %v1057 = vld [vmem:[#allocation2 + $0x38] sm:$0xff]
        %s1058 = scalar_lea.vmem [#allocation9], 128
        %v1059 = vld [vmem:[%s1058] sm:$0xff]
        %v1060 = vld [vmem:[%s1058 + $0x8] sm:$0xff]
        %v1061 = vld [vmem:[%s1058 + $0x10] sm:$0xff]
        %v1062 = vld [vmem:[%s1058 + $0x18] sm:$0xff]
        %v1063 = vld [vmem:[%s1058 + $0x20] sm:$0xff]
        %v1064 = vld [vmem:[%s1058 + $0x28] sm:$0xff]
        %v1065 = vld [vmem:[%s1058 + $0x30] sm:$0xff]
        %v1066 = vld [vmem:[%s1058 + $0x38] sm:$0xff]
        %v1067 = vld [vmem:[%s1058 + $0x40] sm:$0xff]
        %v1068 = vld [vmem:[%s1058 + $0x48] sm:$0xff]
        %v1069 = vld [vmem:[%s1058 + $0x50] sm:$0xff]
        %v1070 = vld [vmem:[%s1058 + $0x58] sm:$0xff]
        %v1071 = vld [vmem:[%s1058 + $0x60] sm:$0xff]
        %v1072 = vld [vmem:[%s1058 + $0x68] sm:$0xff]
        %v1073 = vld [vmem:[%s1058 + $0x70] sm:$0xff]
        %v1074 = vld [vmem:[%s1058 + $0x78] sm:$0xff]
        %1083 = vrot.lane.b32.xlu0 %v1034, 124
        %v1084 = vpop.permute.xlu0 %1083
        %1085 = vrot.lane.b32.xlu0 %v1054, 124
        %v1086 = vpop.permute.xlu0 %1085
        %1087 = vrot.lane.b32.xlu0 %v1035, 124
        %v1088 = vpop.permute.xlu0 %1087
        %1089 = vrot.lane.b32.xlu0 %v1055, 124
        %v1090 = vpop.permute.xlu0 %1089
        %1091 = vrot.lane.b32.xlu0 %v1036, 124
        %v1092 = vpop.permute.xlu0 %1091
        %1093 = vrot.lane.b32.xlu0 %v1056, 124
        %v1094 = vpop.permute.xlu0 %1093
        %1095 = vrot.lane.b32.xlu0 %v1037, 124
        %v1096 = vpop.permute.xlu0 %1095
        %1097 = vrot.lane.b32.xlu0 %v1057, 124
        %v1098 = vpop.permute.xlu0 %1097
        %vm1099 = vcmask 1014784
        %v1100 = vsel %vm1099, %v1084, %v1086
        %v1101 = vsel %vm1099, %v1088, %v1090
        %v1102 = vsel %vm1099, %v1092, %v1094
        %v1103 = vsel %vm1099, %v1096, %v1098
        %1108 = vmatpush.msra.mxu0 %v1074
        %1109 = vmatpush.msra.mxu0 %v1073
        %1110 = vmatpush.msra.mxu0 %v1072
        %1111 = vmatpush.msra.mxu0 %v1071
        %1112 = vmatpush.msra.mxu0 %v1070
        %1113 = vmatpush.msra.mxu0 %v1069
        %1114 = vmatpush.msra.mxu0 %v1068
        %1115 = vmatpush.msra.mxu0 %v1067
        %1116 = vmatpush.msra.mxu0 %v1066
        %1117 = vmatpush.msra.mxu0 %v1065
        %1118 = vmatpush.msra.mxu0 %v1064
        %1119 = vmatpush.msra.mxu0 %v1063
        %1120 = vmatpush.msra.mxu0 %v1062
        %1121 = vmatpush.msra.mxu0 %v1061
        %1122 = vmatpush.msra.mxu0 %v1060
        %1123 = vmatpush.msra.mxu0 %v1059
        %1124 = vmatmul.f32.gmra.mxu0 %v1100
        %v1125 = vpop.f32.mrf.mxu0
        %v1126 = vadd.f32 0.0, %v1125
        %1127 = vmatmul.f32.gmra.mxu0 %v1101
        %v1128 = vpop.f32.mrf.mxu0
        %v1129 = vadd.f32 0.0, %v1128
        %1130 = vmatmul.f32.gmra.mxu0 %v1102
        %v1131 = vpop.f32.mrf.mxu0
        %v1132 = vadd.f32 0.0, %v1131
        %1133 = vmatmul.f32.gmra.mxu0 %v1103
        %v1134 = vpop.f32.mrf.mxu0
        %v1135 = vadd.f32 0.0, %v1134
        %1136 = vdwg.mxu0
        %1137 = vmatpush.msra.mxu0 %v1053
        %1138 = vmatpush.msra.mxu0 %v1052
        %1139 = vmatpush.msra.mxu0 %v1051
        %1140 = vmatpush.msra.mxu0 %v1050
        %1141 = vmatpush.msra.mxu0 %v1049
        %1142 = vmatpush.msra.mxu0 %v1048
        %1143 = vmatpush.msra.mxu0 %v1047
        %1144 = vmatpush.msra.mxu0 %v1046
        %1145 = vmatpush.msra.mxu0 %v1045
        %1146 = vmatpush.msra.mxu0 %v1044
        %1147 = vmatpush.msra.mxu0 %v1043
        %1148 = vmatpush.msra.mxu0 %v1042
        %1149 = vmatpush.msra.mxu0 %v1041
        %1150 = vmatpush.msra.mxu0 %v1040
        %1151 = vmatpush.msra.mxu0 %v1039
        %1152 = vmatpush.msra.mxu0 %v1038
        %1153 = vmatmul.f32.gmra.mxu0 %v1034
        %v1154 = vpop.f32.mrf.mxu0
        %v1155 = vadd.f32 %v1126, %v1154
        %1156 = vmatmul.f32.gmra.mxu0 %v1035
        %v1157 = vpop.f32.mrf.mxu0
        %v1158 = vadd.f32 %v1129, %v1157
        %1159 = vmatmul.f32.gmra.mxu0 %v1036
        %v1160 = vpop.f32.mrf.mxu0
        %v1161 = vadd.f32 %v1132, %v1160
        %1162 = vmatmul.f32.gmra.mxu0 %v1037
        %v1163 = vpop.f32.mrf.mxu0
        %v1164 = vadd.f32 %v1135, %v1163
        %1165 = vdwg.mxu0
        %s1166 = scalar_lea.vmem [#allocation9], 256
        %v1167 = vld [vmem:[%s1166] sm:$0xff]
        %v1168 = vld [vmem:[%s1166 + $0x8] sm:$0xff]
        %v1169 = vld [vmem:[%s1166 + $0x10] sm:$0xff]
        %v1170 = vld [vmem:[%s1166 + $0x18] sm:$0xff]
        %v1171 = vld [vmem:[%s1166 + $0x20] sm:$0xff]
        %v1172 = vld [vmem:[%s1166 + $0x28] sm:$0xff]
        %v1173 = vld [vmem:[%s1166 + $0x30] sm:$0xff]
        %v1174 = vld [vmem:[%s1166 + $0x38] sm:$0xff]
        %v1175 = vld [vmem:[%s1166 + $0x40] sm:$0xff]
        %v1176 = vld [vmem:[%s1166 + $0x48] sm:$0xff]
        %v1177 = vld [vmem:[%s1166 + $0x50] sm:$0xff]
        %v1178 = vld [vmem:[%s1166 + $0x58] sm:$0xff]
        %v1179 = vld [vmem:[%s1166 + $0x60] sm:$0xff]
        %v1180 = vld [vmem:[%s1166 + $0x68] sm:$0xff]
        %v1181 = vld [vmem:[%s1166 + $0x70] sm:$0xff]
        %v1182 = vld [vmem:[%s1166 + $0x78] sm:$0xff]
        %1183 = vrot.lane.b32.xlu0 %v1034, 120
        %v1184 = vpop.permute.xlu0 %1183
        %1185 = vrot.lane.b32.xlu0 %v1054, 120
        %v1186 = vpop.permute.xlu0 %1185
        %1187 = vrot.lane.b32.xlu0 %v1035, 120
        %v1188 = vpop.permute.xlu0 %1187
        %1189 = vrot.lane.b32.xlu0 %v1055, 120
        %v1190 = vpop.permute.xlu0 %1189
        %1191 = vrot.lane.b32.xlu0 %v1036, 120
        %v1192 = vpop.permute.xlu0 %1191
        %1193 = vrot.lane.b32.xlu0 %v1056, 120
        %v1194 = vpop.permute.xlu0 %1193
        %1195 = vrot.lane.b32.xlu0 %v1037, 120
        %v1196 = vpop.permute.xlu0 %1195
        %1197 = vrot.lane.b32.xlu0 %v1057, 120
        %v1198 = vpop.permute.xlu0 %1197
        %vm1199 = vcmask 982016
        %v1200 = vsel %vm1199, %v1184, %v1186
        %v1201 = vsel %vm1199, %v1188, %v1190
        %v1202 = vsel %vm1199, %v1192, %v1194
        %v1203 = vsel %vm1199, %v1196, %v1198
        %1208 = vmatpush.msra.mxu0 %v1182
        %1209 = vmatpush.msra.mxu0 %v1181
        %1210 = vmatpush.msra.mxu0 %v1180
        %1211 = vmatpush.msra.mxu0 %v1179
        %1212 = vmatpush.msra.mxu0 %v1178
        %1213 = vmatpush.msra.mxu0 %v1177
        %1214 = vmatpush.msra.mxu0 %v1176
        %1215 = vmatpush.msra.mxu0 %v1175
        %1216 = vmatpush.msra.mxu0 %v1174
        %1217 = vmatpush.msra.mxu0 %v1173
        %1218 = vmatpush.msra.mxu0 %v1172
        %1219 = vmatpush.msra.mxu0 %v1171
        %1220 = vmatpush.msra.mxu0 %v1170
        %1221 = vmatpush.msra.mxu0 %v1169
        %1222 = vmatpush.msra.mxu0 %v1168
        %1223 = vmatpush.msra.mxu0 %v1167
        %1224 = vmatmul.f32.gmra.mxu0 %v1200
        %v1225 = vpop.f32.mrf.mxu0
        %v1226 = vadd.f32 0.0, %v1225
        %1227 = vmatmul.f32.gmra.mxu0 %v1201
        %v1228 = vpop.f32.mrf.mxu0
        %v1229 = vadd.f32 0.0, %v1228
        %1230 = vmatmul.f32.gmra.mxu0 %v1202
        %v1231 = vpop.f32.mrf.mxu0
        %v1232 = vadd.f32 0.0, %v1231
        %1233 = vmatmul.f32.gmra.mxu0 %v1203
        %v1234 = vpop.f32.mrf.mxu0
        %v1235 = vadd.f32 0.0, %v1234
        %1236 = vdwg.mxu0
        %v1237 = vadd.f32 %v1155, %v1226
        %v1238 = vadd.f32 %v1158, %v1229
        %v1239 = vadd.f32 %v1161, %v1232
        %v1240 = vadd.f32 %v1164, %v1235
        %v1241 = vld [vmem:[#allocation2] sm:$0xfe]
        %v1242 = vld [vmem:[#allocation2 + $0x10] sm:$0xff]
        %v1243 = vld [vmem:[#allocation2 + $0x20] sm:$0xff]
        %v1244 = vld [vmem:[#allocation2 + $0x30] sm:$0xff]
        %v1245 = vld [vmem:[#allocation2 + $0x40] sm:$0x1]
        %s1246 = scalar_lea.vmem [#allocation9], 384
        %v1247 = vld [vmem:[%s1246] sm:$0xff]
        %v1248 = vld [vmem:[%s1246 + $0x8] sm:$0xff]
        %v1249 = vld [vmem:[%s1246 + $0x10] sm:$0xff]
        %v1250 = vld [vmem:[%s1246 + $0x18] sm:$0xff]
        %v1251 = vld [vmem:[%s1246 + $0x20] sm:$0xff]
        %v1252 = vld [vmem:[%s1246 + $0x28] sm:$0xff]
        %v1253 = vld [vmem:[%s1246 + $0x30] sm:$0xff]
        %v1254 = vld [vmem:[%s1246 + $0x38] sm:$0xff]
        %v1255 = vld [vmem:[%s1246 + $0x40] sm:$0xff]
        %v1256 = vld [vmem:[%s1246 + $0x48] sm:$0xff]
        %v1257 = vld [vmem:[%s1246 + $0x50] sm:$0xff]
        %v1258 = vld [vmem:[%s1246 + $0x58] sm:$0xff]
        %v1259 = vld [vmem:[%s1246 + $0x60] sm:$0xff]
        %v1260 = vld [vmem:[%s1246 + $0x68] sm:$0xff]
        %v1261 = vld [vmem:[%s1246 + $0x70] sm:$0xff]
        %v1262 = vld [vmem:[%s1246 + $0x78] sm:$0xff]
        %vm1268 = vcmask 1046528
        %v1269 = vrot.slane %v1241, 1
        %v1270 = vrot.slane %v1242, 1
        %v1271 = vsel %vm1268, %v1269, %v1270
        %v1272 = vrot.slane %v1243, 1
        %v1273 = vsel %vm1268, %v1270, %v1272
        %v1274 = vrot.slane %v1244, 1
        %v1275 = vsel %vm1268, %v1272, %v1274
        %v1276 = vrot.slane %v1245, 1
        %v1277 = vsel %vm1268, %v1274, %v1276
        %1282 = vmatpush.msra.mxu0 %v1262
        %1283 = vmatpush.msra.mxu0 %v1261
        %1284 = vmatpush.msra.mxu0 %v1260
        %1285 = vmatpush.msra.mxu0 %v1259
        %1286 = vmatpush.msra.mxu0 %v1258
        %1287 = vmatpush.msra.mxu0 %v1257
        %1288 = vmatpush.msra.mxu0 %v1256
        %1289 = vmatpush.msra.mxu0 %v1255
        %1290 = vmatpush.msra.mxu0 %v1254
        %1291 = vmatpush.msra.mxu0 %v1253
        %1292 = vmatpush.msra.mxu0 %v1252
        %1293 = vmatpush.msra.mxu0 %v1251
        %1294 = vmatpush.msra.mxu0 %v1250
        %1295 = vmatpush.msra.mxu0 %v1249
        %1296 = vmatpush.msra.mxu0 %v1248
        %1297 = vmatpush.msra.mxu0 %v1247
        %1298 = vmatmul.f32.gmra.mxu0 %v1271
        %v1299 = vpop.f32.mrf.mxu0
        %v1300 = vadd.f32 0.0, %v1299
        %1301 = vmatmul.f32.gmra.mxu0 %v1273
        %v1302 = vpop.f32.mrf.mxu0
        %v1303 = vadd.f32 0.0, %v1302
        %1304 = vmatmul.f32.gmra.mxu0 %v1275
        %v1305 = vpop.f32.mrf.mxu0
        %v1306 = vadd.f32 0.0, %v1305
        %1307 = vmatmul.f32.gmra.mxu0 %v1277
        %v1308 = vpop.f32.mrf.mxu0
        %v1309 = vadd.f32 0.0, %v1308
        %1310 = vdwg.mxu0
        %v1311 = vadd.f32 %v1237, %v1300
        %v1312 = vadd.f32 %v1238, %v1303
        %v1313 = vadd.f32 %v1239, %v1306
        %v1314 = vadd.f32 %v1240, %v1309
        %v1315 = vld [vmem:[#allocation2] sm:$0xfe]
        %v1316 = vld [vmem:[#allocation2 + $0x8] sm:$0xfe]
        %v1317 = vld [vmem:[#allocation2 + $0x10] sm:$0xff]
        %v1318 = vld [vmem:[#allocation2 + $0x18] sm:$0xff]
        %v1319 = vld [vmem:[#allocation2 + $0x20] sm:$0xff]
        %v1320 = vld [vmem:[#allocation2 + $0x28] sm:$0xff]
        %v1321 = vld [vmem:[#allocation2 + $0x30] sm:$0xff]
        %v1322 = vld [vmem:[#allocation2 + $0x38] sm:$0xff]
        %v1323 = vld [vmem:[#allocation2 + $0x40] sm:$0x1]
        %v1324 = vld [vmem:[#allocation2 + $0x48] sm:$0x1]
        %s1325 = scalar_lea.vmem [#allocation9], 512
        %v1326 = vld [vmem:[%s1325] sm:$0xff]
        %v1327 = vld [vmem:[%s1325 + $0x8] sm:$0xff]
        %v1328 = vld [vmem:[%s1325 + $0x10] sm:$0xff]
        %v1329 = vld [vmem:[%s1325 + $0x18] sm:$0xff]
        %v1330 = vld [vmem:[%s1325 + $0x20] sm:$0xff]
        %v1331 = vld [vmem:[%s1325 + $0x28] sm:$0xff]
        %v1332 = vld [vmem:[%s1325 + $0x30] sm:$0xff]
        %v1333 = vld [vmem:[%s1325 + $0x38] sm:$0xff]
        %v1334 = vld [vmem:[%s1325 + $0x40] sm:$0xff]
        %v1335 = vld [vmem:[%s1325 + $0x48] sm:$0xff]
        %v1336 = vld [vmem:[%s1325 + $0x50] sm:$0xff]
        %v1337 = vld [vmem:[%s1325 + $0x58] sm:$0xff]
        %v1338 = vld [vmem:[%s1325 + $0x60] sm:$0xff]
        %v1339 = vld [vmem:[%s1325 + $0x68] sm:$0xff]
        %v1340 = vld [vmem:[%s1325 + $0x70] sm:$0xff]
        %v1341 = vld [vmem:[%s1325 + $0x78] sm:$0xff]
        %v1352 = vrot.slane %v1315, 1
        %v1353 = vrot.slane %v1317, 1
        %v1354 = vsel %vm1268, %v1352, %v1353
        %v1355 = vrot.slane %v1316, 1
        %v1356 = vrot.slane %v1318, 1
        %v1357 = vsel %vm1268, %v1355, %v1356
        %v1358 = vrot.slane %v1319, 1
        %v1359 = vsel %vm1268, %v1353, %v1358
        %v1360 = vrot.slane %v1320, 1
        %v1361 = vsel %vm1268, %v1356, %v1360
        %v1362 = vrot.slane %v1321, 1
        %v1363 = vsel %vm1268, %v1358, %v1362
        %v1364 = vrot.slane %v1322, 1
        %v1365 = vsel %vm1268, %v1360, %v1364
        %v1366 = vrot.slane %v1323, 1
        %v1367 = vsel %vm1268, %v1362, %v1366
        %v1368 = vrot.slane %v1324, 1
        %v1369 = vsel %vm1268, %v1364, %v1368
        %1370 = vrot.lane.b32.xlu0 %v1354, 124
        %v1371 = vpop.permute.xlu0 %1370
        %1372 = vrot.lane.b32.xlu0 %v1357, 124
        %v1373 = vpop.permute.xlu0 %1372
        %1374 = vrot.lane.b32.xlu0 %v1359, 124
        %v1375 = vpop.permute.xlu0 %1374
        %1376 = vrot.lane.b32.xlu0 %v1361, 124
        %v1377 = vpop.permute.xlu0 %1376
        %1378 = vrot.lane.b32.xlu0 %v1363, 124
        %v1379 = vpop.permute.xlu0 %1378
        %1380 = vrot.lane.b32.xlu0 %v1365, 124
        %v1381 = vpop.permute.xlu0 %1380
        %1382 = vrot.lane.b32.xlu0 %v1367, 124
        %v1383 = vpop.permute.xlu0 %1382
        %1384 = vrot.lane.b32.xlu0 %v1369, 124
        %v1385 = vpop.permute.xlu0 %1384
        %v1386 = vsel %vm1099, %v1371, %v1373
        %v1387 = vsel %vm1099, %v1375, %v1377
        %v1388 = vsel %vm1099, %v1379, %v1381
        %v1389 = vsel %vm1099, %v1383, %v1385
        %1394 = vmatpush.msra.mxu0 %v1341
        %1395 = vmatpush.msra.mxu0 %v1340
        %1396 = vmatpush.msra.mxu0 %v1339
        %1397 = vmatpush.msra.mxu0 %v1338
        %1398 = vmatpush.msra.mxu0 %v1337
        %1399 = vmatpush.msra.mxu0 %v1336
        %1400 = vmatpush.msra.mxu0 %v1335
        %1401 = vmatpush.msra.mxu0 %v1334
        %1402 = vmatpush.msra.mxu0 %v1333
        %1403 = vmatpush.msra.mxu0 %v1332
        %1404 = vmatpush.msra.mxu0 %v1331
        %1405 = vmatpush.msra.mxu0 %v1330
        %1406 = vmatpush.msra.mxu0 %v1329
        %1407 = vmatpush.msra.mxu0 %v1328
        %1408 = vmatpush.msra.mxu0 %v1327
        %1409 = vmatpush.msra.mxu0 %v1326
        %1410 = vmatmul.f32.gmra.mxu0 %v1386
        %v1411 = vpop.f32.mrf.mxu0
        %v1412 = vadd.f32 0.0, %v1411
        %1413 = vmatmul.f32.gmra.mxu0 %v1387
        %v1414 = vpop.f32.mrf.mxu0
        %v1415 = vadd.f32 0.0, %v1414
        %1416 = vmatmul.f32.gmra.mxu0 %v1388
        %v1417 = vpop.f32.mrf.mxu0
        %v1418 = vadd.f32 0.0, %v1417
        %1419 = vmatmul.f32.gmra.mxu0 %v1389
        %v1420 = vpop.f32.mrf.mxu0
        %v1421 = vadd.f32 0.0, %v1420
        %1422 = vdwg.mxu0
        %v1423 = vadd.f32 %v1311, %v1412
        %v1424 = vadd.f32 %v1312, %v1415
        %v1425 = vadd.f32 %v1313, %v1418
        %v1426 = vadd.f32 %v1314, %v1421
        %s1427 = scalar_lea.vmem [#allocation9], 640
        %v1428 = vld [vmem:[%s1427] sm:$0xff]
        %v1429 = vld [vmem:[%s1427 + $0x8] sm:$0xff]
        %v1430 = vld [vmem:[%s1427 + $0x10] sm:$0xff]
        %v1431 = vld [vmem:[%s1427 + $0x18] sm:$0xff]
        %v1432 = vld [vmem:[%s1427 + $0x20] sm:$0xff]
        %v1433 = vld [vmem:[%s1427 + $0x28] sm:$0xff]
        %v1434 = vld [vmem:[%s1427 + $0x30] sm:$0xff]
        %v1435 = vld [vmem:[%s1427 + $0x38] sm:$0xff]
        %v1436 = vld [vmem:[%s1427 + $0x40] sm:$0xff]
        %v1437 = vld [vmem:[%s1427 + $0x48] sm:$0xff]
        %v1438 = vld [vmem:[%s1427 + $0x50] sm:$0xff]
        %v1439 = vld [vmem:[%s1427 + $0x58] sm:$0xff]
        %v1440 = vld [vmem:[%s1427 + $0x60] sm:$0xff]
        %v1441 = vld [vmem:[%s1427 + $0x68] sm:$0xff]
        %v1442 = vld [vmem:[%s1427 + $0x70] sm:$0xff]
        %v1443 = vld [vmem:[%s1427 + $0x78] sm:$0xff]
        %1444 = vrot.lane.b32.xlu0 %v1354, 120
        %v1445 = vpop.permute.xlu0 %1444
        %1446 = vrot.lane.b32.xlu0 %v1357, 120
        %v1447 = vpop.permute.xlu0 %1446
        %1448 = vrot.lane.b32.xlu0 %v1359, 120
        %v1449 = vpop.permute.xlu0 %1448
        %1450 = vrot.lane.b32.xlu0 %v1361, 120
        %v1451 = vpop.permute.xlu0 %1450
        %1452 = vrot.lane.b32.xlu0 %v1363, 120
        %v1453 = vpop.permute.xlu0 %1452
        %1454 = vrot.lane.b32.xlu0 %v1365, 120
        %v1455 = vpop.permute.xlu0 %1454
        %1456 = vrot.lane.b32.xlu0 %v1367, 120
        %v1457 = vpop.permute.xlu0 %1456
        %1458 = vrot.lane.b32.xlu0 %v1369, 120
        %v1459 = vpop.permute.xlu0 %1458
        %v1460 = vsel %vm1199, %v1445, %v1447
        %v1461 = vsel %vm1199, %v1449, %v1451
        %v1462 = vsel %vm1199, %v1453, %v1455
        %v1463 = vsel %vm1199, %v1457, %v1459
        %1468 = vmatpush.msra.mxu0 %v1443
        %1469 = vmatpush.msra.mxu0 %v1442
        %1470 = vmatpush.msra.mxu0 %v1441
        %1471 = vmatpush.msra.mxu0 %v1440
        %1472 = vmatpush.msra.mxu0 %v1439
        %1473 = vmatpush.msra.mxu0 %v1438
        %1474 = vmatpush.msra.mxu0 %v1437
        %1475 = vmatpush.msra.mxu0 %v1436
        %1476 = vmatpush.msra.mxu0 %v1435
        %1477 = vmatpush.msra.mxu0 %v1434
        %1478 = vmatpush.msra.mxu0 %v1433
        %1479 = vmatpush.msra.mxu0 %v1432
        %1480 = vmatpush.msra.mxu0 %v1431
        %1481 = vmatpush.msra.mxu0 %v1430
        %1482 = vmatpush.msra.mxu0 %v1429
        %1483 = vmatpush.msra.mxu0 %v1428
        %1484 = vmatmul.f32.gmra.mxu0 %v1460
        %v1485 = vpop.f32.mrf.mxu0
        %v1486 = vadd.f32 0.0, %v1485
        %1487 = vmatmul.f32.gmra.mxu0 %v1461
        %v1488 = vpop.f32.mrf.mxu0
        %v1489 = vadd.f32 0.0, %v1488
        %1490 = vmatmul.f32.gmra.mxu0 %v1462
        %v1491 = vpop.f32.mrf.mxu0
        %v1492 = vadd.f32 0.0, %v1491
        %1493 = vmatmul.f32.gmra.mxu0 %v1463
        %v1494 = vpop.f32.mrf.mxu0
        %v1495 = vadd.f32 0.0, %v1494
        %1496 = vdwg.mxu0
        %v1497 = vadd.f32 %v1423, %v1486
        %v1498 = vadd.f32 %v1424, %v1489
        %v1499 = vadd.f32 %v1425, %v1492
        %v1500 = vadd.f32 %v1426, %v1495
        %v1501 = vld [vmem:[#allocation2] sm:$0xfc]
        %v1502 = vld [vmem:[#allocation2 + $0x40] sm:$0x3]
        %s1503 = scalar_lea.vmem [#allocation9], 768
        %v1504 = vld [vmem:[%s1503] sm:$0xff]
        %v1505 = vld [vmem:[%s1503 + $0x8] sm:$0xff]
        %v1506 = vld [vmem:[%s1503 + $0x10] sm:$0xff]
        %v1507 = vld [vmem:[%s1503 + $0x18] sm:$0xff]
        %v1508 = vld [vmem:[%s1503 + $0x20] sm:$0xff]
        %v1509 = vld [vmem:[%s1503 + $0x28] sm:$0xff]
        %v1510 = vld [vmem:[%s1503 + $0x30] sm:$0xff]
        %v1511 = vld [vmem:[%s1503 + $0x38] sm:$0xff]
        %v1512 = vld [vmem:[%s1503 + $0x40] sm:$0xff]
        %v1513 = vld [vmem:[%s1503 + $0x48] sm:$0xff]
        %v1514 = vld [vmem:[%s1503 + $0x50] sm:$0xff]
        %v1515 = vld [vmem:[%s1503 + $0x58] sm:$0xff]
        %v1516 = vld [vmem:[%s1503 + $0x60] sm:$0xff]
        %v1517 = vld [vmem:[%s1503 + $0x68] sm:$0xff]
        %v1518 = vld [vmem:[%s1503 + $0x70] sm:$0xff]
        %v1519 = vld [vmem:[%s1503 + $0x78] sm:$0xff]
        %vm1522 = vcmask 1045504
        %v1523 = vrot.slane %v1501, 2
        %v1524 = vrot.slane %v1242, 2
        %v1525 = vsel %vm1522, %v1523, %v1524
        %v1526 = vrot.slane %v1243, 2
        %v1527 = vsel %vm1522, %v1524, %v1526
        %v1528 = vrot.slane %v1244, 2
        %v1529 = vsel %vm1522, %v1526, %v1528
        %v1530 = vrot.slane %v1502, 2
        %v1531 = vsel %vm1522, %v1528, %v1530
        %1536 = vmatpush.msra.mxu0 %v1519
        %1537 = vmatpush.msra.mxu0 %v1518
        %1538 = vmatpush.msra.mxu0 %v1517
        %1539 = vmatpush.msra.mxu0 %v1516
        %1540 = vmatpush.msra.mxu0 %v1515
        %1541 = vmatpush.msra.mxu0 %v1514
        %1542 = vmatpush.msra.mxu0 %v1513
        %1543 = vmatpush.msra.mxu0 %v1512
        %1544 = vmatpush.msra.mxu0 %v1511
        %1545 = vmatpush.msra.mxu0 %v1510
        %1546 = vmatpush.msra.mxu0 %v1509
        %1547 = vmatpush.msra.mxu0 %v1508
        %1548 = vmatpush.msra.mxu0 %v1507
        %1549 = vmatpush.msra.mxu0 %v1506
        %1550 = vmatpush.msra.mxu0 %v1505
        %1551 = vmatpush.msra.mxu0 %v1504
        %1552 = vmatmul.f32.gmra.mxu0 %v1525
        %v1553 = vpop.f32.mrf.mxu0
        %v1554 = vadd.f32 0.0, %v1553
        %1555 = vmatmul.f32.gmra.mxu0 %v1527
        %v1556 = vpop.f32.mrf.mxu0
        %v1557 = vadd.f32 0.0, %v1556
        %1558 = vmatmul.f32.gmra.mxu0 %v1529
        %v1559 = vpop.f32.mrf.mxu0
        %v1560 = vadd.f32 0.0, %v1559
        %1561 = vmatmul.f32.gmra.mxu0 %v1531
        %v1562 = vpop.f32.mrf.mxu0
        %v1563 = vadd.f32 0.0, %v1562
        %1564 = vdwg.mxu0
        %v1565 = vadd.f32 %v1497, %v1554
        %v1566 = vadd.f32 %v1498, %v1557
        %v1567 = vadd.f32 %v1499, %v1560
        %v1568 = vadd.f32 %v1500, %v1563
        %v1569 = vld [vmem:[#allocation2] sm:$0xfc]
        %v1570 = vld [vmem:[#allocation2 + $0x8] sm:$0xfc]
        %v1571 = vld [vmem:[#allocation2 + $0x40] sm:$0x3]
        %v1572 = vld [vmem:[#allocation2 + $0x48] sm:$0x3]
        %s1573 = scalar_lea.vmem [#allocation9], 896
        %v1574 = vld [vmem:[%s1573] sm:$0xff]
        %v1575 = vld [vmem:[%s1573 + $0x8] sm:$0xff]
        %v1576 = vld [vmem:[%s1573 + $0x10] sm:$0xff]
        %v1577 = vld [vmem:[%s1573 + $0x18] sm:$0xff]
        %v1578 = vld [vmem:[%s1573 + $0x20] sm:$0xff]
        %v1579 = vld [vmem:[%s1573 + $0x28] sm:$0xff]
        %v1580 = vld [vmem:[%s1573 + $0x30] sm:$0xff]
        %v1581 = vld [vmem:[%s1573 + $0x38] sm:$0xff]
        %v1582 = vld [vmem:[%s1573 + $0x40] sm:$0xff]
        %v1583 = vld [vmem:[%s1573 + $0x48] sm:$0xff]
        %v1584 = vld [vmem:[%s1573 + $0x50] sm:$0xff]
        %v1585 = vld [vmem:[%s1573 + $0x58] sm:$0xff]
        %v1586 = vld [vmem:[%s1573 + $0x60] sm:$0xff]
        %v1587 = vld [vmem:[%s1573 + $0x68] sm:$0xff]
        %v1588 = vld [vmem:[%s1573 + $0x70] sm:$0xff]
        %v1589 = vld [vmem:[%s1573 + $0x78] sm:$0xff]
        %v1594 = vrot.slane %v1569, 2
        %v1595 = vrot.slane %v1317, 2
        %v1596 = vsel %vm1522, %v1594, %v1595
        %v1597 = vrot.slane %v1570, 2
        %v1598 = vrot.slane %v1318, 2
        %v1599 = vsel %vm1522, %v1597, %v1598
        %v1600 = vrot.slane %v1319, 2
        %v1601 = vsel %vm1522, %v1595, %v1600
        %v1602 = vrot.slane %v1320, 2
        %v1603 = vsel %vm1522, %v1598, %v1602
        %v1604 = vrot.slane %v1321, 2
        %v1605 = vsel %vm1522, %v1600, %v1604
        %v1606 = vrot.slane %v1322, 2
        %v1607 = vsel %vm1522, %v1602, %v1606
        %v1608 = vrot.slane %v1571, 2
        %v1609 = vsel %vm1522, %v1604, %v1608
        %v1610 = vrot.slane %v1572, 2
        %v1611 = vsel %vm1522, %v1606, %v1610
        %1612 = vrot.lane.b32.xlu0 %v1596, 124
        %v1613 = vpop.permute.xlu0 %1612
        %1614 = vrot.lane.b32.xlu0 %v1599, 124
        %v1615 = vpop.permute.xlu0 %1614
        %1616 = vrot.lane.b32.xlu0 %v1601, 124
        %v1617 = vpop.permute.xlu0 %1616
        %1618 = vrot.lane.b32.xlu0 %v1603, 124
        %v1619 = vpop.permute.xlu0 %1618
        %1620 = vrot.lane.b32.xlu0 %v1605, 124
        %v1621 = vpop.permute.xlu0 %1620
        %1622 = vrot.lane.b32.xlu0 %v1607, 124
        %v1623 = vpop.permute.xlu0 %1622
        %1624 = vrot.lane.b32.xlu0 %v1609, 124
        %v1625 = vpop.permute.xlu0 %1624
        %1626 = vrot.lane.b32.xlu0 %v1611, 124
        %v1627 = vpop.permute.xlu0 %1626
        %v1628 = vsel %vm1099, %v1613, %v1615
        %v1629 = vsel %vm1099, %v1617, %v1619
        %v1630 = vsel %vm1099, %v1621, %v1623
        %v1631 = vsel %vm1099, %v1625, %v1627
        %1636 = vmatpush.msra.mxu0 %v1589
        %1637 = vmatpush.msra.mxu0 %v1588
        %1638 = vmatpush.msra.mxu0 %v1587
        %1639 = vmatpush.msra.mxu0 %v1586
        %1640 = vmatpush.msra.mxu0 %v1585
        %1641 = vmatpush.msra.mxu0 %v1584
        %1642 = vmatpush.msra.mxu0 %v1583
        %1643 = vmatpush.msra.mxu0 %v1582
        %1644 = vmatpush.msra.mxu0 %v1581
        %1645 = vmatpush.msra.mxu0 %v1580
        %1646 = vmatpush.msra.mxu0 %v1579
        %1647 = vmatpush.msra.mxu0 %v1578
        %1648 = vmatpush.msra.mxu0 %v1577
        %1649 = vmatpush.msra.mxu0 %v1576
        %1650 = vmatpush.msra.mxu0 %v1575
        %1651 = vmatpush.msra.mxu0 %v1574
        %1652 = vmatmul.f32.gmra.mxu0 %v1628
        %v1653 = vpop.f32.mrf.mxu0
        %v1654 = vadd.f32 0.0, %v1653
        %1655 = vmatmul.f32.gmra.mxu0 %v1629
        %v1656 = vpop.f32.mrf.mxu0
        %v1657 = vadd.f32 0.0, %v1656
        %1658 = vmatmul.f32.gmra.mxu0 %v1630
        %v1659 = vpop.f32.mrf.mxu0
        %v1660 = vadd.f32 0.0, %v1659
        %1661 = vmatmul.f32.gmra.mxu0 %v1631
        %v1662 = vpop.f32.mrf.mxu0
        %v1663 = vadd.f32 0.0, %v1662
        %1664 = vdwg.mxu0
        %v1665 = vadd.f32 %v1565, %v1654
        %v1666 = vadd.f32 %v1566, %v1657
        %v1667 = vadd.f32 %v1567, %v1660
        %v1668 = vadd.f32 %v1568, %v1663
        %s1669 = scalar_lea.vmem [#allocation9], 1024
        %v1670 = vld [vmem:[%s1669] sm:$0xff]
        %v1671 = vld [vmem:[%s1669 + $0x8] sm:$0xff]
        %v1672 = vld [vmem:[%s1669 + $0x10] sm:$0xff]
        %v1673 = vld [vmem:[%s1669 + $0x18] sm:$0xff]
        %v1674 = vld [vmem:[%s1669 + $0x20] sm:$0xff]
        %v1675 = vld [vmem:[%s1669 + $0x28] sm:$0xff]
        %v1676 = vld [vmem:[%s1669 + $0x30] sm:$0xff]
        %v1677 = vld [vmem:[%s1669 + $0x38] sm:$0xff]
        %v1678 = vld [vmem:[%s1669 + $0x40] sm:$0xff]
        %v1679 = vld [vmem:[%s1669 + $0x48] sm:$0xff]
        %v1680 = vld [vmem:[%s1669 + $0x50] sm:$0xff]
        %v1681 = vld [vmem:[%s1669 + $0x58] sm:$0xff]
        %v1682 = vld [vmem:[%s1669 + $0x60] sm:$0xff]
        %v1683 = vld [vmem:[%s1669 + $0x68] sm:$0xff]
        %v1684 = vld [vmem:[%s1669 + $0x70] sm:$0xff]
        %v1685 = vld [vmem:[%s1669 + $0x78] sm:$0xff]
        %1686 = vrot.lane.b32.xlu0 %v1596, 120
        %v1687 = vpop.permute.xlu0 %1686
        %1688 = vrot.lane.b32.xlu0 %v1599, 120
        %v1689 = vpop.permute.xlu0 %1688
        %1690 = vrot.lane.b32.xlu0 %v1601, 120
        %v1691 = vpop.permute.xlu0 %1690
        %1692 = vrot.lane.b32.xlu0 %v1603, 120
        %v1693 = vpop.permute.xlu0 %1692
        %1694 = vrot.lane.b32.xlu0 %v1605, 120
        %v1695 = vpop.permute.xlu0 %1694
        %1696 = vrot.lane.b32.xlu0 %v1607, 120
        %v1697 = vpop.permute.xlu0 %1696
        %1698 = vrot.lane.b32.xlu0 %v1609, 120
        %v1699 = vpop.permute.xlu0 %1698
        %1700 = vrot.lane.b32.xlu0 %v1611, 120
        %v1701 = vpop.permute.xlu0 %1700
        %v1702 = vsel %vm1199, %v1687, %v1689
        %v1703 = vsel %vm1199, %v1691, %v1693
        %v1704 = vsel %vm1199, %v1695, %v1697
        %v1705 = vsel %vm1199, %v1699, %v1701
        %1710 = vmatpush.msra.mxu0 %v1685
        %1711 = vmatpush.msra.mxu0 %v1684
        %1712 = vmatpush.msra.mxu0 %v1683
        %1713 = vmatpush.msra.mxu0 %v1682
        %1714 = vmatpush.msra.mxu0 %v1681
        %1715 = vmatpush.msra.mxu0 %v1680
        %1716 = vmatpush.msra.mxu0 %v1679
        %1717 = vmatpush.msra.mxu0 %v1678
        %1718 = vmatpush.msra.mxu0 %v1677
        %1719 = vmatpush.msra.mxu0 %v1676
        %1720 = vmatpush.msra.mxu0 %v1675
        %1721 = vmatpush.msra.mxu0 %v1674
        %1722 = vmatpush.msra.mxu0 %v1673
        %1723 = vmatpush.msra.mxu0 %v1672
        %1724 = vmatpush.msra.mxu0 %v1671
        %1725 = vmatpush.msra.mxu0 %v1670
        %1726 = vmatmul.f32.gmra.mxu0 %v1702
        %v1727 = vpop.f32.mrf.mxu0
        %v1728 = vadd.f32 0.0, %v1727
        %1729 = vmatmul.f32.gmra.mxu0 %v1703
        %v1730 = vpop.f32.mrf.mxu0
        %v1731 = vadd.f32 0.0, %v1730
        %1732 = vmatmul.f32.gmra.mxu0 %v1704
        %v1733 = vpop.f32.mrf.mxu0
        %v1734 = vadd.f32 0.0, %v1733
        %1735 = vmatmul.f32.gmra.mxu0 %v1705
        %v1736 = vpop.f32.mrf.mxu0
        %v1737 = vadd.f32 0.0, %v1736
        %1738 = vdwg.mxu0
        %v1739 = vadd.f32 %v1665, %v1728
        %v1740 = vadd.f32 %v1666, %v1731
        %v1741 = vadd.f32 %v1667, %v1734
        %v1742 = vadd.f32 %v1668, %v1737
        %v1743 = vld [vmem:[#allocation11] sm:$0x1]
        %v1745 = vperm.slane %v1743, 0
        %v1747 = vadd.f32 %v1739, %v1745
        %v1748 = vadd.f32 %v1740, %v1745
        %v1749 = vadd.f32 %v1741, %v1745
        %v1750 = vadd.f32 %v1742, %v1745
        %v1751 = vmax.f32 %v1747, 0.0
        %v1752 = vmax.f32 %v1748, 0.0
        %v1753 = vmax.f32 %v1749, 0.0
        %v1754 = vmax.f32 %v1750, 0.0
        %v1755 = vand.u32 2147483647, %v1747
        %v1756 = vand.u32 2147483647, %v1748
        %v1757 = vand.u32 2147483647, %v1749
        %v1758 = vand.u32 2147483647, %v1750
        %v1759 = vsub.f32 0.0, %v1755
        %v1760 = vsub.f32 0.0, %v1756
        %v1761 = vsub.f32 0.0, %v1757
        %v1762 = vsub.f32 0.0, %v1758
        %v1763 = vmul.f32 %v1759, 1.442695
        %v1764 = vpow.pop %v1763
        %v1765 = vmul.f32 %v1760, 1.442695
        %v1766 = vpow.pop %v1765
        %v1767 = vmul.f32 %v1761, 1.442695
        %v1768 = vpow.pop %v1767
        %v1769 = vmul.f32 %v1762, 1.442695
        %v1770 = vpow.pop %v1769
        %v1771 = vadd.f32 %v1764, 1.0
        %v1772 = vadd.f32 %v1766, 1.0
        %v1773 = vadd.f32 %v1768, 1.0
        %v1774 = vadd.f32 %v1770, 1.0
        %v1775 = vlog2.pop %v1771
        %v1776 = vmul.f32 %v1775, 0.6931472
        %v1777 = vlog2.pop %v1772
        %v1778 = vmul.f32 %v1777, 0.6931472
        %v1779 = vlog2.pop %v1773
        %v1780 = vmul.f32 %v1779, 0.6931472
        %v1781 = vlog2.pop %v1774
        %v1782 = vmul.f32 %v1781, 0.6931472
        %v1783 = vadd.f32 %v1751, %v1776
        %v1784 = vadd.f32 %v1752, %v1778
        %v1785 = vadd.f32 %v1753, %v1780
        %v1786 = vadd.f32 %v1754, %v1782
        %v1787 = vmul.f32 %v1747, 0.1
        %v1788 = vmul.f32 %v1748, 0.1
        %v1789 = vmul.f32 %v1749, 0.1
        %v1790 = vmul.f32 %v1750, 0.1
        %v1791 = vmul.f32 %v1783, 0.9
        %v1792 = vmul.f32 %v1784, 0.9
        %v1793 = vmul.f32 %v1785, 0.9
        %v1794 = vmul.f32 %v1786, 0.9
        %v1795 = vadd.f32 %v1787, %v1791
        %v1796 = vadd.f32 %v1788, %v1792
        %v1797 = vadd.f32 %v1789, %v1793
        %v1798 = vadd.f32 %v1790, %v1794
        %v1799 = vmul.f32 %v1795, 0.1
        %v1800 = vmul.f32 %v1796, 0.1
        %v1801 = vmul.f32 %v1797, 0.1
        %v1802 = vmul.f32 %v1798, 0.1
        %v1803 = vadd.f32 %v987, %v1799
        %v1804 = vadd.f32 %v988, %v1800
        %v1805 = vadd.f32 %v989, %v1801
        %v1806 = vadd.f32 %v990, %v1802
        %v1811 = vrot.slane %v1803, 7
        %v1812 = vrot.slane %v1804, 7
        %v1813 = vsel %vm995, %v1811, %v1812
        %v1814 = vrot.slane %v1805, 7
        %v1815 = vsel %vm995, %v1812, %v1814
        %v1816 = vrot.slane %v1806, 7
        %v1817 = vsel %vm995, %v1814, %v1816
        %1818 = vrot.lane.b32.xlu0 %v1811, 4
        %v1819 = vpop.permute.xlu0 %1818
        %1820 = vrot.lane.b32.xlu0 %v1813, 4
        %v1821 = vpop.permute.xlu0 %1820
        %1822 = vrot.lane.b32.xlu0 %v1815, 4
        %v1823 = vpop.permute.xlu0 %1822
        %1824 = vrot.lane.b32.xlu0 %v1817, 4
        %v1825 = vpop.permute.xlu0 %1824
        %1826 = vrot.lane.b32.xlu0 %v1816, 4
        %v1827 = vpop.permute.xlu0 %1826
        %1833 = vst.msk [vmem:[#allocation2] sm:$0xfe] %vm1018, %v1819
        %1834 = vst.msk [vmem:[#allocation2 + $0x8] sm:$0xfe] %vm1020, %v1819
        %1835 = vst.msk [vmem:[#allocation2 + $0x10] sm:$0xff] %vm1022, %v1821
        %1836 = vst.msk [vmem:[#allocation2 + $0x18] sm:$0xff] %vm1024, %v1821
        %1837 = vst.msk [vmem:[#allocation2 + $0x20] sm:$0xff] %vm1022, %v1823
        %1838 = vst.msk [vmem:[#allocation2 + $0x28] sm:$0xff] %vm1024, %v1823
        %1839 = vst.msk [vmem:[#allocation2 + $0x30] sm:$0xff] %vm1022, %v1825
        %1840 = vst.msk [vmem:[#allocation2 + $0x38] sm:$0xff] %vm1024, %v1825
        %1841 = vst.msk [vmem:[#allocation2 + $0x40] sm:$0x1] %vm1030, %v1827
        %1842 = vst.msk [vmem:[#allocation2 + $0x48] sm:$0x1] %vm1032, %v1827
        %v1843 = vld [vmem:[#allocation2] sm:$0xff]
        %v1844 = vld [vmem:[#allocation2 + $0x10] sm:$0xff]
        %v1845 = vld [vmem:[#allocation2 + $0x20] sm:$0xff]
        %v1846 = vld [vmem:[#allocation2 + $0x30] sm:$0xff]
        %s1847 = scalar_lea.vmem [#allocation9], 1152
        %v1848 = vld [vmem:[%s1847] sm:$0xff]
        %v1849 = vld [vmem:[%s1847 + $0x8] sm:$0xff]
        %v1850 = vld [vmem:[%s1847 + $0x10] sm:$0xff]
        %v1851 = vld [vmem:[%s1847 + $0x18] sm:$0xff]
        %v1852 = vld [vmem:[%s1847 + $0x20] sm:$0xff]
        %v1853 = vld [vmem:[%s1847 + $0x28] sm:$0xff]
        %v1854 = vld [vmem:[%s1847 + $0x30] sm:$0xff]
        %v1855 = vld [vmem:[%s1847 + $0x38] sm:$0xff]
        %v1856 = vld [vmem:[%s1847 + $0x40] sm:$0xff]
        %v1857 = vld [vmem:[%s1847 + $0x48] sm:$0xff]
        %v1858 = vld [vmem:[%s1847 + $0x50] sm:$0xff]
        %v1859 = vld [vmem:[%s1847 + $0x58] sm:$0xff]
        %v1860 = vld [vmem:[%s1847 + $0x60] sm:$0xff]
        %v1861 = vld [vmem:[%s1847 + $0x68] sm:$0xff]
        %v1862 = vld [vmem:[%s1847 + $0x70] sm:$0xff]
        %v1863 = vld [vmem:[%s1847 + $0x78] sm:$0xff]
        %v1864 = vld [vmem:[#allocation2 + $0x8] sm:$0xff]
        %v1865 = vld [vmem:[#allocation2 + $0x18] sm:$0xff]
        %v1866 = vld [vmem:[#allocation2 + $0x28] sm:$0xff]
        %v1867 = vld [vmem:[#allocation2 + $0x38] sm:$0xff]
        %s1868 = scalar_lea.vmem [#allocation9], 1280
        %v1869 = vld [vmem:[%s1868] sm:$0xff]
        %v1870 = vld [vmem:[%s1868 + $0x8] sm:$0xff]
        %v1871 = vld [vmem:[%s1868 + $0x10] sm:$0xff]
        %v1872 = vld [vmem:[%s1868 + $0x18] sm:$0xff]
        %v1873 = vld [vmem:[%s1868 + $0x20] sm:$0xff]
        %v1874 = vld [vmem:[%s1868 + $0x28] sm:$0xff]
        %v1875 = vld [vmem:[%s1868 + $0x30] sm:$0xff]
        %v1876 = vld [vmem:[%s1868 + $0x38] sm:$0xff]
        %v1877 = vld [vmem:[%s1868 + $0x40] sm:$0xff]
        %v1878 = vld [vmem:[%s1868 + $0x48] sm:$0xff]
        %v1879 = vld [vmem:[%s1868 + $0x50] sm:$0xff]
        %v1880 = vld [vmem:[%s1868 + $0x58] sm:$0xff]
        %v1881 = vld [vmem:[%s1868 + $0x60] sm:$0xff]
        %v1882 = vld [vmem:[%s1868 + $0x68] sm:$0xff]
        %v1883 = vld [vmem:[%s1868 + $0x70] sm:$0xff]
        %v1884 = vld [vmem:[%s1868 + $0x78] sm:$0xff]
        %1893 = vrot.lane.b32.xlu0 %v1843, 124
        %v1894 = vpop.permute.xlu0 %1893
        %1895 = vrot.lane.b32.xlu0 %v1864, 124
        %v1896 = vpop.permute.xlu0 %1895
        %1897 = vrot.lane.b32.xlu0 %v1844, 124
        %v1898 = vpop.permute.xlu0 %1897
        %1899 = vrot.lane.b32.xlu0 %v1865, 124
        %v1900 = vpop.permute.xlu0 %1899
        %1901 = vrot.lane.b32.xlu0 %v1845, 124
        %v1902 = vpop.permute.xlu0 %1901
        %1903 = vrot.lane.b32.xlu0 %v1866, 124
        %v1904 = vpop.permute.xlu0 %1903
        %1905 = vrot.lane.b32.xlu0 %v1846, 124
        %v1906 = vpop.permute.xlu0 %1905
        %1907 = vrot.lane.b32.xlu0 %v1867, 124
        %v1908 = vpop.permute.xlu0 %1907
        %v1909 = vsel %vm1099, %v1894, %v1896
        %v1910 = vsel %vm1099, %v1898, %v1900
        %v1911 = vsel %vm1099, %v1902, %v1904
        %v1912 = vsel %vm1099, %v1906, %v1908
        %1917 = vmatpush.msra.mxu0 %v1884
        %1918 = vmatpush.msra.mxu0 %v1883
        %1919 = vmatpush.msra.mxu0 %v1882
        %1920 = vmatpush.msra.mxu0 %v1881
        %1921 = vmatpush.msra.mxu0 %v1880
        %1922 = vmatpush.msra.mxu0 %v1879
        %1923 = vmatpush.msra.mxu0 %v1878
        %1924 = vmatpush.msra.mxu0 %v1877
        %1925 = vmatpush.msra.mxu0 %v1876
        %1926 = vmatpush.msra.mxu0 %v1875
        %1927 = vmatpush.msra.mxu0 %v1874
        %1928 = vmatpush.msra.mxu0 %v1873
        %1929 = vmatpush.msra.mxu0 %v1872
        %1930 = vmatpush.msra.mxu0 %v1871
        %1931 = vmatpush.msra.mxu0 %v1870
        %1932 = vmatpush.msra.mxu0 %v1869
        %1933 = vmatmul.f32.gmra.mxu0 %v1909
        %v1934 = vpop.f32.mrf.mxu0
        %v1935 = vadd.f32 0.0, %v1934
        %1936 = vmatmul.f32.gmra.mxu0 %v1910
        %v1937 = vpop.f32.mrf.mxu0
        %v1938 = vadd.f32 0.0, %v1937
        %1939 = vmatmul.f32.gmra.mxu0 %v1911
        %v1940 = vpop.f32.mrf.mxu0
        %v1941 = vadd.f32 0.0, %v1940
        %1942 = vmatmul.f32.gmra.mxu0 %v1912
        %v1943 = vpop.f32.mrf.mxu0
        %v1944 = vadd.f32 0.0, %v1943
        %1945 = vdwg.mxu0
        %1946 = vmatpush.msra.mxu0 %v1863
        %1947 = vmatpush.msra.mxu0 %v1862
        %1948 = vmatpush.msra.mxu0 %v1861
        %1949 = vmatpush.msra.mxu0 %v1860
        %1950 = vmatpush.msra.mxu0 %v1859
        %1951 = vmatpush.msra.mxu0 %v1858
        %1952 = vmatpush.msra.mxu0 %v1857
        %1953 = vmatpush.msra.mxu0 %v1856
        %1954 = vmatpush.msra.mxu0 %v1855
        %1955 = vmatpush.msra.mxu0 %v1854
        %1956 = vmatpush.msra.mxu0 %v1853
        %1957 = vmatpush.msra.mxu0 %v1852
        %1958 = vmatpush.msra.mxu0 %v1851
        %1959 = vmatpush.msra.mxu0 %v1850
        %1960 = vmatpush.msra.mxu0 %v1849
        %1961 = vmatpush.msra.mxu0 %v1848
        %1962 = vmatmul.f32.gmra.mxu0 %v1843
        %v1963 = vpop.f32.mrf.mxu0
        %v1964 = vadd.f32 %v1935, %v1963
        %1965 = vmatmul.f32.gmra.mxu0 %v1844
        %v1966 = vpop.f32.mrf.mxu0
        %v1967 = vadd.f32 %v1938, %v1966
        %1968 = vmatmul.f32.gmra.mxu0 %v1845
        %v1969 = vpop.f32.mrf.mxu0
        %v1970 = vadd.f32 %v1941, %v1969
        %1971 = vmatmul.f32.gmra.mxu0 %v1846
        %v1972 = vpop.f32.mrf.mxu0
        %v1973 = vadd.f32 %v1944, %v1972
        %1974 = vdwg.mxu0
        %s1975 = scalar_lea.vmem [#allocation9], 1408
        %v1976 = vld [vmem:[%s1975] sm:$0xff]
        %v1977 = vld [vmem:[%s1975 + $0x8] sm:$0xff]
        %v1978 = vld [vmem:[%s1975 + $0x10] sm:$0xff]
        %v1979 = vld [vmem:[%s1975 + $0x18] sm:$0xff]
        %v1980 = vld [vmem:[%s1975 + $0x20] sm:$0xff]
        %v1981 = vld [vmem:[%s1975 + $0x28] sm:$0xff]
        %v1982 = vld [vmem:[%s1975 + $0x30] sm:$0xff]
        %v1983 = vld [vmem:[%s1975 + $0x38] sm:$0xff]
        %v1984 = vld [vmem:[%s1975 + $0x40] sm:$0xff]
        %v1985 = vld [vmem:[%s1975 + $0x48] sm:$0xff]
        %v1986 = vld [vmem:[%s1975 + $0x50] sm:$0xff]
        %v1987 = vld [vmem:[%s1975 + $0x58] sm:$0xff]
        %v1988 = vld [vmem:[%s1975 + $0x60] sm:$0xff]
        %v1989 = vld [vmem:[%s1975 + $0x68] sm:$0xff]
        %v1990 = vld [vmem:[%s1975 + $0x70] sm:$0xff]
        %v1991 = vld [vmem:[%s1975 + $0x78] sm:$0xff]
        %1992 = vrot.lane.b32.xlu0 %v1843, 120
        %v1993 = vpop.permute.xlu0 %1992
        %1994 = vrot.lane.b32.xlu0 %v1864, 120
        %v1995 = vpop.permute.xlu0 %1994
        %1996 = vrot.lane.b32.xlu0 %v1844, 120
        %v1997 = vpop.permute.xlu0 %1996
        %1998 = vrot.lane.b32.xlu0 %v1865, 120
        %v1999 = vpop.permute.xlu0 %1998
        %2000 = vrot.lane.b32.xlu0 %v1845, 120
        %v2001 = vpop.permute.xlu0 %2000
        %2002 = vrot.lane.b32.xlu0 %v1866, 120
        %v2003 = vpop.permute.xlu0 %2002
        %2004 = vrot.lane.b32.xlu0 %v1846, 120
        %v2005 = vpop.permute.xlu0 %2004
        %2006 = vrot.lane.b32.xlu0 %v1867, 120
        %v2007 = vpop.permute.xlu0 %2006
        %v2008 = vsel %vm1199, %v1993, %v1995
        %v2009 = vsel %vm1199, %v1997, %v1999
        %v2010 = vsel %vm1199, %v2001, %v2003
        %v2011 = vsel %vm1199, %v2005, %v2007
        %2016 = vmatpush.msra.mxu0 %v1991
        %2017 = vmatpush.msra.mxu0 %v1990
        %2018 = vmatpush.msra.mxu0 %v1989
        %2019 = vmatpush.msra.mxu0 %v1988
        %2020 = vmatpush.msra.mxu0 %v1987
        %2021 = vmatpush.msra.mxu0 %v1986
        %2022 = vmatpush.msra.mxu0 %v1985
        %2023 = vmatpush.msra.mxu0 %v1984
        %2024 = vmatpush.msra.mxu0 %v1983
        %2025 = vmatpush.msra.mxu0 %v1982
        %2026 = vmatpush.msra.mxu0 %v1981
        %2027 = vmatpush.msra.mxu0 %v1980
        %2028 = vmatpush.msra.mxu0 %v1979
        %2029 = vmatpush.msra.mxu0 %v1978
        %2030 = vmatpush.msra.mxu0 %v1977
        %2031 = vmatpush.msra.mxu0 %v1976
        %2032 = vmatmul.f32.gmra.mxu0 %v2008
        %v2033 = vpop.f32.mrf.mxu0
        %v2034 = vadd.f32 0.0, %v2033
        %2035 = vmatmul.f32.gmra.mxu0 %v2009
        %v2036 = vpop.f32.mrf.mxu0
        %v2037 = vadd.f32 0.0, %v2036
        %2038 = vmatmul.f32.gmra.mxu0 %v2010
        %v2039 = vpop.f32.mrf.mxu0
        %v2040 = vadd.f32 0.0, %v2039
        %2041 = vmatmul.f32.gmra.mxu0 %v2011
        %v2042 = vpop.f32.mrf.mxu0
        %v2043 = vadd.f32 0.0, %v2042
        %2044 = vdwg.mxu0
        %v2045 = vadd.f32 %v1964, %v2034
        %v2046 = vadd.f32 %v1967, %v2037
        %v2047 = vadd.f32 %v1970, %v2040
        %v2048 = vadd.f32 %v1973, %v2043
        %v2049 = vld [vmem:[#allocation2] sm:$0xfe]
        %v2050 = vld [vmem:[#allocation2 + $0x10] sm:$0xff]
        %v2051 = vld [vmem:[#allocation2 + $0x20] sm:$0xff]
        %v2052 = vld [vmem:[#allocation2 + $0x30] sm:$0xff]
        %v2053 = vld [vmem:[#allocation2 + $0x40] sm:$0x1]
        %s2054 = scalar_lea.vmem [#allocation9], 1536
        %v2055 = vld [vmem:[%s2054] sm:$0xff]
        %v2056 = vld [vmem:[%s2054 + $0x8] sm:$0xff]
        %v2057 = vld [vmem:[%s2054 + $0x10] sm:$0xff]
        %v2058 = vld [vmem:[%s2054 + $0x18] sm:$0xff]
        %v2059 = vld [vmem:[%s2054 + $0x20] sm:$0xff]
        %v2060 = vld [vmem:[%s2054 + $0x28] sm:$0xff]
        %v2061 = vld [vmem:[%s2054 + $0x30] sm:$0xff]
        %v2062 = vld [vmem:[%s2054 + $0x38] sm:$0xff]
        %v2063 = vld [vmem:[%s2054 + $0x40] sm:$0xff]
        %v2064 = vld [vmem:[%s2054 + $0x48] sm:$0xff]
        %v2065 = vld [vmem:[%s2054 + $0x50] sm:$0xff]
        %v2066 = vld [vmem:[%s2054 + $0x58] sm:$0xff]
        %v2067 = vld [vmem:[%s2054 + $0x60] sm:$0xff]
        %v2068 = vld [vmem:[%s2054 + $0x68] sm:$0xff]
        %v2069 = vld [vmem:[%s2054 + $0x70] sm:$0xff]
        %v2070 = vld [vmem:[%s2054 + $0x78] sm:$0xff]
        %v2076 = vrot.slane %v2049, 1
        %v2077 = vrot.slane %v2050, 1
        %v2078 = vsel %vm1268, %v2076, %v2077
        %v2079 = vrot.slane %v2051, 1
        %v2080 = vsel %vm1268, %v2077, %v2079
        %v2081 = vrot.slane %v2052, 1
        %v2082 = vsel %vm1268, %v2079, %v2081
        %v2083 = vrot.slane %v2053, 1
        %v2084 = vsel %vm1268, %v2081, %v2083
        %2089 = vmatpush.msra.mxu0 %v2070
        %2090 = vmatpush.msra.mxu0 %v2069
        %2091 = vmatpush.msra.mxu0 %v2068
        %2092 = vmatpush.msra.mxu0 %v2067
        %2093 = vmatpush.msra.mxu0 %v2066
        %2094 = vmatpush.msra.mxu0 %v2065
        %2095 = vmatpush.msra.mxu0 %v2064
        %2096 = vmatpush.msra.mxu0 %v2063
        %2097 = vmatpush.msra.mxu0 %v2062
        %2098 = vmatpush.msra.mxu0 %v2061
        %2099 = vmatpush.msra.mxu0 %v2060
        %2100 = vmatpush.msra.mxu0 %v2059
        %2101 = vmatpush.msra.mxu0 %v2058
        %2102 = vmatpush.msra.mxu0 %v2057
        %2103 = vmatpush.msra.mxu0 %v2056
        %2104 = vmatpush.msra.mxu0 %v2055
        %2105 = vmatmul.f32.gmra.mxu0 %v2078
        %v2106 = vpop.f32.mrf.mxu0
        %v2107 = vadd.f32 0.0, %v2106
        %2108 = vmatmul.f32.gmra.mxu0 %v2080
        %v2109 = vpop.f32.mrf.mxu0
        %v2110 = vadd.f32 0.0, %v2109
        %2111 = vmatmul.f32.gmra.mxu0 %v2082
        %v2112 = vpop.f32.mrf.mxu0
        %v2113 = vadd.f32 0.0, %v2112
        %2114 = vmatmul.f32.gmra.mxu0 %v2084
        %v2115 = vpop.f32.mrf.mxu0
        %v2116 = vadd.f32 0.0, %v2115
        %2117 = vdwg.mxu0
        %v2118 = vadd.f32 %v2045, %v2107
        %v2119 = vadd.f32 %v2046, %v2110
        %v2120 = vadd.f32 %v2047, %v2113
        %v2121 = vadd.f32 %v2048, %v2116
        %v2122 = vld [vmem:[#allocation2] sm:$0xfe]
        %v2123 = vld [vmem:[#allocation2 + $0x8] sm:$0xfe]
        %v2124 = vld [vmem:[#allocation2 + $0x10] sm:$0xff]
        %v2125 = vld [vmem:[#allocation2 + $0x18] sm:$0xff]
        %v2126 = vld [vmem:[#allocation2 + $0x20] sm:$0xff]
        %v2127 = vld [vmem:[#allocation2 + $0x28] sm:$0xff]
        %v2128 = vld [vmem:[#allocation2 + $0x30] sm:$0xff]
        %v2129 = vld [vmem:[#allocation2 + $0x38] sm:$0xff]
        %v2130 = vld [vmem:[#allocation2 + $0x40] sm:$0x1]
        %v2131 = vld [vmem:[#allocation2 + $0x48] sm:$0x1]
        %s2132 = scalar_lea.vmem [#allocation9], 1664
        %v2133 = vld [vmem:[%s2132] sm:$0xff]
        %v2134 = vld [vmem:[%s2132 + $0x8] sm:$0xff]
        %v2135 = vld [vmem:[%s2132 + $0x10] sm:$0xff]
        %v2136 = vld [vmem:[%s2132 + $0x18] sm:$0xff]
        %v2137 = vld [vmem:[%s2132 + $0x20] sm:$0xff]
        %v2138 = vld [vmem:[%s2132 + $0x28] sm:$0xff]
        %v2139 = vld [vmem:[%s2132 + $0x30] sm:$0xff]
        %v2140 = vld [vmem:[%s2132 + $0x38] sm:$0xff]
        %v2141 = vld [vmem:[%s2132 + $0x40] sm:$0xff]
        %v2142 = vld [vmem:[%s2132 + $0x48] sm:$0xff]
        %v2143 = vld [vmem:[%s2132 + $0x50] sm:$0xff]
        %v2144 = vld [vmem:[%s2132 + $0x58] sm:$0xff]
        %v2145 = vld [vmem:[%s2132 + $0x60] sm:$0xff]
        %v2146 = vld [vmem:[%s2132 + $0x68] sm:$0xff]
        %v2147 = vld [vmem:[%s2132 + $0x70] sm:$0xff]
        %v2148 = vld [vmem:[%s2132 + $0x78] sm:$0xff]
        %v2159 = vrot.slane %v2122, 1
        %v2160 = vrot.slane %v2124, 1
        %v2161 = vsel %vm1268, %v2159, %v2160
        %v2162 = vrot.slane %v2123, 1
        %v2163 = vrot.slane %v2125, 1
        %v2164 = vsel %vm1268, %v2162, %v2163
        %v2165 = vrot.slane %v2126, 1
        %v2166 = vsel %vm1268, %v2160, %v2165
        %v2167 = vrot.slane %v2127, 1
        %v2168 = vsel %vm1268, %v2163, %v2167
        %v2169 = vrot.slane %v2128, 1
        %v2170 = vsel %vm1268, %v2165, %v2169
        %v2171 = vrot.slane %v2129, 1
        %v2172 = vsel %vm1268, %v2167, %v2171
        %v2173 = vrot.slane %v2130, 1
        %v2174 = vsel %vm1268, %v2169, %v2173
        %v2175 = vrot.slane %v2131, 1
        %v2176 = vsel %vm1268, %v2171, %v2175
        %2177 = vrot.lane.b32.xlu0 %v2161, 124
        %v2178 = vpop.permute.xlu0 %2177
        %2179 = vrot.lane.b32.xlu0 %v2164, 124
        %v2180 = vpop.permute.xlu0 %2179
        %2181 = vrot.lane.b32.xlu0 %v2166, 124
        %v2182 = vpop.permute.xlu0 %2181
        %2183 = vrot.lane.b32.xlu0 %v2168, 124
        %v2184 = vpop.permute.xlu0 %2183
        %2185 = vrot.lane.b32.xlu0 %v2170, 124
        %v2186 = vpop.permute.xlu0 %2185
        %2187 = vrot.lane.b32.xlu0 %v2172, 124
        %v2188 = vpop.permute.xlu0 %2187
        %2189 = vrot.lane.b32.xlu0 %v2174, 124
        %v2190 = vpop.permute.xlu0 %2189
        %2191 = vrot.lane.b32.xlu0 %v2176, 124
        %v2192 = vpop.permute.xlu0 %2191
        %v2193 = vsel %vm1099, %v2178, %v2180
        %v2194 = vsel %vm1099, %v2182, %v2184
        %v2195 = vsel %vm1099, %v2186, %v2188
        %v2196 = vsel %vm1099, %v2190, %v2192
        %2201 = vmatpush.msra.mxu0 %v2148
        %2202 = vmatpush.msra.mxu0 %v2147
        %2203 = vmatpush.msra.mxu0 %v2146
        %2204 = vmatpush.msra.mxu0 %v2145
        %2205 = vmatpush.msra.mxu0 %v2144
        %2206 = vmatpush.msra.mxu0 %v2143
        %2207 = vmatpush.msra.mxu0 %v2142
        %2208 = vmatpush.msra.mxu0 %v2141
        %2209 = vmatpush.msra.mxu0 %v2140
        %2210 = vmatpush.msra.mxu0 %v2139
        %2211 = vmatpush.msra.mxu0 %v2138
        %2212 = vmatpush.msra.mxu0 %v2137
        %2213 = vmatpush.msra.mxu0 %v2136
        %2214 = vmatpush.msra.mxu0 %v2135
        %2215 = vmatpush.msra.mxu0 %v2134
        %2216 = vmatpush.msra.mxu0 %v2133
        %2217 = vmatmul.f32.gmra.mxu0 %v2193
        %v2218 = vpop.f32.mrf.mxu0
        %v2219 = vadd.f32 0.0, %v2218
        %2220 = vmatmul.f32.gmra.mxu0 %v2194
        %v2221 = vpop.f32.mrf.mxu0
        %v2222 = vadd.f32 0.0, %v2221
        %2223 = vmatmul.f32.gmra.mxu0 %v2195
        %v2224 = vpop.f32.mrf.mxu0
        %v2225 = vadd.f32 0.0, %v2224
        %2226 = vmatmul.f32.gmra.mxu0 %v2196
        %v2227 = vpop.f32.mrf.mxu0
        %v2228 = vadd.f32 0.0, %v2227
        %2229 = vdwg.mxu0
        %v2230 = vadd.f32 %v2118, %v2219
        %v2231 = vadd.f32 %v2119, %v2222
        %v2232 = vadd.f32 %v2120, %v2225
        %v2233 = vadd.f32 %v2121, %v2228
        %s2234 = scalar_lea.vmem [#allocation9], 1792
        %v2235 = vld [vmem:[%s2234] sm:$0xff]
        %v2236 = vld [vmem:[%s2234 + $0x8] sm:$0xff]
        %v2237 = vld [vmem:[%s2234 + $0x10] sm:$0xff]
        %v2238 = vld [vmem:[%s2234 + $0x18] sm:$0xff]
        %v2239 = vld [vmem:[%s2234 + $0x20] sm:$0xff]
        %v2240 = vld [vmem:[%s2234 + $0x28] sm:$0xff]
        %v2241 = vld [vmem:[%s2234 + $0x30] sm:$0xff]
        %v2242 = vld [vmem:[%s2234 + $0x38] sm:$0xff]
        %v2243 = vld [vmem:[%s2234 + $0x40] sm:$0xff]
        %v2244 = vld [vmem:[%s2234 + $0x48] sm:$0xff]
        %v2245 = vld [vmem:[%s2234 + $0x50] sm:$0xff]
        %v2246 = vld [vmem:[%s2234 + $0x58] sm:$0xff]
        %v2247 = vld [vmem:[%s2234 + $0x60] sm:$0xff]
        %v2248 = vld [vmem:[%s2234 + $0x68] sm:$0xff]
        %v2249 = vld [vmem:[%s2234 + $0x70] sm:$0xff]
        %v2250 = vld [vmem:[%s2234 + $0x78] sm:$0xff]
        %2251 = vrot.lane.b32.xlu0 %v2161, 120
        %v2252 = vpop.permute.xlu0 %2251
        %2253 = vrot.lane.b32.xlu0 %v2164, 120
        %v2254 = vpop.permute.xlu0 %2253
        %2255 = vrot.lane.b32.xlu0 %v2166, 120
        %v2256 = vpop.permute.xlu0 %2255
        %2257 = vrot.lane.b32.xlu0 %v2168, 120
        %v2258 = vpop.permute.xlu0 %2257
        %2259 = vrot.lane.b32.xlu0 %v2170, 120
        %v2260 = vpop.permute.xlu0 %2259
        %2261 = vrot.lane.b32.xlu0 %v2172, 120
        %v2262 = vpop.permute.xlu0 %2261
        %2263 = vrot.lane.b32.xlu0 %v2174, 120
        %v2264 = vpop.permute.xlu0 %2263
        %2265 = vrot.lane.b32.xlu0 %v2176, 120
        %v2266 = vpop.permute.xlu0 %2265
        %v2267 = vsel %vm1199, %v2252, %v2254
        %v2268 = vsel %vm1199, %v2256, %v2258
        %v2269 = vsel %vm1199, %v2260, %v2262
        %v2270 = vsel %vm1199, %v2264, %v2266
        %2275 = vmatpush.msra.mxu0 %v2250
        %2276 = vmatpush.msra.mxu0 %v2249
        %2277 = vmatpush.msra.mxu0 %v2248
        %2278 = vmatpush.msra.mxu0 %v2247
        %2279 = vmatpush.msra.mxu0 %v2246
        %2280 = vmatpush.msra.mxu0 %v2245
        %2281 = vmatpush.msra.mxu0 %v2244
        %2282 = vmatpush.msra.mxu0 %v2243
        %2283 = vmatpush.msra.mxu0 %v2242
        %2284 = vmatpush.msra.mxu0 %v2241
        %2285 = vmatpush.msra.mxu0 %v2240
        %2286 = vmatpush.msra.mxu0 %v2239
        %2287 = vmatpush.msra.mxu0 %v2238
        %2288 = vmatpush.msra.mxu0 %v2237
        %2289 = vmatpush.msra.mxu0 %v2236
        %2290 = vmatpush.msra.mxu0 %v2235
        %2291 = vmatmul.f32.gmra.mxu0 %v2267
        %v2292 = vpop.f32.mrf.mxu0
        %v2293 = vadd.f32 0.0, %v2292
        %2294 = vmatmul.f32.gmra.mxu0 %v2268
        %v2295 = vpop.f32.mrf.mxu0
        %v2296 = vadd.f32 0.0, %v2295
        %2297 = vmatmul.f32.gmra.mxu0 %v2269
        %v2298 = vpop.f32.mrf.mxu0
        %v2299 = vadd.f32 0.0, %v2298
        %2300 = vmatmul.f32.gmra.mxu0 %v2270
        %v2301 = vpop.f32.mrf.mxu0
        %v2302 = vadd.f32 0.0, %v2301
        %2303 = vdwg.mxu0
        %v2304 = vadd.f32 %v2230, %v2293
        %v2305 = vadd.f32 %v2231, %v2296
        %v2306 = vadd.f32 %v2232, %v2299
        %v2307 = vadd.f32 %v2233, %v2302
        %v2308 = vld [vmem:[#allocation2] sm:$0xfc]
        %v2309 = vld [vmem:[#allocation2 + $0x40] sm:$0x3]
        %s2310 = scalar_lea.vmem [#allocation9], 1920
        %v2311 = vld [vmem:[%s2310] sm:$0xff]
        %v2312 = vld [vmem:[%s2310 + $0x8] sm:$0xff]
        %v2313 = vld [vmem:[%s2310 + $0x10] sm:$0xff]
        %v2314 = vld [vmem:[%s2310 + $0x18] sm:$0xff]
        %v2315 = vld [vmem:[%s2310 + $0x20] sm:$0xff]
        %v2316 = vld [vmem:[%s2310 + $0x28] sm:$0xff]
        %v2317 = vld [vmem:[%s2310 + $0x30] sm:$0xff]
        %v2318 = vld [vmem:[%s2310 + $0x38] sm:$0xff]
        %v2319 = vld [vmem:[%s2310 + $0x40] sm:$0xff]
        %v2320 = vld [vmem:[%s2310 + $0x48] sm:$0xff]
        %v2321 = vld [vmem:[%s2310 + $0x50] sm:$0xff]
        %v2322 = vld [vmem:[%s2310 + $0x58] sm:$0xff]
        %v2323 = vld [vmem:[%s2310 + $0x60] sm:$0xff]
        %v2324 = vld [vmem:[%s2310 + $0x68] sm:$0xff]
        %v2325 = vld [vmem:[%s2310 + $0x70] sm:$0xff]
        %v2326 = vld [vmem:[%s2310 + $0x78] sm:$0xff]
        %v2329 = vrot.slane %v2308, 2
        %v2330 = vrot.slane %v2050, 2
        %v2331 = vsel %vm1522, %v2329, %v2330
        %v2332 = vrot.slane %v2051, 2
        %v2333 = vsel %vm1522, %v2330, %v2332
        %v2334 = vrot.slane %v2052, 2
        %v2335 = vsel %vm1522, %v2332, %v2334
        %v2336 = vrot.slane %v2309, 2
        %v2337 = vsel %vm1522, %v2334, %v2336
        %2342 = vmatpush.msra.mxu0 %v2326
        %2343 = vmatpush.msra.mxu0 %v2325
        %2344 = vmatpush.msra.mxu0 %v2324
        %2345 = vmatpush.msra.mxu0 %v2323
        %2346 = vmatpush.msra.mxu0 %v2322
        %2347 = vmatpush.msra.mxu0 %v2321
        %2348 = vmatpush.msra.mxu0 %v2320
        %2349 = vmatpush.msra.mxu0 %v2319
        %2350 = vmatpush.msra.mxu0 %v2318
        %2351 = vmatpush.msra.mxu0 %v2317
        %2352 = vmatpush.msra.mxu0 %v2316
        %2353 = vmatpush.msra.mxu0 %v2315
        %2354 = vmatpush.msra.mxu0 %v2314
        %2355 = vmatpush.msra.mxu0 %v2313
        %2356 = vmatpush.msra.mxu0 %v2312
        %2357 = vmatpush.msra.mxu0 %v2311
        %2358 = vmatmul.f32.gmra.mxu0 %v2331
        %v2359 = vpop.f32.mrf.mxu0
        %v2360 = vadd.f32 0.0, %v2359
        %2361 = vmatmul.f32.gmra.mxu0 %v2333
        %v2362 = vpop.f32.mrf.mxu0
        %v2363 = vadd.f32 0.0, %v2362
        %2364 = vmatmul.f32.gmra.mxu0 %v2335
        %v2365 = vpop.f32.mrf.mxu0
        %v2366 = vadd.f32 0.0, %v2365
        %2367 = vmatmul.f32.gmra.mxu0 %v2337
        %v2368 = vpop.f32.mrf.mxu0
        %v2369 = vadd.f32 0.0, %v2368
        %2370 = vdwg.mxu0
        %v2371 = vadd.f32 %v2304, %v2360
        %v2372 = vadd.f32 %v2305, %v2363
        %v2373 = vadd.f32 %v2306, %v2366
        %v2374 = vadd.f32 %v2307, %v2369
        %v2375 = vld [vmem:[#allocation2] sm:$0xfc]
        %v2376 = vld [vmem:[#allocation2 + $0x8] sm:$0xfc]
        %v2377 = vld [vmem:[#allocation2 + $0x40] sm:$0x3]
        %v2378 = vld [vmem:[#allocation2 + $0x48] sm:$0x3]
        %s2379 = scalar_lea.vmem [#allocation9], 2048
        %v2380 = vld [vmem:[%s2379] sm:$0xff]
        %v2381 = vld [vmem:[%s2379 + $0x8] sm:$0xff]
        %v2382 = vld [vmem:[%s2379 + $0x10] sm:$0xff]
        %v2383 = vld [vmem:[%s2379 + $0x18] sm:$0xff]
        %v2384 = vld [vmem:[%s2379 + $0x20] sm:$0xff]
        %v2385 = vld [vmem:[%s2379 + $0x28] sm:$0xff]
        %v2386 = vld [vmem:[%s2379 + $0x30] sm:$0xff]
        %v2387 = vld [vmem:[%s2379 + $0x38] sm:$0xff]
        %v2388 = vld [vmem:[%s2379 + $0x40] sm:$0xff]
        %v2389 = vld [vmem:[%s2379 + $0x48] sm:$0xff]
        %v2390 = vld [vmem:[%s2379 + $0x50] sm:$0xff]
        %v2391 = vld [vmem:[%s2379 + $0x58] sm:$0xff]
        %v2392 = vld [vmem:[%s2379 + $0x60] sm:$0xff]
        %v2393 = vld [vmem:[%s2379 + $0x68] sm:$0xff]
        %v2394 = vld [vmem:[%s2379 + $0x70] sm:$0xff]
        %v2395 = vld [vmem:[%s2379 + $0x78] sm:$0xff]
        %v2400 = vrot.slane %v2375, 2
        %v2401 = vrot.slane %v2124, 2
        %v2402 = vsel %vm1522, %v2400, %v2401
        %v2403 = vrot.slane %v2376, 2
        %v2404 = vrot.slane %v2125, 2
        %v2405 = vsel %vm1522, %v2403, %v2404
        %v2406 = vrot.slane %v2126, 2
        %v2407 = vsel %vm1522, %v2401, %v2406
        %v2408 = vrot.slane %v2127, 2
        %v2409 = vsel %vm1522, %v2404, %v2408
        %v2410 = vrot.slane %v2128, 2
        %v2411 = vsel %vm1522, %v2406, %v2410
        %v2412 = vrot.slane %v2129, 2
        %v2413 = vsel %vm1522, %v2408, %v2412
        %v2414 = vrot.slane %v2377, 2
        %v2415 = vsel %vm1522, %v2410, %v2414
        %v2416 = vrot.slane %v2378, 2
        %v2417 = vsel %vm1522, %v2412, %v2416
        %2418 = vrot.lane.b32.xlu0 %v2402, 124
        %v2419 = vpop.permute.xlu0 %2418
        %2420 = vrot.lane.b32.xlu0 %v2405, 124
        %v2421 = vpop.permute.xlu0 %2420
        %2422 = vrot.lane.b32.xlu0 %v2407, 124
        %v2423 = vpop.permute.xlu0 %2422
        %2424 = vrot.lane.b32.xlu0 %v2409, 124
        %v2425 = vpop.permute.xlu0 %2424
        %2426 = vrot.lane.b32.xlu0 %v2411, 124
        %v2427 = vpop.permute.xlu0 %2426
        %2428 = vrot.lane.b32.xlu0 %v2413, 124
        %v2429 = vpop.permute.xlu0 %2428
        %2430 = vrot.lane.b32.xlu0 %v2415, 124
        %v2431 = vpop.permute.xlu0 %2430
        %2432 = vrot.lane.b32.xlu0 %v2417, 124
        %v2433 = vpop.permute.xlu0 %2432
        %v2434 = vsel %vm1099, %v2419, %v2421
        %v2435 = vsel %vm1099, %v2423, %v2425
        %v2436 = vsel %vm1099, %v2427, %v2429
        %v2437 = vsel %vm1099, %v2431, %v2433
        %2442 = vmatpush.msra.mxu0 %v2395
        %2443 = vmatpush.msra.mxu0 %v2394
        %2444 = vmatpush.msra.mxu0 %v2393
        %2445 = vmatpush.msra.mxu0 %v2392
        %2446 = vmatpush.msra.mxu0 %v2391
        %2447 = vmatpush.msra.mxu0 %v2390
        %2448 = vmatpush.msra.mxu0 %v2389
        %2449 = vmatpush.msra.mxu0 %v2388
        %2450 = vmatpush.msra.mxu0 %v2387
        %2451 = vmatpush.msra.mxu0 %v2386
        %2452 = vmatpush.msra.mxu0 %v2385
        %2453 = vmatpush.msra.mxu0 %v2384
        %2454 = vmatpush.msra.mxu0 %v2383
        %2455 = vmatpush.msra.mxu0 %v2382
        %2456 = vmatpush.msra.mxu0 %v2381
        %2457 = vmatpush.msra.mxu0 %v2380
        %2458 = vmatmul.f32.gmra.mxu0 %v2434
        %v2459 = vpop.f32.mrf.mxu0
        %v2460 = vadd.f32 0.0, %v2459
        %2461 = vmatmul.f32.gmra.mxu0 %v2435
        %v2462 = vpop.f32.mrf.mxu0
        %v2463 = vadd.f32 0.0, %v2462
        %2464 = vmatmul.f32.gmra.mxu0 %v2436
        %v2465 = vpop.f32.mrf.mxu0
        %v2466 = vadd.f32 0.0, %v2465
        %2467 = vmatmul.f32.gmra.mxu0 %v2437
        %v2468 = vpop.f32.mrf.mxu0
        %v2469 = vadd.f32 0.0, %v2468
        %2470 = vdwg.mxu0
        %v2471 = vadd.f32 %v2371, %v2460
        %v2472 = vadd.f32 %v2372, %v2463
        %v2473 = vadd.f32 %v2373, %v2466
        %v2474 = vadd.f32 %v2374, %v2469
        %s2475 = scalar_lea.vmem [#allocation9], 2176
        %v2476 = vld [vmem:[%s2475] sm:$0xff]
        %v2477 = vld [vmem:[%s2475 + $0x8] sm:$0xff]
        %v2478 = vld [vmem:[%s2475 + $0x10] sm:$0xff]
        %v2479 = vld [vmem:[%s2475 + $0x18] sm:$0xff]
        %v2480 = vld [vmem:[%s2475 + $0x20] sm:$0xff]
        %v2481 = vld [vmem:[%s2475 + $0x28] sm:$0xff]
        %v2482 = vld [vmem:[%s2475 + $0x30] sm:$0xff]
        %v2483 = vld [vmem:[%s2475 + $0x38] sm:$0xff]
        %v2484 = vld [vmem:[%s2475 + $0x40] sm:$0xff]
        %v2485 = vld [vmem:[%s2475 + $0x48] sm:$0xff]
        %v2486 = vld [vmem:[%s2475 + $0x50] sm:$0xff]
        %v2487 = vld [vmem:[%s2475 + $0x58] sm:$0xff]
        %v2488 = vld [vmem:[%s2475 + $0x60] sm:$0xff]
        %v2489 = vld [vmem:[%s2475 + $0x68] sm:$0xff]
        %v2490 = vld [vmem:[%s2475 + $0x70] sm:$0xff]
        %v2491 = vld [vmem:[%s2475 + $0x78] sm:$0xff]
        %2492 = vrot.lane.b32.xlu0 %v2402, 120
        %v2493 = vpop.permute.xlu0 %2492
        %2494 = vrot.lane.b32.xlu0 %v2405, 120
        %v2495 = vpop.permute.xlu0 %2494
        %2496 = vrot.lane.b32.xlu0 %v2407, 120
        %v2497 = vpop.permute.xlu0 %2496
        %2498 = vrot.lane.b32.xlu0 %v2409, 120
        %v2499 = vpop.permute.xlu0 %2498
        %2500 = vrot.lane.b32.xlu0 %v2411, 120
        %v2501 = vpop.permute.xlu0 %2500
        %2502 = vrot.lane.b32.xlu0 %v2413, 120
        %v2503 = vpop.permute.xlu0 %2502
        %2504 = vrot.lane.b32.xlu0 %v2415, 120
        %v2505 = vpop.permute.xlu0 %2504
        %2506 = vrot.lane.b32.xlu0 %v2417, 120
        %v2507 = vpop.permute.xlu0 %2506
        %v2508 = vsel %vm1199, %v2493, %v2495
        %v2509 = vsel %vm1199, %v2497, %v2499
        %v2510 = vsel %vm1199, %v2501, %v2503
        %v2511 = vsel %vm1199, %v2505, %v2507
        %2516 = vmatpush.msra.mxu0 %v2491
        %2517 = vmatpush.msra.mxu0 %v2490
        %2518 = vmatpush.msra.mxu0 %v2489
        %2519 = vmatpush.msra.mxu0 %v2488
        %2520 = vmatpush.msra.mxu0 %v2487
        %2521 = vmatpush.msra.mxu0 %v2486
        %2522 = vmatpush.msra.mxu0 %v2485
        %2523 = vmatpush.msra.mxu0 %v2484
        %2524 = vmatpush.msra.mxu0 %v2483
        %2525 = vmatpush.msra.mxu0 %v2482
        %2526 = vmatpush.msra.mxu0 %v2481
        %2527 = vmatpush.msra.mxu0 %v2480
        %2528 = vmatpush.msra.mxu0 %v2479
        %2529 = vmatpush.msra.mxu0 %v2478
        %2530 = vmatpush.msra.mxu0 %v2477
        %2531 = vmatpush.msra.mxu0 %v2476
        %2532 = vmatmul.f32.gmra.mxu0 %v2508
        %v2533 = vpop.f32.mrf.mxu0
        %v2534 = vadd.f32 0.0, %v2533
        %2535 = vmatmul.f32.gmra.mxu0 %v2509
        %v2536 = vpop.f32.mrf.mxu0
        %v2537 = vadd.f32 0.0, %v2536
        %2538 = vmatmul.f32.gmra.mxu0 %v2510
        %v2539 = vpop.f32.mrf.mxu0
        %v2540 = vadd.f32 0.0, %v2539
        %2541 = vmatmul.f32.gmra.mxu0 %v2511
        %v2542 = vpop.f32.mrf.mxu0
        %v2543 = vadd.f32 0.0, %v2542
        %2544 = vdwg.mxu0
        %v2545 = vadd.f32 %v2471, %v2534
        %v2546 = vadd.f32 %v2472, %v2537
        %v2547 = vadd.f32 %v2473, %v2540
        %v2548 = vadd.f32 %v2474, %v2543
        %s2549 = scalar_lea.vmem [#allocation11], 1
        %v2550 = vld [vmem:[%s2549] sm:$0x1]
        %v2552 = vperm.slane %v2550, 0
        %v2554 = vadd.f32 %v2545, %v2552
        %v2555 = vadd.f32 %v2546, %v2552
        %v2556 = vadd.f32 %v2547, %v2552
        %v2557 = vadd.f32 %v2548, %v2552
        %v2558 = vmax.f32 %v2554, 0.0
        %v2559 = vmax.f32 %v2555, 0.0
        %v2560 = vmax.f32 %v2556, 0.0
        %v2561 = vmax.f32 %v2557, 0.0
        %v2562 = vand.u32 2147483647, %v2554
        %v2563 = vand.u32 2147483647, %v2555
        %v2564 = vand.u32 2147483647, %v2556
        %v2565 = vand.u32 2147483647, %v2557
        %v2566 = vsub.f32 0.0, %v2562
        %v2567 = vsub.f32 0.0, %v2563
        %v2568 = vsub.f32 0.0, %v2564
        %v2569 = vsub.f32 0.0, %v2565
        %v2570 = vmul.f32 %v2566, 1.442695
        %v2571 = vpow.pop %v2570
        %v2572 = vmul.f32 %v2567, 1.442695
        %v2573 = vpow.pop %v2572
        %v2574 = vmul.f32 %v2568, 1.442695
        %v2575 = vpow.pop %v2574
        %v2576 = vmul.f32 %v2569, 1.442695
        %v2577 = vpow.pop %v2576
        %v2578 = vadd.f32 %v2571, 1.0
        %v2579 = vadd.f32 %v2573, 1.0
        %v2580 = vadd.f32 %v2575, 1.0
        %v2581 = vadd.f32 %v2577, 1.0
        %v2582 = vlog2.pop %v2578
        %v2583 = vmul.f32 %v2582, 0.6931472
        %v2584 = vlog2.pop %v2579
        %v2585 = vmul.f32 %v2584, 0.6931472
        %v2586 = vlog2.pop %v2580
        %v2587 = vmul.f32 %v2586, 0.6931472
        %v2588 = vlog2.pop %v2581
        %v2589 = vmul.f32 %v2588, 0.6931472
        %v2590 = vadd.f32 %v2558, %v2583
        %v2591 = vadd.f32 %v2559, %v2585
        %v2592 = vadd.f32 %v2560, %v2587
        %v2593 = vadd.f32 %v2561, %v2589
        %v2594 = vmul.f32 %v2554, 0.1
        %v2595 = vmul.f32 %v2555, 0.1
        %v2596 = vmul.f32 %v2556, 0.1
        %v2597 = vmul.f32 %v2557, 0.1
        %v2598 = vmul.f32 %v2590, 0.9
        %v2599 = vmul.f32 %v2591, 0.9
        %v2600 = vmul.f32 %v2592, 0.9
        %v2601 = vmul.f32 %v2593, 0.9
        %v2602 = vadd.f32 %v2594, %v2598
        %v2603 = vadd.f32 %v2595, %v2599
        %v2604 = vadd.f32 %v2596, %v2600
        %v2605 = vadd.f32 %v2597, %v2601
        %v2606 = vmul.f32 %v2602, 0.1
        %v2607 = vmul.f32 %v2603, 0.1
        %v2608 = vmul.f32 %v2604, 0.1
        %v2609 = vmul.f32 %v2605, 0.1
        %v2610 = vadd.f32 %v1803, %v2606
        %v2611 = vadd.f32 %v1804, %v2607
        %v2612 = vadd.f32 %v1805, %v2608
        %v2613 = vadd.f32 %v1806, %v2609
        %v2614 = vld [vmem:[#allocation14] sm:$0x1]
        %v2615 = vld [vmem:[#allocation12] sm:$0xff]
        %v2616 = vld [vmem:[#allocation12 + $0x8] sm:$0xff]
        %v2617 = vld [vmem:[#allocation12 + $0x10] sm:$0xff]
        %v2618 = vld [vmem:[#allocation12 + $0x18] sm:$0xff]
        %v2619 = vld [vmem:[#allocation12 + $0x20] sm:$0xff]
        %v2620 = vld [vmem:[#allocation12 + $0x28] sm:$0xff]
        %v2621 = vld [vmem:[#allocation12 + $0x30] sm:$0xff]
        %v2622 = vld [vmem:[#allocation12 + $0x38] sm:$0xff]
        %v2623 = vld [vmem:[#allocation12 + $0x40] sm:$0xff]
        %v2624 = vld [vmem:[#allocation12 + $0x48] sm:$0xff]
        %v2625 = vld [vmem:[#allocation12 + $0x50] sm:$0xff]
        %v2626 = vld [vmem:[#allocation12 + $0x58] sm:$0xff]
        %v2627 = vld [vmem:[#allocation12 + $0x60] sm:$0xff]
        %v2628 = vld [vmem:[#allocation12 + $0x68] sm:$0xff]
        %v2629 = vld [vmem:[#allocation12 + $0x70] sm:$0xff]
        %v2630 = vld [vmem:[#allocation12 + $0x78] sm:$0xff]
        %2631 = vmatpush.msra.mxu0 %v2630
        %2632 = vmatpush.msra.mxu0 %v2629
        %2633 = vmatpush.msra.mxu0 %v2628
        %2634 = vmatpush.msra.mxu0 %v2627
        %2635 = vmatpush.msra.mxu0 %v2626
        %2636 = vmatpush.msra.mxu0 %v2625
        %2637 = vmatpush.msra.mxu0 %v2624
        %2638 = vmatpush.msra.mxu0 %v2623
        %2639 = vmatpush.msra.mxu0 %v2622
        %2640 = vmatpush.msra.mxu0 %v2621
        %2641 = vmatpush.msra.mxu0 %v2620
        %2642 = vmatpush.msra.mxu0 %v2619
        %2643 = vmatpush.msra.mxu0 %v2618
        %2644 = vmatpush.msra.mxu0 %v2617
        %2645 = vmatpush.msra.mxu0 %v2616
        %2646 = vmatpush.msra.mxu0 %v2615
        %2647 = vmatmul.f32.gmra.mxu0 %v2610
        %v2648 = vpop.f32.mrf.mxu0
        %v2649 = vadd.f32 0.0, %v2648
        %2650 = vdwg.mxu0
        %v2651 = vadd.f32 %v2614, %v2649
        %s2652 = scalar_lea.vmem [#allocation12], 128
        %v2653 = vld [vmem:[%s2652] sm:$0xff]
        %v2654 = vld [vmem:[%s2652 + $0x8] sm:$0xff]
        %v2655 = vld [vmem:[%s2652 + $0x10] sm:$0xff]
        %v2656 = vld [vmem:[%s2652 + $0x18] sm:$0xff]
        %v2657 = vld [vmem:[%s2652 + $0x20] sm:$0xff]
        %v2658 = vld [vmem:[%s2652 + $0x28] sm:$0xff]
        %v2659 = vld [vmem:[%s2652 + $0x30] sm:$0xff]
        %v2660 = vld [vmem:[%s2652 + $0x38] sm:$0xff]
        %v2661 = vld [vmem:[%s2652 + $0x40] sm:$0xff]
        %v2662 = vld [vmem:[%s2652 + $0x48] sm:$0xff]
        %v2663 = vld [vmem:[%s2652 + $0x50] sm:$0xff]
        %v2664 = vld [vmem:[%s2652 + $0x58] sm:$0xff]
        %v2665 = vld [vmem:[%s2652 + $0x60] sm:$0xff]
        %v2666 = vld [vmem:[%s2652 + $0x68] sm:$0xff]
        %v2667 = vld [vmem:[%s2652 + $0x70] sm:$0xff]
        %v2668 = vld [vmem:[%s2652 + $0x78] sm:$0xff]
        %v2670 = vrot.slane %v2610, 1
        %2672 = vmatpush.msra.mxu0 %v2668
        %2673 = vmatpush.msra.mxu0 %v2667
        %2674 = vmatpush.msra.mxu0 %v2666
        %2675 = vmatpush.msra.mxu0 %v2665
        %2676 = vmatpush.msra.mxu0 %v2664
        %2677 = vmatpush.msra.mxu0 %v2663
        %2678 = vmatpush.msra.mxu0 %v2662
        %2679 = vmatpush.msra.mxu0 %v2661
        %2680 = vmatpush.msra.mxu0 %v2660
        %2681 = vmatpush.msra.mxu0 %v2659
        %2682 = vmatpush.msra.mxu0 %v2658
        %2683 = vmatpush.msra.mxu0 %v2657
        %2684 = vmatpush.msra.mxu0 %v2656
        %2685 = vmatpush.msra.mxu0 %v2655
        %2686 = vmatpush.msra.mxu0 %v2654
        %2687 = vmatpush.msra.mxu0 %v2653
        %2688 = vmatmul.f32.gmra.mxu0 %v2670
        %v2689 = vpop.f32.mrf.mxu0
        %v2690 = vadd.f32 0.0, %v2689
        %2691 = vdwg.mxu0
        %v2692 = vadd.f32 %v2651, %v2690
        %s2693 = scalar_lea.vmem [#allocation12], 256
        %v2694 = vld [vmem:[%s2693] sm:$0xff]
        %v2695 = vld [vmem:[%s2693 + $0x8] sm:$0xff]
        %v2696 = vld [vmem:[%s2693 + $0x10] sm:$0xff]
        %v2697 = vld [vmem:[%s2693 + $0x18] sm:$0xff]
        %v2698 = vld [vmem:[%s2693 + $0x20] sm:$0xff]
        %v2699 = vld [vmem:[%s2693 + $0x28] sm:$0xff]
        %v2700 = vld [vmem:[%s2693 + $0x30] sm:$0xff]
        %v2701 = vld [vmem:[%s2693 + $0x38] sm:$0xff]
        %v2702 = vld [vmem:[%s2693 + $0x40] sm:$0xff]
        %v2703 = vld [vmem:[%s2693 + $0x48] sm:$0xff]
        %v2704 = vld [vmem:[%s2693 + $0x50] sm:$0xff]
        %v2705 = vld [vmem:[%s2693 + $0x58] sm:$0xff]
        %v2706 = vld [vmem:[%s2693 + $0x60] sm:$0xff]
        %v2707 = vld [vmem:[%s2693 + $0x68] sm:$0xff]
        %v2708 = vld [vmem:[%s2693 + $0x70] sm:$0xff]
        %v2709 = vld [vmem:[%s2693 + $0x78] sm:$0xff]
        %v2710 = vrot.slane %v2610, 2
        %2712 = vmatpush.msra.mxu0 %v2709
        %2713 = vmatpush.msra.mxu0 %v2708
        %2714 = vmatpush.msra.mxu0 %v2707
        %2715 = vmatpush.msra.mxu0 %v2706
        %2716 = vmatpush.msra.mxu0 %v2705
        %2717 = vmatpush.msra.mxu0 %v2704
        %2718 = vmatpush.msra.mxu0 %v2703
        %2719 = vmatpush.msra.mxu0 %v2702
        %2720 = vmatpush.msra.mxu0 %v2701
        %2721 = vmatpush.msra.mxu0 %v2700
        %2722 = vmatpush.msra.mxu0 %v2699
        %2723 = vmatpush.msra.mxu0 %v2698
        %2724 = vmatpush.msra.mxu0 %v2697
        %2725 = vmatpush.msra.mxu0 %v2696
        %2726 = vmatpush.msra.mxu0 %v2695
        %2727 = vmatpush.msra.mxu0 %v2694
        %2728 = vmatmul.f32.gmra.mxu0 %v2710
        %v2729 = vpop.f32.mrf.mxu0
        %v2730 = vadd.f32 0.0, %v2729
        %2731 = vdwg.mxu0
        %v2732 = vadd.f32 %v2692, %v2730
        %s2733 = scalar_lea.vmem [#allocation12], 384
        %v2734 = vld [vmem:[%s2733] sm:$0xff]
        %v2735 = vld [vmem:[%s2733 + $0x8] sm:$0xff]
        %v2736 = vld [vmem:[%s2733 + $0x10] sm:$0xff]
        %v2737 = vld [vmem:[%s2733 + $0x18] sm:$0xff]
        %v2738 = vld [vmem:[%s2733 + $0x20] sm:$0xff]
        %v2739 = vld [vmem:[%s2733 + $0x28] sm:$0xff]
        %v2740 = vld [vmem:[%s2733 + $0x30] sm:$0xff]
        %v2741 = vld [vmem:[%s2733 + $0x38] sm:$0xff]
        %v2742 = vld [vmem:[%s2733 + $0x40] sm:$0xff]
        %v2743 = vld [vmem:[%s2733 + $0x48] sm:$0xff]
        %v2744 = vld [vmem:[%s2733 + $0x50] sm:$0xff]
        %v2745 = vld [vmem:[%s2733 + $0x58] sm:$0xff]
        %v2746 = vld [vmem:[%s2733 + $0x60] sm:$0xff]
        %v2747 = vld [vmem:[%s2733 + $0x68] sm:$0xff]
        %v2748 = vld [vmem:[%s2733 + $0x70] sm:$0xff]
        %v2749 = vld [vmem:[%s2733 + $0x78] sm:$0xff]
        %v2750 = vrot.slane %v2610, 3
        %2752 = vmatpush.msra.mxu0 %v2749
        %2753 = vmatpush.msra.mxu0 %v2748
        %2754 = vmatpush.msra.mxu0 %v2747
        %2755 = vmatpush.msra.mxu0 %v2746
        %2756 = vmatpush.msra.mxu0 %v2745
        %2757 = vmatpush.msra.mxu0 %v2744
        %2758 = vmatpush.msra.mxu0 %v2743
        %2759 = vmatpush.msra.mxu0 %v2742
        %2760 = vmatpush.msra.mxu0 %v2741
        %2761 = vmatpush.msra.mxu0 %v2740
        %2762 = vmatpush.msra.mxu0 %v2739
        %2763 = vmatpush.msra.mxu0 %v2738
        %2764 = vmatpush.msra.mxu0 %v2737
        %2765 = vmatpush.msra.mxu0 %v2736
        %2766 = vmatpush.msra.mxu0 %v2735
        %2767 = vmatpush.msra.mxu0 %v2734
        %2768 = vmatmul.f32.gmra.mxu0 %v2750
        %v2769 = vpop.f32.mrf.mxu0
        %v2770 = vadd.f32 0.0, %v2769
        %2771 = vdwg.mxu0
        %v2772 = vadd.f32 %v2732, %v2770
        %s2773 = scalar_lea.vmem [#allocation12], 512
        %v2774 = vld [vmem:[%s2773] sm:$0xff]
        %v2775 = vld [vmem:[%s2773 + $0x8] sm:$0xff]
        %v2776 = vld [vmem:[%s2773 + $0x10] sm:$0xff]
        %v2777 = vld [vmem:[%s2773 + $0x18] sm:$0xff]
        %v2778 = vld [vmem:[%s2773 + $0x20] sm:$0xff]
        %v2779 = vld [vmem:[%s2773 + $0x28] sm:$0xff]
        %v2780 = vld [vmem:[%s2773 + $0x30] sm:$0xff]
        %v2781 = vld [vmem:[%s2773 + $0x38] sm:$0xff]
        %v2782 = vld [vmem:[%s2773 + $0x40] sm:$0xff]
        %v2783 = vld [vmem:[%s2773 + $0x48] sm:$0xff]
        %v2784 = vld [vmem:[%s2773 + $0x50] sm:$0xff]
        %v2785 = vld [vmem:[%s2773 + $0x58] sm:$0xff]
        %v2786 = vld [vmem:[%s2773 + $0x60] sm:$0xff]
        %v2787 = vld [vmem:[%s2773 + $0x68] sm:$0xff]
        %v2788 = vld [vmem:[%s2773 + $0x70] sm:$0xff]
        %v2789 = vld [vmem:[%s2773 + $0x78] sm:$0xff]
        %v2790 = vrot.slane %v2610, 4
        %2792 = vmatpush.msra.mxu0 %v2789
        %2793 = vmatpush.msra.mxu0 %v2788
        %2794 = vmatpush.msra.mxu0 %v2787
        %2795 = vmatpush.msra.mxu0 %v2786
        %2796 = vmatpush.msra.mxu0 %v2785
        %2797 = vmatpush.msra.mxu0 %v2784
        %2798 = vmatpush.msra.mxu0 %v2783
        %2799 = vmatpush.msra.mxu0 %v2782
        %2800 = vmatpush.msra.mxu0 %v2781
        %2801 = vmatpush.msra.mxu0 %v2780
        %2802 = vmatpush.msra.mxu0 %v2779
        %2803 = vmatpush.msra.mxu0 %v2778
        %2804 = vmatpush.msra.mxu0 %v2777
        %2805 = vmatpush.msra.mxu0 %v2776
        %2806 = vmatpush.msra.mxu0 %v2775
        %2807 = vmatpush.msra.mxu0 %v2774
        %2808 = vmatmul.f32.gmra.mxu0 %v2790
        %v2809 = vpop.f32.mrf.mxu0
        %v2810 = vadd.f32 0.0, %v2809
        %2811 = vdwg.mxu0
        %v2812 = vadd.f32 %v2772, %v2810
        %s2813 = scalar_lea.vmem [#allocation12], 640
        %v2814 = vld [vmem:[%s2813] sm:$0xff]
        %v2815 = vld [vmem:[%s2813 + $0x8] sm:$0xff]
        %v2816 = vld [vmem:[%s2813 + $0x10] sm:$0xff]
        %v2817 = vld [vmem:[%s2813 + $0x18] sm:$0xff]
        %v2818 = vld [vmem:[%s2813 + $0x20] sm:$0xff]
        %v2819 = vld [vmem:[%s2813 + $0x28] sm:$0xff]
        %v2820 = vld [vmem:[%s2813 + $0x30] sm:$0xff]
        %v2821 = vld [vmem:[%s2813 + $0x38] sm:$0xff]
        %v2822 = vld [vmem:[%s2813 + $0x40] sm:$0xff]
        %v2823 = vld [vmem:[%s2813 + $0x48] sm:$0xff]
        %v2824 = vld [vmem:[%s2813 + $0x50] sm:$0xff]
        %v2825 = vld [vmem:[%s2813 + $0x58] sm:$0xff]
        %v2826 = vld [vmem:[%s2813 + $0x60] sm:$0xff]
        %v2827 = vld [vmem:[%s2813 + $0x68] sm:$0xff]
        %v2828 = vld [vmem:[%s2813 + $0x70] sm:$0xff]
        %v2829 = vld [vmem:[%s2813 + $0x78] sm:$0xff]
        %v2830 = vrot.slane %v2610, 5
        %2832 = vmatpush.msra.mxu0 %v2829
        %2833 = vmatpush.msra.mxu0 %v2828
        %2834 = vmatpush.msra.mxu0 %v2827
        %2835 = vmatpush.msra.mxu0 %v2826
        %2836 = vmatpush.msra.mxu0 %v2825
        %2837 = vmatpush.msra.mxu0 %v2824
        %2838 = vmatpush.msra.mxu0 %v2823
        %2839 = vmatpush.msra.mxu0 %v2822
        %2840 = vmatpush.msra.mxu0 %v2821
        %2841 = vmatpush.msra.mxu0 %v2820
        %2842 = vmatpush.msra.mxu0 %v2819
        %2843 = vmatpush.msra.mxu0 %v2818
        %2844 = vmatpush.msra.mxu0 %v2817
        %2845 = vmatpush.msra.mxu0 %v2816
        %2846 = vmatpush.msra.mxu0 %v2815
        %2847 = vmatpush.msra.mxu0 %v2814
        %2848 = vmatmul.f32.gmra.mxu0 %v2830
        %v2849 = vpop.f32.mrf.mxu0
        %v2850 = vadd.f32 0.0, %v2849
        %2851 = vdwg.mxu0
        %v2852 = vadd.f32 %v2812, %v2850
        %s2853 = scalar_lea.vmem [#allocation12], 768
        %v2854 = vld [vmem:[%s2853] sm:$0xff]
        %v2855 = vld [vmem:[%s2853 + $0x8] sm:$0xff]
        %v2856 = vld [vmem:[%s2853 + $0x10] sm:$0xff]
        %v2857 = vld [vmem:[%s2853 + $0x18] sm:$0xff]
        %v2858 = vld [vmem:[%s2853 + $0x20] sm:$0xff]
        %v2859 = vld [vmem:[%s2853 + $0x28] sm:$0xff]
        %v2860 = vld [vmem:[%s2853 + $0x30] sm:$0xff]
        %v2861 = vld [vmem:[%s2853 + $0x38] sm:$0xff]
        %v2862 = vld [vmem:[%s2853 + $0x40] sm:$0xff]
        %v2863 = vld [vmem:[%s2853 + $0x48] sm:$0xff]
        %v2864 = vld [vmem:[%s2853 + $0x50] sm:$0xff]
        %v2865 = vld [vmem:[%s2853 + $0x58] sm:$0xff]
        %v2866 = vld [vmem:[%s2853 + $0x60] sm:$0xff]
        %v2867 = vld [vmem:[%s2853 + $0x68] sm:$0xff]
        %v2868 = vld [vmem:[%s2853 + $0x70] sm:$0xff]
        %v2869 = vld [vmem:[%s2853 + $0x78] sm:$0xff]
        %v2870 = vrot.slane %v2610, 6
        %2872 = vmatpush.msra.mxu0 %v2869
        %2873 = vmatpush.msra.mxu0 %v2868
        %2874 = vmatpush.msra.mxu0 %v2867
        %2875 = vmatpush.msra.mxu0 %v2866
        %2876 = vmatpush.msra.mxu0 %v2865
        %2877 = vmatpush.msra.mxu0 %v2864
        %2878 = vmatpush.msra.mxu0 %v2863
        %2879 = vmatpush.msra.mxu0 %v2862
        %2880 = vmatpush.msra.mxu0 %v2861
        %2881 = vmatpush.msra.mxu0 %v2860
        %2882 = vmatpush.msra.mxu0 %v2859
        %2883 = vmatpush.msra.mxu0 %v2858
        %2884 = vmatpush.msra.mxu0 %v2857
        %2885 = vmatpush.msra.mxu0 %v2856
        %2886 = vmatpush.msra.mxu0 %v2855
        %2887 = vmatpush.msra.mxu0 %v2854
        %2888 = vmatmul.f32.gmra.mxu0 %v2870
        %v2889 = vpop.f32.mrf.mxu0
        %v2890 = vadd.f32 0.0, %v2889
        %2891 = vdwg.mxu0
        %v2892 = vadd.f32 %v2852, %v2890
        %s2893 = scalar_lea.vmem [#allocation12], 896
        %v2894 = vld [vmem:[%s2893] sm:$0xff]
        %v2895 = vld [vmem:[%s2893 + $0x8] sm:$0xff]
        %v2896 = vld [vmem:[%s2893 + $0x10] sm:$0xff]
        %v2897 = vld [vmem:[%s2893 + $0x18] sm:$0xff]
        %v2898 = vld [vmem:[%s2893 + $0x20] sm:$0xff]
        %v2899 = vld [vmem:[%s2893 + $0x28] sm:$0xff]
        %v2900 = vld [vmem:[%s2893 + $0x30] sm:$0xff]
        %v2901 = vld [vmem:[%s2893 + $0x38] sm:$0xff]
        %v2902 = vld [vmem:[%s2893 + $0x40] sm:$0xff]
        %v2903 = vld [vmem:[%s2893 + $0x48] sm:$0xff]
        %v2904 = vld [vmem:[%s2893 + $0x50] sm:$0xff]
        %v2905 = vld [vmem:[%s2893 + $0x58] sm:$0xff]
        %v2906 = vld [vmem:[%s2893 + $0x60] sm:$0xff]
        %v2907 = vld [vmem:[%s2893 + $0x68] sm:$0xff]
        %v2908 = vld [vmem:[%s2893 + $0x70] sm:$0xff]
        %v2909 = vld [vmem:[%s2893 + $0x78] sm:$0xff]
        %v2910 = vrot.slane %v2610, 7
        %2912 = vmatpush.msra.mxu0 %v2909
        %2913 = vmatpush.msra.mxu0 %v2908
        %2914 = vmatpush.msra.mxu0 %v2907
        %2915 = vmatpush.msra.mxu0 %v2906
        %2916 = vmatpush.msra.mxu0 %v2905
        %2917 = vmatpush.msra.mxu0 %v2904
        %2918 = vmatpush.msra.mxu0 %v2903
        %2919 = vmatpush.msra.mxu0 %v2902
        %2920 = vmatpush.msra.mxu0 %v2901
        %2921 = vmatpush.msra.mxu0 %v2900
        %2922 = vmatpush.msra.mxu0 %v2899
        %2923 = vmatpush.msra.mxu0 %v2898
        %2924 = vmatpush.msra.mxu0 %v2897
        %2925 = vmatpush.msra.mxu0 %v2896
        %2926 = vmatpush.msra.mxu0 %v2895
        %2927 = vmatpush.msra.mxu0 %v2894
        %2928 = vmatmul.f32.gmra.mxu0 %v2910
        %v2929 = vpop.f32.mrf.mxu0
        %v2930 = vadd.f32 0.0, %v2929
        %2931 = vdwg.mxu0
        %v2932 = vadd.f32 %v2892, %v2930
        %s2933 = scalar_lea.vmem [#allocation12], 1024
        %v2934 = vld [vmem:[%s2933] sm:$0xff]
        %v2935 = vld [vmem:[%s2933 + $0x8] sm:$0xff]
        %v2936 = vld [vmem:[%s2933 + $0x10] sm:$0xff]
        %v2937 = vld [vmem:[%s2933 + $0x18] sm:$0xff]
        %v2938 = vld [vmem:[%s2933 + $0x20] sm:$0xff]
        %v2939 = vld [vmem:[%s2933 + $0x28] sm:$0xff]
        %v2940 = vld [vmem:[%s2933 + $0x30] sm:$0xff]
        %v2941 = vld [vmem:[%s2933 + $0x38] sm:$0xff]
        %v2942 = vld [vmem:[%s2933 + $0x40] sm:$0xff]
        %v2943 = vld [vmem:[%s2933 + $0x48] sm:$0xff]
        %v2944 = vld [vmem:[%s2933 + $0x50] sm:$0xff]
        %v2945 = vld [vmem:[%s2933 + $0x58] sm:$0xff]
        %v2946 = vld [vmem:[%s2933 + $0x60] sm:$0xff]
        %v2947 = vld [vmem:[%s2933 + $0x68] sm:$0xff]
        %v2948 = vld [vmem:[%s2933 + $0x70] sm:$0xff]
        %v2949 = vld [vmem:[%s2933 + $0x78] sm:$0xff]
        %2950 = vmatpush.msra.mxu0 %v2949
        %2951 = vmatpush.msra.mxu0 %v2948
        %2952 = vmatpush.msra.mxu0 %v2947
        %2953 = vmatpush.msra.mxu0 %v2946
        %2954 = vmatpush.msra.mxu0 %v2945
        %2955 = vmatpush.msra.mxu0 %v2944
        %2956 = vmatpush.msra.mxu0 %v2943
        %2957 = vmatpush.msra.mxu0 %v2942
        %2958 = vmatpush.msra.mxu0 %v2941
        %2959 = vmatpush.msra.mxu0 %v2940
        %2960 = vmatpush.msra.mxu0 %v2939
        %2961 = vmatpush.msra.mxu0 %v2938
        %2962 = vmatpush.msra.mxu0 %v2937
        %2963 = vmatpush.msra.mxu0 %v2936
        %2964 = vmatpush.msra.mxu0 %v2935
        %2965 = vmatpush.msra.mxu0 %v2934
        %2966 = vmatmul.f32.gmra.mxu0 %v2611
        %v2967 = vpop.f32.mrf.mxu0
        %v2968 = vadd.f32 0.0, %v2967
        %2969 = vdwg.mxu0
        %v2970 = vadd.f32 %v2932, %v2968
        %s2971 = scalar_lea.vmem [#allocation12], 1152
        %v2972 = vld [vmem:[%s2971] sm:$0xff]
        %v2973 = vld [vmem:[%s2971 + $0x8] sm:$0xff]
        %v2974 = vld [vmem:[%s2971 + $0x10] sm:$0xff]
        %v2975 = vld [vmem:[%s2971 + $0x18] sm:$0xff]
        %v2976 = vld [vmem:[%s2971 + $0x20] sm:$0xff]
        %v2977 = vld [vmem:[%s2971 + $0x28] sm:$0xff]
        %v2978 = vld [vmem:[%s2971 + $0x30] sm:$0xff]
        %v2979 = vld [vmem:[%s2971 + $0x38] sm:$0xff]
        %v2980 = vld [vmem:[%s2971 + $0x40] sm:$0xff]
        %v2981 = vld [vmem:[%s2971 + $0x48] sm:$0xff]
        %v2982 = vld [vmem:[%s2971 + $0x50] sm:$0xff]
        %v2983 = vld [vmem:[%s2971 + $0x58] sm:$0xff]
        %v2984 = vld [vmem:[%s2971 + $0x60] sm:$0xff]
        %v2985 = vld [vmem:[%s2971 + $0x68] sm:$0xff]
        %v2986 = vld [vmem:[%s2971 + $0x70] sm:$0xff]
        %v2987 = vld [vmem:[%s2971 + $0x78] sm:$0xff]
        %v2989 = vrot.slane %v2611, 1
        %2991 = vmatpush.msra.mxu0 %v2987
        %2992 = vmatpush.msra.mxu0 %v2986
        %2993 = vmatpush.msra.mxu0 %v2985
        %2994 = vmatpush.msra.mxu0 %v2984
        %2995 = vmatpush.msra.mxu0 %v2983
        %2996 = vmatpush.msra.mxu0 %v2982
        %2997 = vmatpush.msra.mxu0 %v2981
        %2998 = vmatpush.msra.mxu0 %v2980
        %2999 = vmatpush.msra.mxu0 %v2979
        %3000 = vmatpush.msra.mxu0 %v2978
        %3001 = vmatpush.msra.mxu0 %v2977
        %3002 = vmatpush.msra.mxu0 %v2976
        %3003 = vmatpush.msra.mxu0 %v2975
        %3004 = vmatpush.msra.mxu0 %v2974
        %3005 = vmatpush.msra.mxu0 %v2973
        %3006 = vmatpush.msra.mxu0 %v2972
        %3007 = vmatmul.f32.gmra.mxu0 %v2989
        %v3008 = vpop.f32.mrf.mxu0
        %v3009 = vadd.f32 0.0, %v3008
        %3010 = vdwg.mxu0
        %v3011 = vadd.f32 %v2970, %v3009
        %s3012 = scalar_lea.vmem [#allocation12], 1280
        %v3013 = vld [vmem:[%s3012] sm:$0xff]
        %v3014 = vld [vmem:[%s3012 + $0x8] sm:$0xff]
        %v3015 = vld [vmem:[%s3012 + $0x10] sm:$0xff]
        %v3016 = vld [vmem:[%s3012 + $0x18] sm:$0xff]
        %v3017 = vld [vmem:[%s3012 + $0x20] sm:$0xff]
        %v3018 = vld [vmem:[%s3012 + $0x28] sm:$0xff]
        %v3019 = vld [vmem:[%s3012 + $0x30] sm:$0xff]
        %v3020 = vld [vmem:[%s3012 + $0x38] sm:$0xff]
        %v3021 = vld [vmem:[%s3012 + $0x40] sm:$0xff]
        %v3022 = vld [vmem:[%s3012 + $0x48] sm:$0xff]
        %v3023 = vld [vmem:[%s3012 + $0x50] sm:$0xff]
        %v3024 = vld [vmem:[%s3012 + $0x58] sm:$0xff]
        %v3025 = vld [vmem:[%s3012 + $0x60] sm:$0xff]
        %v3026 = vld [vmem:[%s3012 + $0x68] sm:$0xff]
        %v3027 = vld [vmem:[%s3012 + $0x70] sm:$0xff]
        %v3028 = vld [vmem:[%s3012 + $0x78] sm:$0xff]
        %v3029 = vrot.slane %v2611, 2
        %3031 = vmatpush.msra.mxu0 %v3028
        %3032 = vmatpush.msra.mxu0 %v3027
        %3033 = vmatpush.msra.mxu0 %v3026
        %3034 = vmatpush.msra.mxu0 %v3025
        %3035 = vmatpush.msra.mxu0 %v3024
        %3036 = vmatpush.msra.mxu0 %v3023
        %3037 = vmatpush.msra.mxu0 %v3022
        %3038 = vmatpush.msra.mxu0 %v3021
        %3039 = vmatpush.msra.mxu0 %v3020
        %3040 = vmatpush.msra.mxu0 %v3019
        %3041 = vmatpush.msra.mxu0 %v3018
        %3042 = vmatpush.msra.mxu0 %v3017
        %3043 = vmatpush.msra.mxu0 %v3016
        %3044 = vmatpush.msra.mxu0 %v3015
        %3045 = vmatpush.msra.mxu0 %v3014
        %3046 = vmatpush.msra.mxu0 %v3013
        %3047 = vmatmul.f32.gmra.mxu0 %v3029
        %v3048 = vpop.f32.mrf.mxu0
        %v3049 = vadd.f32 0.0, %v3048
        %3050 = vdwg.mxu0
        %v3051 = vadd.f32 %v3011, %v3049
        %s3052 = scalar_lea.vmem [#allocation12], 1408
        %v3053 = vld [vmem:[%s3052] sm:$0xff]
        %v3054 = vld [vmem:[%s3052 + $0x8] sm:$0xff]
        %v3055 = vld [vmem:[%s3052 + $0x10] sm:$0xff]
        %v3056 = vld [vmem:[%s3052 + $0x18] sm:$0xff]
        %v3057 = vld [vmem:[%s3052 + $0x20] sm:$0xff]
        %v3058 = vld [vmem:[%s3052 + $0x28] sm:$0xff]
        %v3059 = vld [vmem:[%s3052 + $0x30] sm:$0xff]
        %v3060 = vld [vmem:[%s3052 + $0x38] sm:$0xff]
        %v3061 = vld [vmem:[%s3052 + $0x40] sm:$0xff]
        %v3062 = vld [vmem:[%s3052 + $0x48] sm:$0xff]
        %v3063 = vld [vmem:[%s3052 + $0x50] sm:$0xff]
        %v3064 = vld [vmem:[%s3052 + $0x58] sm:$0xff]
        %v3065 = vld [vmem:[%s3052 + $0x60] sm:$0xff]
        %v3066 = vld [vmem:[%s3052 + $0x68] sm:$0xff]
        %v3067 = vld [vmem:[%s3052 + $0x70] sm:$0xff]
        %v3068 = vld [vmem:[%s3052 + $0x78] sm:$0xff]
        %v3069 = vrot.slane %v2611, 3
        %3071 = vmatpush.msra.mxu0 %v3068
        %3072 = vmatpush.msra.mxu0 %v3067
        %3073 = vmatpush.msra.mxu0 %v3066
        %3074 = vmatpush.msra.mxu0 %v3065
        %3075 = vmatpush.msra.mxu0 %v3064
        %3076 = vmatpush.msra.mxu0 %v3063
        %3077 = vmatpush.msra.mxu0 %v3062
        %3078 = vmatpush.msra.mxu0 %v3061
        %3079 = vmatpush.msra.mxu0 %v3060
        %3080 = vmatpush.msra.mxu0 %v3059
        %3081 = vmatpush.msra.mxu0 %v3058
        %3082 = vmatpush.msra.mxu0 %v3057
        %3083 = vmatpush.msra.mxu0 %v3056
        %3084 = vmatpush.msra.mxu0 %v3055
        %3085 = vmatpush.msra.mxu0 %v3054
        %3086 = vmatpush.msra.mxu0 %v3053
        %3087 = vmatmul.f32.gmra.mxu0 %v3069
        %v3088 = vpop.f32.mrf.mxu0
        %v3089 = vadd.f32 0.0, %v3088
        %3090 = vdwg.mxu0
        %v3091 = vadd.f32 %v3051, %v3089
        %s3092 = scalar_lea.vmem [#allocation12], 1536
        %v3093 = vld [vmem:[%s3092] sm:$0xff]
        %v3094 = vld [vmem:[%s3092 + $0x8] sm:$0xff]
        %v3095 = vld [vmem:[%s3092 + $0x10] sm:$0xff]
        %v3096 = vld [vmem:[%s3092 + $0x18] sm:$0xff]
        %v3097 = vld [vmem:[%s3092 + $0x20] sm:$0xff]
        %v3098 = vld [vmem:[%s3092 + $0x28] sm:$0xff]
        %v3099 = vld [vmem:[%s3092 + $0x30] sm:$0xff]
        %v3100 = vld [vmem:[%s3092 + $0x38] sm:$0xff]
        %v3101 = vld [vmem:[%s3092 + $0x40] sm:$0xff]
        %v3102 = vld [vmem:[%s3092 + $0x48] sm:$0xff]
        %v3103 = vld [vmem:[%s3092 + $0x50] sm:$0xff]
        %v3104 = vld [vmem:[%s3092 + $0x58] sm:$0xff]
        %v3105 = vld [vmem:[%s3092 + $0x60] sm:$0xff]
        %v3106 = vld [vmem:[%s3092 + $0x68] sm:$0xff]
        %v3107 = vld [vmem:[%s3092 + $0x70] sm:$0xff]
        %v3108 = vld [vmem:[%s3092 + $0x78] sm:$0xff]
        %v3109 = vrot.slane %v2611, 4
        %3111 = vmatpush.msra.mxu0 %v3108
        %3112 = vmatpush.msra.mxu0 %v3107
        %3113 = vmatpush.msra.mxu0 %v3106
        %3114 = vmatpush.msra.mxu0 %v3105
        %3115 = vmatpush.msra.mxu0 %v3104
        %3116 = vmatpush.msra.mxu0 %v3103
        %3117 = vmatpush.msra.mxu0 %v3102
        %3118 = vmatpush.msra.mxu0 %v3101
        %3119 = vmatpush.msra.mxu0 %v3100
        %3120 = vmatpush.msra.mxu0 %v3099
        %3121 = vmatpush.msra.mxu0 %v3098
        %3122 = vmatpush.msra.mxu0 %v3097
        %3123 = vmatpush.msra.mxu0 %v3096
        %3124 = vmatpush.msra.mxu0 %v3095
        %3125 = vmatpush.msra.mxu0 %v3094
        %3126 = vmatpush.msra.mxu0 %v3093
        %3127 = vmatmul.f32.gmra.mxu0 %v3109
        %v3128 = vpop.f32.mrf.mxu0
        %v3129 = vadd.f32 0.0, %v3128
        %3130 = vdwg.mxu0
        %v3131 = vadd.f32 %v3091, %v3129
        %s3132 = scalar_lea.vmem [#allocation12], 1664
        %v3133 = vld [vmem:[%s3132] sm:$0xff]
        %v3134 = vld [vmem:[%s3132 + $0x8] sm:$0xff]
        %v3135 = vld [vmem:[%s3132 + $0x10] sm:$0xff]
        %v3136 = vld [vmem:[%s3132 + $0x18] sm:$0xff]
        %v3137 = vld [vmem:[%s3132 + $0x20] sm:$0xff]
        %v3138 = vld [vmem:[%s3132 + $0x28] sm:$0xff]
        %v3139 = vld [vmem:[%s3132 + $0x30] sm:$0xff]
        %v3140 = vld [vmem:[%s3132 + $0x38] sm:$0xff]
        %v3141 = vld [vmem:[%s3132 + $0x40] sm:$0xff]
        %v3142 = vld [vmem:[%s3132 + $0x48] sm:$0xff]
        %v3143 = vld [vmem:[%s3132 + $0x50] sm:$0xff]
        %v3144 = vld [vmem:[%s3132 + $0x58] sm:$0xff]
        %v3145 = vld [vmem:[%s3132 + $0x60] sm:$0xff]
        %v3146 = vld [vmem:[%s3132 + $0x68] sm:$0xff]
        %v3147 = vld [vmem:[%s3132 + $0x70] sm:$0xff]
        %v3148 = vld [vmem:[%s3132 + $0x78] sm:$0xff]
        %v3149 = vrot.slane %v2611, 5
        %3151 = vmatpush.msra.mxu0 %v3148
        %3152 = vmatpush.msra.mxu0 %v3147
        %3153 = vmatpush.msra.mxu0 %v3146
        %3154 = vmatpush.msra.mxu0 %v3145
        %3155 = vmatpush.msra.mxu0 %v3144
        %3156 = vmatpush.msra.mxu0 %v3143
        %3157 = vmatpush.msra.mxu0 %v3142
        %3158 = vmatpush.msra.mxu0 %v3141
        %3159 = vmatpush.msra.mxu0 %v3140
        %3160 = vmatpush.msra.mxu0 %v3139
        %3161 = vmatpush.msra.mxu0 %v3138
        %3162 = vmatpush.msra.mxu0 %v3137
        %3163 = vmatpush.msra.mxu0 %v3136
        %3164 = vmatpush.msra.mxu0 %v3135
        %3165 = vmatpush.msra.mxu0 %v3134
        %3166 = vmatpush.msra.mxu0 %v3133
        %3167 = vmatmul.f32.gmra.mxu0 %v3149
        %v3168 = vpop.f32.mrf.mxu0
        %v3169 = vadd.f32 0.0, %v3168
        %3170 = vdwg.mxu0
        %v3171 = vadd.f32 %v3131, %v3169
        %s3172 = scalar_lea.vmem [#allocation12], 1792
        %v3173 = vld [vmem:[%s3172] sm:$0xff]
        %v3174 = vld [vmem:[%s3172 + $0x8] sm:$0xff]
        %v3175 = vld [vmem:[%s3172 + $0x10] sm:$0xff]
        %v3176 = vld [vmem:[%s3172 + $0x18] sm:$0xff]
        %v3177 = vld [vmem:[%s3172 + $0x20] sm:$0xff]
        %v3178 = vld [vmem:[%s3172 + $0x28] sm:$0xff]
        %v3179 = vld [vmem:[%s3172 + $0x30] sm:$0xff]
        %v3180 = vld [vmem:[%s3172 + $0x38] sm:$0xff]
        %v3181 = vld [vmem:[%s3172 + $0x40] sm:$0xff]
        %v3182 = vld [vmem:[%s3172 + $0x48] sm:$0xff]
        %v3183 = vld [vmem:[%s3172 + $0x50] sm:$0xff]
        %v3184 = vld [vmem:[%s3172 + $0x58] sm:$0xff]
        %v3185 = vld [vmem:[%s3172 + $0x60] sm:$0xff]
        %v3186 = vld [vmem:[%s3172 + $0x68] sm:$0xff]
        %v3187 = vld [vmem:[%s3172 + $0x70] sm:$0xff]
        %v3188 = vld [vmem:[%s3172 + $0x78] sm:$0xff]
        %v3189 = vrot.slane %v2611, 6
        %3191 = vmatpush.msra.mxu0 %v3188
        %3192 = vmatpush.msra.mxu0 %v3187
        %3193 = vmatpush.msra.mxu0 %v3186
        %3194 = vmatpush.msra.mxu0 %v3185
        %3195 = vmatpush.msra.mxu0 %v3184
        %3196 = vmatpush.msra.mxu0 %v3183
        %3197 = vmatpush.msra.mxu0 %v3182
        %3198 = vmatpush.msra.mxu0 %v3181
        %3199 = vmatpush.msra.mxu0 %v3180
        %3200 = vmatpush.msra.mxu0 %v3179
        %3201 = vmatpush.msra.mxu0 %v3178
        %3202 = vmatpush.msra.mxu0 %v3177
        %3203 = vmatpush.msra.mxu0 %v3176
        %3204 = vmatpush.msra.mxu0 %v3175
        %3205 = vmatpush.msra.mxu0 %v3174
        %3206 = vmatpush.msra.mxu0 %v3173
        %3207 = vmatmul.f32.gmra.mxu0 %v3189
        %v3208 = vpop.f32.mrf.mxu0
        %v3209 = vadd.f32 0.0, %v3208
        %3210 = vdwg.mxu0
        %v3211 = vadd.f32 %v3171, %v3209
        %s3212 = scalar_lea.vmem [#allocation12], 1920
        %v3213 = vld [vmem:[%s3212] sm:$0xff]
        %v3214 = vld [vmem:[%s3212 + $0x8] sm:$0xff]
        %v3215 = vld [vmem:[%s3212 + $0x10] sm:$0xff]
        %v3216 = vld [vmem:[%s3212 + $0x18] sm:$0xff]
        %v3217 = vld [vmem:[%s3212 + $0x20] sm:$0xff]
        %v3218 = vld [vmem:[%s3212 + $0x28] sm:$0xff]
        %v3219 = vld [vmem:[%s3212 + $0x30] sm:$0xff]
        %v3220 = vld [vmem:[%s3212 + $0x38] sm:$0xff]
        %v3221 = vld [vmem:[%s3212 + $0x40] sm:$0xff]
        %v3222 = vld [vmem:[%s3212 + $0x48] sm:$0xff]
        %v3223 = vld [vmem:[%s3212 + $0x50] sm:$0xff]
        %v3224 = vld [vmem:[%s3212 + $0x58] sm:$0xff]
        %v3225 = vld [vmem:[%s3212 + $0x60] sm:$0xff]
        %v3226 = vld [vmem:[%s3212 + $0x68] sm:$0xff]
        %v3227 = vld [vmem:[%s3212 + $0x70] sm:$0xff]
        %v3228 = vld [vmem:[%s3212 + $0x78] sm:$0xff]
        %v3229 = vrot.slane %v2611, 7
        %3231 = vmatpush.msra.mxu0 %v3228
        %3232 = vmatpush.msra.mxu0 %v3227
        %3233 = vmatpush.msra.mxu0 %v3226
        %3234 = vmatpush.msra.mxu0 %v3225
        %3235 = vmatpush.msra.mxu0 %v3224
        %3236 = vmatpush.msra.mxu0 %v3223
        %3237 = vmatpush.msra.mxu0 %v3222
        %3238 = vmatpush.msra.mxu0 %v3221
        %3239 = vmatpush.msra.mxu0 %v3220
        %3240 = vmatpush.msra.mxu0 %v3219
        %3241 = vmatpush.msra.mxu0 %v3218
        %3242 = vmatpush.msra.mxu0 %v3217
        %3243 = vmatpush.msra.mxu0 %v3216
        %3244 = vmatpush.msra.mxu0 %v3215
        %3245 = vmatpush.msra.mxu0 %v3214
        %3246 = vmatpush.msra.mxu0 %v3213
        %3247 = vmatmul.f32.gmra.mxu0 %v3229
        %v3248 = vpop.f32.mrf.mxu0
        %v3249 = vadd.f32 0.0, %v3248
        %3250 = vdwg.mxu0
        %v3251 = vadd.f32 %v3211, %v3249
        %s3252 = scalar_lea.vmem [#allocation12], 2048
        %v3253 = vld [vmem:[%s3252] sm:$0xff]
        %v3254 = vld [vmem:[%s3252 + $0x8] sm:$0xff]
        %v3255 = vld [vmem:[%s3252 + $0x10] sm:$0xff]
        %v3256 = vld [vmem:[%s3252 + $0x18] sm:$0xff]
        %v3257 = vld [vmem:[%s3252 + $0x20] sm:$0xff]
        %v3258 = vld [vmem:[%s3252 + $0x28] sm:$0xff]
        %v3259 = vld [vmem:[%s3252 + $0x30] sm:$0xff]
        %v3260 = vld [vmem:[%s3252 + $0x38] sm:$0xff]
        %v3261 = vld [vmem:[%s3252 + $0x40] sm:$0xff]
        %v3262 = vld [vmem:[%s3252 + $0x48] sm:$0xff]
        %v3263 = vld [vmem:[%s3252 + $0x50] sm:$0xff]
        %v3264 = vld [vmem:[%s3252 + $0x58] sm:$0xff]
        %v3265 = vld [vmem:[%s3252 + $0x60] sm:$0xff]
        %v3266 = vld [vmem:[%s3252 + $0x68] sm:$0xff]
        %v3267 = vld [vmem:[%s3252 + $0x70] sm:$0xff]
        %v3268 = vld [vmem:[%s3252 + $0x78] sm:$0xff]
        %3269 = vmatpush.msra.mxu0 %v3268
        %3270 = vmatpush.msra.mxu0 %v3267
        %3271 = vmatpush.msra.mxu0 %v3266
        %3272 = vmatpush.msra.mxu0 %v3265
        %3273 = vmatpush.msra.mxu0 %v3264
        %3274 = vmatpush.msra.mxu0 %v3263
        %3275 = vmatpush.msra.mxu0 %v3262
        %3276 = vmatpush.msra.mxu0 %v3261
        %3277 = vmatpush.msra.mxu0 %v3260
        %3278 = vmatpush.msra.mxu0 %v3259
        %3279 = vmatpush.msra.mxu0 %v3258
        %3280 = vmatpush.msra.mxu0 %v3257
        %3281 = vmatpush.msra.mxu0 %v3256
        %3282 = vmatpush.msra.mxu0 %v3255
        %3283 = vmatpush.msra.mxu0 %v3254
        %3284 = vmatpush.msra.mxu0 %v3253
        %3285 = vmatmul.f32.gmra.mxu0 %v2612
        %v3286 = vpop.f32.mrf.mxu0
        %v3287 = vadd.f32 0.0, %v3286
        %3288 = vdwg.mxu0
        %v3289 = vadd.f32 %v3251, %v3287
        %s3290 = scalar_lea.vmem [#allocation12], 2176
        %v3291 = vld [vmem:[%s3290] sm:$0xff]
        %v3292 = vld [vmem:[%s3290 + $0x8] sm:$0xff]
        %v3293 = vld [vmem:[%s3290 + $0x10] sm:$0xff]
        %v3294 = vld [vmem:[%s3290 + $0x18] sm:$0xff]
        %v3295 = vld [vmem:[%s3290 + $0x20] sm:$0xff]
        %v3296 = vld [vmem:[%s3290 + $0x28] sm:$0xff]
        %v3297 = vld [vmem:[%s3290 + $0x30] sm:$0xff]
        %v3298 = vld [vmem:[%s3290 + $0x38] sm:$0xff]
        %v3299 = vld [vmem:[%s3290 + $0x40] sm:$0xff]
        %v3300 = vld [vmem:[%s3290 + $0x48] sm:$0xff]
        %v3301 = vld [vmem:[%s3290 + $0x50] sm:$0xff]
        %v3302 = vld [vmem:[%s3290 + $0x58] sm:$0xff]
        %v3303 = vld [vmem:[%s3290 + $0x60] sm:$0xff]
        %v3304 = vld [vmem:[%s3290 + $0x68] sm:$0xff]
        %v3305 = vld [vmem:[%s3290 + $0x70] sm:$0xff]
        %v3306 = vld [vmem:[%s3290 + $0x78] sm:$0xff]
        %v3308 = vrot.slane %v2612, 1
        %3310 = vmatpush.msra.mxu0 %v3306
        %3311 = vmatpush.msra.mxu0 %v3305
        %3312 = vmatpush.msra.mxu0 %v3304
        %3313 = vmatpush.msra.mxu0 %v3303
        %3314 = vmatpush.msra.mxu0 %v3302
        %3315 = vmatpush.msra.mxu0 %v3301
        %3316 = vmatpush.msra.mxu0 %v3300
        %3317 = vmatpush.msra.mxu0 %v3299
        %3318 = vmatpush.msra.mxu0 %v3298
        %3319 = vmatpush.msra.mxu0 %v3297
        %3320 = vmatpush.msra.mxu0 %v3296
        %3321 = vmatpush.msra.mxu0 %v3295
        %3322 = vmatpush.msra.mxu0 %v3294
        %3323 = vmatpush.msra.mxu0 %v3293
        %3324 = vmatpush.msra.mxu0 %v3292
        %3325 = vmatpush.msra.mxu0 %v3291
        %3326 = vmatmul.f32.gmra.mxu0 %v3308
        %v3327 = vpop.f32.mrf.mxu0
        %v3328 = vadd.f32 0.0, %v3327
        %3329 = vdwg.mxu0
        %v3330 = vadd.f32 %v3289, %v3328
        %s3331 = scalar_lea.vmem [#allocation12], 2304
        %v3332 = vld [vmem:[%s3331] sm:$0xff]
        %v3333 = vld [vmem:[%s3331 + $0x8] sm:$0xff]
        %v3334 = vld [vmem:[%s3331 + $0x10] sm:$0xff]
        %v3335 = vld [vmem:[%s3331 + $0x18] sm:$0xff]
        %v3336 = vld [vmem:[%s3331 + $0x20] sm:$0xff]
        %v3337 = vld [vmem:[%s3331 + $0x28] sm:$0xff]
        %v3338 = vld [vmem:[%s3331 + $0x30] sm:$0xff]
        %v3339 = vld [vmem:[%s3331 + $0x38] sm:$0xff]
        %v3340 = vld [vmem:[%s3331 + $0x40] sm:$0xff]
        %v3341 = vld [vmem:[%s3331 + $0x48] sm:$0xff]
        %v3342 = vld [vmem:[%s3331 + $0x50] sm:$0xff]
        %v3343 = vld [vmem:[%s3331 + $0x58] sm:$0xff]
        %v3344 = vld [vmem:[%s3331 + $0x60] sm:$0xff]
        %v3345 = vld [vmem:[%s3331 + $0x68] sm:$0xff]
        %v3346 = vld [vmem:[%s3331 + $0x70] sm:$0xff]
        %v3347 = vld [vmem:[%s3331 + $0x78] sm:$0xff]
        %v3348 = vrot.slane %v2612, 2
        %3350 = vmatpush.msra.mxu0 %v3347
        %3351 = vmatpush.msra.mxu0 %v3346
        %3352 = vmatpush.msra.mxu0 %v3345
        %3353 = vmatpush.msra.mxu0 %v3344
        %3354 = vmatpush.msra.mxu0 %v3343
        %3355 = vmatpush.msra.mxu0 %v3342
        %3356 = vmatpush.msra.mxu0 %v3341
        %3357 = vmatpush.msra.mxu0 %v3340
        %3358 = vmatpush.msra.mxu0 %v3339
        %3359 = vmatpush.msra.mxu0 %v3338
        %3360 = vmatpush.msra.mxu0 %v3337
        %3361 = vmatpush.msra.mxu0 %v3336
        %3362 = vmatpush.msra.mxu0 %v3335
        %3363 = vmatpush.msra.mxu0 %v3334
        %3364 = vmatpush.msra.mxu0 %v3333
        %3365 = vmatpush.msra.mxu0 %v3332
        %3366 = vmatmul.f32.gmra.mxu0 %v3348
        %v3367 = vpop.f32.mrf.mxu0
        %v3368 = vadd.f32 0.0, %v3367
        %3369 = vdwg.mxu0
        %v3370 = vadd.f32 %v3330, %v3368
        %s3371 = scalar_lea.vmem [#allocation12], 2432
        %v3372 = vld [vmem:[%s3371] sm:$0xff]
        %v3373 = vld [vmem:[%s3371 + $0x8] sm:$0xff]
        %v3374 = vld [vmem:[%s3371 + $0x10] sm:$0xff]
        %v3375 = vld [vmem:[%s3371 + $0x18] sm:$0xff]
        %v3376 = vld [vmem:[%s3371 + $0x20] sm:$0xff]
        %v3377 = vld [vmem:[%s3371 + $0x28] sm:$0xff]
        %v3378 = vld [vmem:[%s3371 + $0x30] sm:$0xff]
        %v3379 = vld [vmem:[%s3371 + $0x38] sm:$0xff]
        %v3380 = vld [vmem:[%s3371 + $0x40] sm:$0xff]
        %v3381 = vld [vmem:[%s3371 + $0x48] sm:$0xff]
        %v3382 = vld [vmem:[%s3371 + $0x50] sm:$0xff]
        %v3383 = vld [vmem:[%s3371 + $0x58] sm:$0xff]
        %v3384 = vld [vmem:[%s3371 + $0x60] sm:$0xff]
        %v3385 = vld [vmem:[%s3371 + $0x68] sm:$0xff]
        %v3386 = vld [vmem:[%s3371 + $0x70] sm:$0xff]
        %v3387 = vld [vmem:[%s3371 + $0x78] sm:$0xff]
        %v3388 = vrot.slane %v2612, 3
        %3390 = vmatpush.msra.mxu0 %v3387
        %3391 = vmatpush.msra.mxu0 %v3386
        %3392 = vmatpush.msra.mxu0 %v3385
        %3393 = vmatpush.msra.mxu0 %v3384
        %3394 = vmatpush.msra.mxu0 %v3383
        %3395 = vmatpush.msra.mxu0 %v3382
        %3396 = vmatpush.msra.mxu0 %v3381
        %3397 = vmatpush.msra.mxu0 %v3380
        %3398 = vmatpush.msra.mxu0 %v3379
        %3399 = vmatpush.msra.mxu0 %v3378
        %3400 = vmatpush.msra.mxu0 %v3377
        %3401 = vmatpush.msra.mxu0 %v3376
        %3402 = vmatpush.msra.mxu0 %v3375
        %3403 = vmatpush.msra.mxu0 %v3374
        %3404 = vmatpush.msra.mxu0 %v3373
        %3405 = vmatpush.msra.mxu0 %v3372
        %3406 = vmatmul.f32.gmra.mxu0 %v3388
        %v3407 = vpop.f32.mrf.mxu0
        %v3408 = vadd.f32 0.0, %v3407
        %3409 = vdwg.mxu0
        %v3410 = vadd.f32 %v3370, %v3408
        %s3411 = scalar_lea.vmem [#allocation12], 2560
        %v3412 = vld [vmem:[%s3411] sm:$0xff]
        %v3413 = vld [vmem:[%s3411 + $0x8] sm:$0xff]
        %v3414 = vld [vmem:[%s3411 + $0x10] sm:$0xff]
        %v3415 = vld [vmem:[%s3411 + $0x18] sm:$0xff]
        %v3416 = vld [vmem:[%s3411 + $0x20] sm:$0xff]
        %v3417 = vld [vmem:[%s3411 + $0x28] sm:$0xff]
        %v3418 = vld [vmem:[%s3411 + $0x30] sm:$0xff]
        %v3419 = vld [vmem:[%s3411 + $0x38] sm:$0xff]
        %v3420 = vld [vmem:[%s3411 + $0x40] sm:$0xff]
        %v3421 = vld [vmem:[%s3411 + $0x48] sm:$0xff]
        %v3422 = vld [vmem:[%s3411 + $0x50] sm:$0xff]
        %v3423 = vld [vmem:[%s3411 + $0x58] sm:$0xff]
        %v3424 = vld [vmem:[%s3411 + $0x60] sm:$0xff]
        %v3425 = vld [vmem:[%s3411 + $0x68] sm:$0xff]
        %v3426 = vld [vmem:[%s3411 + $0x70] sm:$0xff]
        %v3427 = vld [vmem:[%s3411 + $0x78] sm:$0xff]
        %v3428 = vrot.slane %v2612, 4
        %3430 = vmatpush.msra.mxu0 %v3427
        %3431 = vmatpush.msra.mxu0 %v3426
        %3432 = vmatpush.msra.mxu0 %v3425
        %3433 = vmatpush.msra.mxu0 %v3424
        %3434 = vmatpush.msra.mxu0 %v3423
        %3435 = vmatpush.msra.mxu0 %v3422
        %3436 = vmatpush.msra.mxu0 %v3421
        %3437 = vmatpush.msra.mxu0 %v3420
        %3438 = vmatpush.msra.mxu0 %v3419
        %3439 = vmatpush.msra.mxu0 %v3418
        %3440 = vmatpush.msra.mxu0 %v3417
        %3441 = vmatpush.msra.mxu0 %v3416
        %3442 = vmatpush.msra.mxu0 %v3415
        %3443 = vmatpush.msra.mxu0 %v3414
        %3444 = vmatpush.msra.mxu0 %v3413
        %3445 = vmatpush.msra.mxu0 %v3412
        %3446 = vmatmul.f32.gmra.mxu0 %v3428
        %v3447 = vpop.f32.mrf.mxu0
        %v3448 = vadd.f32 0.0, %v3447
        %3449 = vdwg.mxu0
        %v3450 = vadd.f32 %v3410, %v3448
        %s3451 = scalar_lea.vmem [#allocation12], 2688
        %v3452 = vld [vmem:[%s3451] sm:$0xff]
        %v3453 = vld [vmem:[%s3451 + $0x8] sm:$0xff]
        %v3454 = vld [vmem:[%s3451 + $0x10] sm:$0xff]
        %v3455 = vld [vmem:[%s3451 + $0x18] sm:$0xff]
        %v3456 = vld [vmem:[%s3451 + $0x20] sm:$0xff]
        %v3457 = vld [vmem:[%s3451 + $0x28] sm:$0xff]
        %v3458 = vld [vmem:[%s3451 + $0x30] sm:$0xff]
        %v3459 = vld [vmem:[%s3451 + $0x38] sm:$0xff]
        %v3460 = vld [vmem:[%s3451 + $0x40] sm:$0xff]
        %v3461 = vld [vmem:[%s3451 + $0x48] sm:$0xff]
        %v3462 = vld [vmem:[%s3451 + $0x50] sm:$0xff]
        %v3463 = vld [vmem:[%s3451 + $0x58] sm:$0xff]
        %v3464 = vld [vmem:[%s3451 + $0x60] sm:$0xff]
        %v3465 = vld [vmem:[%s3451 + $0x68] sm:$0xff]
        %v3466 = vld [vmem:[%s3451 + $0x70] sm:$0xff]
        %v3467 = vld [vmem:[%s3451 + $0x78] sm:$0xff]
        %v3468 = vrot.slane %v2612, 5
        %3470 = vmatpush.msra.mxu0 %v3467
        %3471 = vmatpush.msra.mxu0 %v3466
        %3472 = vmatpush.msra.mxu0 %v3465
        %3473 = vmatpush.msra.mxu0 %v3464
        %3474 = vmatpush.msra.mxu0 %v3463
        %3475 = vmatpush.msra.mxu0 %v3462
        %3476 = vmatpush.msra.mxu0 %v3461
        %3477 = vmatpush.msra.mxu0 %v3460
        %3478 = vmatpush.msra.mxu0 %v3459
        %3479 = vmatpush.msra.mxu0 %v3458
        %3480 = vmatpush.msra.mxu0 %v3457
        %3481 = vmatpush.msra.mxu0 %v3456
        %3482 = vmatpush.msra.mxu0 %v3455
        %3483 = vmatpush.msra.mxu0 %v3454
        %3484 = vmatpush.msra.mxu0 %v3453
        %3485 = vmatpush.msra.mxu0 %v3452
        %3486 = vmatmul.f32.gmra.mxu0 %v3468
        %v3487 = vpop.f32.mrf.mxu0
        %v3488 = vadd.f32 0.0, %v3487
        %3489 = vdwg.mxu0
        %v3490 = vadd.f32 %v3450, %v3488
        %s3491 = scalar_lea.vmem [#allocation12], 2816
        %v3492 = vld [vmem:[%s3491] sm:$0xff]
        %v3493 = vld [vmem:[%s3491 + $0x8] sm:$0xff]
        %v3494 = vld [vmem:[%s3491 + $0x10] sm:$0xff]
        %v3495 = vld [vmem:[%s3491 + $0x18] sm:$0xff]
        %v3496 = vld [vmem:[%s3491 + $0x20] sm:$0xff]
        %v3497 = vld [vmem:[%s3491 + $0x28] sm:$0xff]
        %v3498 = vld [vmem:[%s3491 + $0x30] sm:$0xff]
        %v3499 = vld [vmem:[%s3491 + $0x38] sm:$0xff]
        %v3500 = vld [vmem:[%s3491 + $0x40] sm:$0xff]
        %v3501 = vld [vmem:[%s3491 + $0x48] sm:$0xff]
        %v3502 = vld [vmem:[%s3491 + $0x50] sm:$0xff]
        %v3503 = vld [vmem:[%s3491 + $0x58] sm:$0xff]
        %v3504 = vld [vmem:[%s3491 + $0x60] sm:$0xff]
        %v3505 = vld [vmem:[%s3491 + $0x68] sm:$0xff]
        %v3506 = vld [vmem:[%s3491 + $0x70] sm:$0xff]
        %v3507 = vld [vmem:[%s3491 + $0x78] sm:$0xff]
        %v3508 = vrot.slane %v2612, 6
        %3510 = vmatpush.msra.mxu0 %v3507
        %3511 = vmatpush.msra.mxu0 %v3506
        %3512 = vmatpush.msra.mxu0 %v3505
        %3513 = vmatpush.msra.mxu0 %v3504
        %3514 = vmatpush.msra.mxu0 %v3503
        %3515 = vmatpush.msra.mxu0 %v3502
        %3516 = vmatpush.msra.mxu0 %v3501
        %3517 = vmatpush.msra.mxu0 %v3500
        %3518 = vmatpush.msra.mxu0 %v3499
        %3519 = vmatpush.msra.mxu0 %v3498
        %3520 = vmatpush.msra.mxu0 %v3497
        %3521 = vmatpush.msra.mxu0 %v3496
        %3522 = vmatpush.msra.mxu0 %v3495
        %3523 = vmatpush.msra.mxu0 %v3494
        %3524 = vmatpush.msra.mxu0 %v3493
        %3525 = vmatpush.msra.mxu0 %v3492
        %3526 = vmatmul.f32.gmra.mxu0 %v3508
        %v3527 = vpop.f32.mrf.mxu0
        %v3528 = vadd.f32 0.0, %v3527
        %3529 = vdwg.mxu0
        %v3530 = vadd.f32 %v3490, %v3528
        %s3531 = scalar_lea.vmem [#allocation12], 2944
        %v3532 = vld [vmem:[%s3531] sm:$0xff]
        %v3533 = vld [vmem:[%s3531 + $0x8] sm:$0xff]
        %v3534 = vld [vmem:[%s3531 + $0x10] sm:$0xff]
        %v3535 = vld [vmem:[%s3531 + $0x18] sm:$0xff]
        %v3536 = vld [vmem:[%s3531 + $0x20] sm:$0xff]
        %v3537 = vld [vmem:[%s3531 + $0x28] sm:$0xff]
        %v3538 = vld [vmem:[%s3531 + $0x30] sm:$0xff]
        %v3539 = vld [vmem:[%s3531 + $0x38] sm:$0xff]
        %v3540 = vld [vmem:[%s3531 + $0x40] sm:$0xff]
        %v3541 = vld [vmem:[%s3531 + $0x48] sm:$0xff]
        %v3542 = vld [vmem:[%s3531 + $0x50] sm:$0xff]
        %v3543 = vld [vmem:[%s3531 + $0x58] sm:$0xff]
        %v3544 = vld [vmem:[%s3531 + $0x60] sm:$0xff]
        %v3545 = vld [vmem:[%s3531 + $0x68] sm:$0xff]
        %v3546 = vld [vmem:[%s3531 + $0x70] sm:$0xff]
        %v3547 = vld [vmem:[%s3531 + $0x78] sm:$0xff]
        %v3548 = vrot.slane %v2612, 7
        %3550 = vmatpush.msra.mxu0 %v3547
        %3551 = vmatpush.msra.mxu0 %v3546
        %3552 = vmatpush.msra.mxu0 %v3545
        %3553 = vmatpush.msra.mxu0 %v3544
        %3554 = vmatpush.msra.mxu0 %v3543
        %3555 = vmatpush.msra.mxu0 %v3542
        %3556 = vmatpush.msra.mxu0 %v3541
        %3557 = vmatpush.msra.mxu0 %v3540
        %3558 = vmatpush.msra.mxu0 %v3539
        %3559 = vmatpush.msra.mxu0 %v3538
        %3560 = vmatpush.msra.mxu0 %v3537
        %3561 = vmatpush.msra.mxu0 %v3536
        %3562 = vmatpush.msra.mxu0 %v3535
        %3563 = vmatpush.msra.mxu0 %v3534
        %3564 = vmatpush.msra.mxu0 %v3533
        %3565 = vmatpush.msra.mxu0 %v3532
        %3566 = vmatmul.f32.gmra.mxu0 %v3548
        %v3567 = vpop.f32.mrf.mxu0
        %v3568 = vadd.f32 0.0, %v3567
        %3569 = vdwg.mxu0
        %v3570 = vadd.f32 %v3530, %v3568
        %s3571 = scalar_lea.vmem [#allocation12], 3072
        %v3572 = vld [vmem:[%s3571] sm:$0xff]
        %v3573 = vld [vmem:[%s3571 + $0x8] sm:$0xff]
        %v3574 = vld [vmem:[%s3571 + $0x10] sm:$0xff]
        %v3575 = vld [vmem:[%s3571 + $0x18] sm:$0xff]
        %v3576 = vld [vmem:[%s3571 + $0x20] sm:$0xff]
        %v3577 = vld [vmem:[%s3571 + $0x28] sm:$0xff]
        %v3578 = vld [vmem:[%s3571 + $0x30] sm:$0xff]
        %v3579 = vld [vmem:[%s3571 + $0x38] sm:$0xff]
        %v3580 = vld [vmem:[%s3571 + $0x40] sm:$0xff]
        %v3581 = vld [vmem:[%s3571 + $0x48] sm:$0xff]
        %v3582 = vld [vmem:[%s3571 + $0x50] sm:$0xff]
        %v3583 = vld [vmem:[%s3571 + $0x58] sm:$0xff]
        %v3584 = vld [vmem:[%s3571 + $0x60] sm:$0xff]
        %v3585 = vld [vmem:[%s3571 + $0x68] sm:$0xff]
        %v3586 = vld [vmem:[%s3571 + $0x70] sm:$0xff]
        %v3587 = vld [vmem:[%s3571 + $0x78] sm:$0xff]
        %3588 = vmatpush.msra.mxu0 %v3587
        %3589 = vmatpush.msra.mxu0 %v3586
        %3590 = vmatpush.msra.mxu0 %v3585
        %3591 = vmatpush.msra.mxu0 %v3584
        %3592 = vmatpush.msra.mxu0 %v3583
        %3593 = vmatpush.msra.mxu0 %v3582
        %3594 = vmatpush.msra.mxu0 %v3581
        %3595 = vmatpush.msra.mxu0 %v3580
        %3596 = vmatpush.msra.mxu0 %v3579
        %3597 = vmatpush.msra.mxu0 %v3578
        %3598 = vmatpush.msra.mxu0 %v3577
        %3599 = vmatpush.msra.mxu0 %v3576
        %3600 = vmatpush.msra.mxu0 %v3575
        %3601 = vmatpush.msra.mxu0 %v3574
        %3602 = vmatpush.msra.mxu0 %v3573
        %3603 = vmatpush.msra.mxu0 %v3572
        %3604 = vmatmul.f32.gmra.mxu0 %v2613
        %v3605 = vpop.f32.mrf.mxu0
        %v3606 = vadd.f32 0.0, %v3605
        %3607 = vdwg.mxu0
        %v3608 = vadd.f32 %v3570, %v3606
        %s3609 = scalar_lea.vmem [#allocation12], 3200
        %v3610 = vld [vmem:[%s3609] sm:$0xff]
        %v3611 = vld [vmem:[%s3609 + $0x8] sm:$0xff]
        %v3612 = vld [vmem:[%s3609 + $0x10] sm:$0xff]
        %v3613 = vld [vmem:[%s3609 + $0x18] sm:$0xff]
        %v3614 = vld [vmem:[%s3609 + $0x20] sm:$0xff]
        %v3615 = vld [vmem:[%s3609 + $0x28] sm:$0xff]
        %v3616 = vld [vmem:[%s3609 + $0x30] sm:$0xff]
        %v3617 = vld [vmem:[%s3609 + $0x38] sm:$0xff]
        %v3618 = vld [vmem:[%s3609 + $0x40] sm:$0xff]
        %v3619 = vld [vmem:[%s3609 + $0x48] sm:$0xff]
        %v3620 = vld [vmem:[%s3609 + $0x50] sm:$0xff]
        %v3621 = vld [vmem:[%s3609 + $0x58] sm:$0xff]
        %v3622 = vld [vmem:[%s3609 + $0x60] sm:$0xff]
        %v3623 = vld [vmem:[%s3609 + $0x68] sm:$0xff]
        %v3624 = vld [vmem:[%s3609 + $0x70] sm:$0xff]
        %v3625 = vld [vmem:[%s3609 + $0x78] sm:$0xff]
        %v3627 = vrot.slane %v2613, 1
        %3629 = vmatpush.msra.mxu0 %v3625
        %3630 = vmatpush.msra.mxu0 %v3624
        %3631 = vmatpush.msra.mxu0 %v3623
        %3632 = vmatpush.msra.mxu0 %v3622
        %3633 = vmatpush.msra.mxu0 %v3621
        %3634 = vmatpush.msra.mxu0 %v3620
        %3635 = vmatpush.msra.mxu0 %v3619
        %3636 = vmatpush.msra.mxu0 %v3618
        %3637 = vmatpush.msra.mxu0 %v3617
        %3638 = vmatpush.msra.mxu0 %v3616
        %3639 = vmatpush.msra.mxu0 %v3615
        %3640 = vmatpush.msra.mxu0 %v3614
        %3641 = vmatpush.msra.mxu0 %v3613
        %3642 = vmatpush.msra.mxu0 %v3612
        %3643 = vmatpush.msra.mxu0 %v3611
        %3644 = vmatpush.msra.mxu0 %v3610
        %3645 = vmatmul.f32.gmra.mxu0 %v3627
        %v3646 = vpop.f32.mrf.mxu0
        %v3647 = vadd.f32 0.0, %v3646
        %3648 = vdwg.mxu0
        %v3649 = vadd.f32 %v3608, %v3647
        %s3650 = scalar_lea.vmem [#allocation12], 3328
        %v3651 = vld [vmem:[%s3650] sm:$0xff]
        %v3652 = vld [vmem:[%s3650 + $0x8] sm:$0xff]
        %v3653 = vld [vmem:[%s3650 + $0x10] sm:$0xff]
        %v3654 = vld [vmem:[%s3650 + $0x18] sm:$0xff]
        %v3655 = vld [vmem:[%s3650 + $0x20] sm:$0xff]
        %v3656 = vld [vmem:[%s3650 + $0x28] sm:$0xff]
        %v3657 = vld [vmem:[%s3650 + $0x30] sm:$0xff]
        %v3658 = vld [vmem:[%s3650 + $0x38] sm:$0xff]
        %v3659 = vld [vmem:[%s3650 + $0x40] sm:$0xff]
        %v3660 = vld [vmem:[%s3650 + $0x48] sm:$0xff]
        %v3661 = vld [vmem:[%s3650 + $0x50] sm:$0xff]
        %v3662 = vld [vmem:[%s3650 + $0x58] sm:$0xff]
        %v3663 = vld [vmem:[%s3650 + $0x60] sm:$0xff]
        %v3664 = vld [vmem:[%s3650 + $0x68] sm:$0xff]
        %v3665 = vld [vmem:[%s3650 + $0x70] sm:$0xff]
        %v3666 = vld [vmem:[%s3650 + $0x78] sm:$0xff]
        %v3667 = vrot.slane %v2613, 2
        %3669 = vmatpush.msra.mxu0 %v3666
        %3670 = vmatpush.msra.mxu0 %v3665
        %3671 = vmatpush.msra.mxu0 %v3664
        %3672 = vmatpush.msra.mxu0 %v3663
        %3673 = vmatpush.msra.mxu0 %v3662
        %3674 = vmatpush.msra.mxu0 %v3661
        %3675 = vmatpush.msra.mxu0 %v3660
        %3676 = vmatpush.msra.mxu0 %v3659
        %3677 = vmatpush.msra.mxu0 %v3658
        %3678 = vmatpush.msra.mxu0 %v3657
        %3679 = vmatpush.msra.mxu0 %v3656
        %3680 = vmatpush.msra.mxu0 %v3655
        %3681 = vmatpush.msra.mxu0 %v3654
        %3682 = vmatpush.msra.mxu0 %v3653
        %3683 = vmatpush.msra.mxu0 %v3652
        %3684 = vmatpush.msra.mxu0 %v3651
        %3685 = vmatmul.f32.gmra.mxu0 %v3667
        %v3686 = vpop.f32.mrf.mxu0
        %v3687 = vadd.f32 0.0, %v3686
        %3688 = vdwg.mxu0
        %v3689 = vadd.f32 %v3649, %v3687
        %s3690 = scalar_lea.vmem [#allocation12], 3456
        %v3691 = vld [vmem:[%s3690] sm:$0xff]
        %v3692 = vld [vmem:[%s3690 + $0x8] sm:$0xff]
        %v3693 = vld [vmem:[%s3690 + $0x10] sm:$0xff]
        %v3694 = vld [vmem:[%s3690 + $0x18] sm:$0xff]
        %v3695 = vld [vmem:[%s3690 + $0x20] sm:$0xff]
        %v3696 = vld [vmem:[%s3690 + $0x28] sm:$0xff]
        %v3697 = vld [vmem:[%s3690 + $0x30] sm:$0xff]
        %v3698 = vld [vmem:[%s3690 + $0x38] sm:$0xff]
        %v3699 = vld [vmem:[%s3690 + $0x40] sm:$0xff]
        %v3700 = vld [vmem:[%s3690 + $0x48] sm:$0xff]
        %v3701 = vld [vmem:[%s3690 + $0x50] sm:$0xff]
        %v3702 = vld [vmem:[%s3690 + $0x58] sm:$0xff]
        %v3703 = vld [vmem:[%s3690 + $0x60] sm:$0xff]
        %v3704 = vld [vmem:[%s3690 + $0x68] sm:$0xff]
        %v3705 = vld [vmem:[%s3690 + $0x70] sm:$0xff]
        %v3706 = vld [vmem:[%s3690 + $0x78] sm:$0xff]
        %v3707 = vrot.slane %v2613, 3
        %3709 = vmatpush.msra.mxu0 %v3706
        %3710 = vmatpush.msra.mxu0 %v3705
        %3711 = vmatpush.msra.mxu0 %v3704
        %3712 = vmatpush.msra.mxu0 %v3703
        %3713 = vmatpush.msra.mxu0 %v3702
        %3714 = vmatpush.msra.mxu0 %v3701
        %3715 = vmatpush.msra.mxu0 %v3700
        %3716 = vmatpush.msra.mxu0 %v3699
        %3717 = vmatpush.msra.mxu0 %v3698
        %3718 = vmatpush.msra.mxu0 %v3697
        %3719 = vmatpush.msra.mxu0 %v3696
        %3720 = vmatpush.msra.mxu0 %v3695
        %3721 = vmatpush.msra.mxu0 %v3694
        %3722 = vmatpush.msra.mxu0 %v3693
        %3723 = vmatpush.msra.mxu0 %v3692
        %3724 = vmatpush.msra.mxu0 %v3691
        %3725 = vmatmul.f32.gmra.mxu0 %v3707
        %v3726 = vpop.f32.mrf.mxu0
        %v3727 = vadd.f32 0.0, %v3726
        %3728 = vdwg.mxu0
        %v3729 = vadd.f32 %v3689, %v3727
        %s3730 = scalar_lea.vmem [#allocation12], 3584
        %v3731 = vld [vmem:[%s3730] sm:$0xff]
        %v3732 = vld [vmem:[%s3730 + $0x8] sm:$0xff]
        %v3733 = vld [vmem:[%s3730 + $0x10] sm:$0xff]
        %v3734 = vld [vmem:[%s3730 + $0x18] sm:$0xff]
        %v3735 = vld [vmem:[%s3730 + $0x20] sm:$0xff]
        %v3736 = vld [vmem:[%s3730 + $0x28] sm:$0xff]
        %v3737 = vld [vmem:[%s3730 + $0x30] sm:$0xff]
        %v3738 = vld [vmem:[%s3730 + $0x38] sm:$0xff]
        %v3739 = vld [vmem:[%s3730 + $0x40] sm:$0xff]
        %v3740 = vld [vmem:[%s3730 + $0x48] sm:$0xff]
        %v3741 = vld [vmem:[%s3730 + $0x50] sm:$0xff]
        %v3742 = vld [vmem:[%s3730 + $0x58] sm:$0xff]
        %v3743 = vld [vmem:[%s3730 + $0x60] sm:$0xff]
        %v3744 = vld [vmem:[%s3730 + $0x68] sm:$0xff]
        %v3745 = vld [vmem:[%s3730 + $0x70] sm:$0xff]
        %v3746 = vld [vmem:[%s3730 + $0x78] sm:$0xff]
        %v3747 = vrot.slane %v2613, 4
        %3749 = vmatpush.msra.mxu0 %v3746
        %3750 = vmatpush.msra.mxu0 %v3745
        %3751 = vmatpush.msra.mxu0 %v3744
        %3752 = vmatpush.msra.mxu0 %v3743
        %3753 = vmatpush.msra.mxu0 %v3742
        %3754 = vmatpush.msra.mxu0 %v3741
        %3755 = vmatpush.msra.mxu0 %v3740
        %3756 = vmatpush.msra.mxu0 %v3739
        %3757 = vmatpush.msra.mxu0 %v3738
        %3758 = vmatpush.msra.mxu0 %v3737
        %3759 = vmatpush.msra.mxu0 %v3736
        %3760 = vmatpush.msra.mxu0 %v3735
        %3761 = vmatpush.msra.mxu0 %v3734
        %3762 = vmatpush.msra.mxu0 %v3733
        %3763 = vmatpush.msra.mxu0 %v3732
        %3764 = vmatpush.msra.mxu0 %v3731
        %3765 = vmatmul.f32.gmra.mxu0 %v3747
        %v3766 = vpop.f32.mrf.mxu0
        %v3767 = vadd.f32 0.0, %v3766
        %3768 = vdwg.mxu0
        %v3769 = vadd.f32 %v3729, %v3767
        %s3770 = scalar_lea.vmem [#allocation12], 3712
        %v3771 = vld [vmem:[%s3770] sm:$0xff]
        %v3772 = vld [vmem:[%s3770 + $0x8] sm:$0xff]
        %v3773 = vld [vmem:[%s3770 + $0x10] sm:$0xff]
        %v3774 = vld [vmem:[%s3770 + $0x18] sm:$0xff]
        %v3775 = vld [vmem:[%s3770 + $0x20] sm:$0xff]
        %v3776 = vld [vmem:[%s3770 + $0x28] sm:$0xff]
        %v3777 = vld [vmem:[%s3770 + $0x30] sm:$0xff]
        %v3778 = vld [vmem:[%s3770 + $0x38] sm:$0xff]
        %v3779 = vld [vmem:[%s3770 + $0x40] sm:$0xff]
        %v3780 = vld [vmem:[%s3770 + $0x48] sm:$0xff]
        %v3781 = vld [vmem:[%s3770 + $0x50] sm:$0xff]
        %v3782 = vld [vmem:[%s3770 + $0x58] sm:$0xff]
        %v3783 = vld [vmem:[%s3770 + $0x60] sm:$0xff]
        %v3784 = vld [vmem:[%s3770 + $0x68] sm:$0xff]
        %v3785 = vld [vmem:[%s3770 + $0x70] sm:$0xff]
        %v3786 = vld [vmem:[%s3770 + $0x78] sm:$0xff]
        %v3787 = vrot.slane %v2613, 5
        %3789 = vmatpush.msra.mxu0 %v3786
        %3790 = vmatpush.msra.mxu0 %v3785
        %3791 = vmatpush.msra.mxu0 %v3784
        %3792 = vmatpush.msra.mxu0 %v3783
        %3793 = vmatpush.msra.mxu0 %v3782
        %3794 = vmatpush.msra.mxu0 %v3781
        %3795 = vmatpush.msra.mxu0 %v3780
        %3796 = vmatpush.msra.mxu0 %v3779
        %3797 = vmatpush.msra.mxu0 %v3778
        %3798 = vmatpush.msra.mxu0 %v3777
        %3799 = vmatpush.msra.mxu0 %v3776
        %3800 = vmatpush.msra.mxu0 %v3775
        %3801 = vmatpush.msra.mxu0 %v3774
        %3802 = vmatpush.msra.mxu0 %v3773
        %3803 = vmatpush.msra.mxu0 %v3772
        %3804 = vmatpush.msra.mxu0 %v3771
        %3805 = vmatmul.f32.gmra.mxu0 %v3787
        %v3806 = vpop.f32.mrf.mxu0
        %v3807 = vadd.f32 0.0, %v3806
        %3808 = vdwg.mxu0
        %v3809 = vadd.f32 %v3769, %v3807
        %s3810 = scalar_lea.vmem [#allocation12], 3840
        %v3811 = vld [vmem:[%s3810] sm:$0xff]
        %v3812 = vld [vmem:[%s3810 + $0x8] sm:$0xff]
        %v3813 = vld [vmem:[%s3810 + $0x10] sm:$0xff]
        %v3814 = vld [vmem:[%s3810 + $0x18] sm:$0xff]
        %v3815 = vld [vmem:[%s3810 + $0x20] sm:$0xff]
        %v3816 = vld [vmem:[%s3810 + $0x28] sm:$0xff]
        %v3817 = vld [vmem:[%s3810 + $0x30] sm:$0xff]
        %v3818 = vld [vmem:[%s3810 + $0x38] sm:$0xff]
        %v3819 = vld [vmem:[%s3810 + $0x40] sm:$0xff]
        %v3820 = vld [vmem:[%s3810 + $0x48] sm:$0xff]
        %v3821 = vld [vmem:[%s3810 + $0x50] sm:$0xff]
        %v3822 = vld [vmem:[%s3810 + $0x58] sm:$0xff]
        %v3823 = vld [vmem:[%s3810 + $0x60] sm:$0xff]
        %v3824 = vld [vmem:[%s3810 + $0x68] sm:$0xff]
        %v3825 = vld [vmem:[%s3810 + $0x70] sm:$0xff]
        %v3826 = vld [vmem:[%s3810 + $0x78] sm:$0xff]
        %v3827 = vrot.slane %v2613, 6
        %3829 = vmatpush.msra.mxu0 %v3826
        %3830 = vmatpush.msra.mxu0 %v3825
        %3831 = vmatpush.msra.mxu0 %v3824
        %3832 = vmatpush.msra.mxu0 %v3823
        %3833 = vmatpush.msra.mxu0 %v3822
        %3834 = vmatpush.msra.mxu0 %v3821
        %3835 = vmatpush.msra.mxu0 %v3820
        %3836 = vmatpush.msra.mxu0 %v3819
        %3837 = vmatpush.msra.mxu0 %v3818
        %3838 = vmatpush.msra.mxu0 %v3817
        %3839 = vmatpush.msra.mxu0 %v3816
        %3840 = vmatpush.msra.mxu0 %v3815
        %3841 = vmatpush.msra.mxu0 %v3814
        %3842 = vmatpush.msra.mxu0 %v3813
        %3843 = vmatpush.msra.mxu0 %v3812
        %3844 = vmatpush.msra.mxu0 %v3811
        %3845 = vmatmul.f32.gmra.mxu0 %v3827
        %v3846 = vpop.f32.mrf.mxu0
        %v3847 = vadd.f32 0.0, %v3846
        %3848 = vdwg.mxu0
        %v3849 = vadd.f32 %v3809, %v3847
        %s3850 = scalar_lea.vmem [#allocation12], 3968
        %v3851 = vld [vmem:[%s3850] sm:$0xff]
        %v3852 = vld [vmem:[%s3850 + $0x8] sm:$0xff]
        %v3853 = vld [vmem:[%s3850 + $0x10] sm:$0xff]
        %v3854 = vld [vmem:[%s3850 + $0x18] sm:$0xff]
        %v3855 = vld [vmem:[%s3850 + $0x20] sm:$0xff]
        %v3856 = vld [vmem:[%s3850 + $0x28] sm:$0xff]
        %v3857 = vld [vmem:[%s3850 + $0x30] sm:$0xff]
        %v3858 = vld [vmem:[%s3850 + $0x38] sm:$0xff]
        %v3859 = vld [vmem:[%s3850 + $0x40] sm:$0xff]
        %v3860 = vld [vmem:[%s3850 + $0x48] sm:$0xff]
        %v3861 = vld [vmem:[%s3850 + $0x50] sm:$0xff]
        %v3862 = vld [vmem:[%s3850 + $0x58] sm:$0xff]
        %v3863 = vld [vmem:[%s3850 + $0x60] sm:$0xff]
        %v3864 = vld [vmem:[%s3850 + $0x68] sm:$0xff]
        %v3865 = vld [vmem:[%s3850 + $0x70] sm:$0xff]
        %v3866 = vld [vmem:[%s3850 + $0x78] sm:$0xff]
        %v3867 = vrot.slane %v2613, 7
        %3869 = vmatpush.msra.mxu0 %v3866
        %3870 = vmatpush.msra.mxu0 %v3865
        %3871 = vmatpush.msra.mxu0 %v3864
        %3872 = vmatpush.msra.mxu0 %v3863
        %3873 = vmatpush.msra.mxu0 %v3862
        %3874 = vmatpush.msra.mxu0 %v3861
        %3875 = vmatpush.msra.mxu0 %v3860
        %3876 = vmatpush.msra.mxu0 %v3859
        %3877 = vmatpush.msra.mxu0 %v3858
        %3878 = vmatpush.msra.mxu0 %v3857
        %3879 = vmatpush.msra.mxu0 %v3856
        %3880 = vmatpush.msra.mxu0 %v3855
        %3881 = vmatpush.msra.mxu0 %v3854
        %3882 = vmatpush.msra.mxu0 %v3853
        %3883 = vmatpush.msra.mxu0 %v3852
        %3884 = vmatpush.msra.mxu0 %v3851
        %3885 = vmatmul.f32.gmra.mxu0 %v3867
        %v3886 = vpop.f32.mrf.mxu0
        %v3887 = vadd.f32 0.0, %v3886
        %3888 = vdwg.mxu0
        %v3889 = vadd.f32 %v3849, %v3887
        %3890 = vst [vmem:[%s407] sm:$0x1] %v3889
        %s3891 = sand.u32 %s207, 1
        %s3892 = scalar_lea.sflag [#allocation5], %s3891
        %s3893 = sand.u32 %s207, 1
        %s3894 = scalar_lea.vmem [#allocation15], %s3893
        // Predicated region
        $region81: #{tpu_custom_call.1} parent=51 // pred_check
          %p3895 = pneg %p217
        $region82: #{tpu_custom_call.1} parent=51 // pred_check_branch
          %3897 = sbr.rel (%p3895) target = $region84
        $region83: #{tpu_custom_call.1} parent=51 // pred_region
          %3899 = vsyncadd %s3892, 0
          %s3900 = scalar_lea.hbm %s8, %s26
          %s3902 = sshll.u32 %s3894, 4
          %s3903 = int_to_ptr.vmem [resolvable:$true] %s3902
          %s3904 = sshll.u32 %s3900, 4
          %s3905 = int_to_ptr.hbm [resolvable:$true] %s3904
          %3907 = dma.vmem_to_hbm [thread:$0]  %s3903, 16, %s3905, %s3892
        $region84: #{tpu_custom_call.1} parent=51 // pred_fallthru
          _
      $region52: #{tpu_custom_call.1} parent=5 // pred_fallthru
        _
      %p3908 = scmp.le.s32.totalorder 2, %s21
      // Predicated region
      $region85: #{tpu_custom_call.1} parent=5 // pred_check
        %p3909 = pneg %p3908
      $region86: #{tpu_custom_call.1} parent=5 // pred_check_branch
        %3911 = sbr.rel (%p3909) target = $region88
      $region87: #{tpu_custom_call.1} parent=5 // pred_region
        %s3912 = ssub.s32 %s21, 2
        // Predicated region
        $region89: #{tpu_custom_call.1} parent=87 // pred_check
          %p3913 = pneg %p223
        $region90: #{tpu_custom_call.1} parent=87 // pred_check_branch
          %3915 = sbr.rel (%p3913) target = $region92
        $region91: #{tpu_custom_call.1} parent=87 // pred_region
          %s3916 = sand.u32 %s208, 1
          %s3917 = scalar_lea.sflag [#allocation5], %s3916
          %s3918 = sand.u32 %s208, 1
          %s3919 = scalar_lea.vmem [#allocation15], %s3918
          %3921 = dma.done %s3917, 16
        $region92: #{tpu_custom_call.1} parent=87 // pred_fallthru
          _
      $region88: #{tpu_custom_call.1} parent=5 // pred_fallthru
        _
    $region6: #{tpu_custom_call.1} parent=1 // loop_footer
      %s25 = sadd.s32 1, %s21
    $region7: #{tpu_custom_call.1} parent=1 // loop_footer_branch
      %20 = sbr.rel target = $region3
    $region8: #{tpu_custom_call.1} parent=1 // loop_exit
      _
    %3922 = vsyncpa [#allocation4], 1
    %s3923 = scalar_lea.sflag [#allocation4], 1
    %3924 = vsyncpa %s3923, 1
    %3925 = vsyncpa [#allocation7], 1
    %3926 = vsyncpa [#allocation10], 1
    %3927 = vsyncpa [#allocation13], 1
    %3928 = vsyncpa [#allocation5], 1
    %s3929 = scalar_lea.sflag [#allocation5], 1
    %3930 = vsyncpa %s3929, 1

</llo_original>
